<compile_context>
chip_gen: v7x
topology: tpu7x:2x2x1
jax: 0.10.0
libtpu: 0.0.40
codegen_flags: <defaults>
</compile_context>

<pallas_src>
import functools
import math

import jax
import jax.numpy as jnp
from jax.experimental import pallas as pl
from jax.experimental.pallas import tpu as pltpu


# ----------------------------- Fused kernel -----------------------------

def _transformer_kernel(src_ref, win_ref, bin_ref, pe_ref,
                        wqkv_ref, bqkv_ref, wo_ref, bo_ref,
                        ln1g_ref, ln1b_ref,
                        w1_ref, b1_ref, w2_ref, b2_ref,
                        ln2g_ref, ln2b_ref,
                        gN_ref, bN_ref, wout_ref, bout_ref,
                        o_ref, *, num_layers, nhead, scale, eps):
    """One batch row per grid step: input_fc+PE -> L encoder layers ->
    final LN -> mean pool over seq -> output_fc."""
    bf16 = jnp.bfloat16
    f32 = jnp.float32

    def ln(y, g, b):
        mu = jnp.mean(y, axis=-1, keepdims=True)
        var = jnp.mean(jnp.square(y - mu), axis=-1, keepdims=True)
        return (y - mu) * jax.lax.rsqrt(var + eps) * g + b

    # ---- input_fc + dynamic positional encoding (dropout = identity) ----
    x = jnp.dot(src_ref[0].astype(bf16), win_ref[...],
                preferred_element_type=f32) + bin_ref[...] + pe_ref[...]     # (S,D)
    S, D = x.shape
    Dh = D // nhead

    # ---- post-norm encoder layers (static unroll) ----
    for l in range(num_layers):
        # Multi-head self-attention.
        qkv = jnp.dot(x.astype(bf16), wqkv_ref[l],
                      preferred_element_type=f32) + bqkv_ref[l]              # (S,3D)
        # Fold 1/sqrt(Dh) into q (incl. bias, matching PyTorch); cast once.
        q = (qkv[:, :D] * scale).astype(bf16)
        k = qkv[:, D:2 * D].astype(bf16)
        v = qkv[:, 2 * D:].astype(bf16)

        # Per-head score tiles stacked along sublanes -> one joint softmax.
        scores = jnp.concatenate(
            [jax.lax.dot_general(q[:, h * Dh:(h + 1) * Dh],
                                 k[:, h * Dh:(h + 1) * Dh],
                                 (((1,), (1,)), ((), ())),
                                 preferred_element_type=f32)
             for h in range(nhead)], axis=0)                                 # (H*S,S)
        scores = scores - jnp.max(scores, axis=-1, keepdims=True)
        p = jnp.exp(scores)
        p = p / jnp.sum(p, axis=-1, keepdims=True)                           # exact

        # Per-head attention outputs concatenated along lanes -> (S, D),
        # then ONE output-projection matmul against the full Wo.
        attn = jnp.concatenate(
            [jnp.dot(p[h * S:(h + 1) * S, :].astype(bf16),
                     v[:, h * Dh:(h + 1) * Dh],
                     preferred_element_type=f32)
             for h in range(nhead)], axis=-1)                                # (S,D)
        attn = jnp.dot(attn.astype(bf16), wo_ref[l],
                       preferred_element_type=f32) + bo_ref[l]
        x = ln(x + attn, ln1g_ref[l], ln1b_ref[l])                           # add & LN1

        # Feed-forward block.
        h1 = jnp.dot(x.astype(bf16), w1_ref[l],
                     preferred_element_type=f32) + b1_ref[l]
        h1 = jnp.maximum(h1, 0.0)
        ff = jnp.dot(h1.astype(bf16), w2_ref[l],
                     preferred_element_type=f32) + b2_ref[l]
        x = ln(x + ff, ln2g_ref[l], ln2b_ref[l])                             # add & LN2

    # ---- final encoder LayerNorm + mean pool over seq + output_fc ----
    y = ln(x, gN_ref[...], bN_ref[...])
    pooled = jnp.mean(y, axis=0, keepdims=True)                              # (1,D)
    out = jnp.dot(pooled.astype(bf16), wout_ref[...],
                  preferred_element_type=f32) + bout_ref[...]                # (1,O)
    o_ref[0] = out


# ----------------------------- Model glue -----------------------------

def positional_encoding(seq_len, d_model):
    pos = jnp.arange(seq_len, dtype=jnp.float32)[:, None]
    div = jnp.exp(jnp.arange(0, d_model, 2, dtype=jnp.float32)
                  * (-math.log(10000.0) / d_model))
    ang = pos * div                                            # (S, ceil(D/2))
    pe = jnp.zeros((seq_len, d_model), jnp.float32)
    pe = pe.at[:, 0::2].set(jnp.sin(ang))
    pe = pe.at[:, 1::2].set(jnp.cos(ang)[:, : d_model // 2])   # odd-D safe
    return pe


def init_params(key, input_dim, d_model, nhead, num_layers, dim_ff, output_dim):
    ks = iter(jax.random.split(key, 64))

    def w(shape, scale=0.05):
        return scale * jax.random.normal(next(ks), shape, dtype=jnp.float32)

    params = {
        "input_fc": {"w": w((input_dim, d_model)), "b": w((d_model,))},
        "output_fc": {"w": w((d_model, output_dim)), "b": w((output_dim,))},
        "encoder_norm": {"g": jnp.ones((d_model,), jnp.float32),
                         "b": jnp.zeros((d_model,), jnp.float32)},
        "layers": [],
    }
    for _ in range(num_layers):
        params["layers"].append({
            "in_proj_w": w((d_model, 3 * d_model)),
            "in_proj_b": w((3 * d_model,)),
            "out_proj_w": w((d_model, d_model)),
            "out_proj_b": w((d_model,)),
            "ln1_g": jnp.ones((d_model,), jnp.float32),
            "ln1_b": jnp.zeros((d_model,), jnp.float32),
            "ffn_w1": w((d_model, dim_ff)),
            "ffn_b1": w((dim_ff,)),
            "ffn_w2": w((dim_ff, d_model)),
            "ffn_b2": w((d_model,)),
            "ln2_g": jnp.ones((d_model,), jnp.float32),
            "ln2_b": jnp.zeros((d_model,), jnp.float32),
        })
    return params


def transformer_forward(params, src, nhead):
    """Fully-fused forward: one pallas_call, grid over the batch."""
    B, S, In = src.shape
    D = params["input_fc"]["w"].shape[1]
    F = params["layers"][0]["ffn_w1"].shape[1]
    O = params["output_fc"]["w"].shape[1]
    L = len(params["layers"])
    bf16 = jnp.bfloat16

    pe = positional_encoding(S, D)

    def stack_w(name):
        return jnp.stack([lp[name] for lp in params["layers"]]).astype(bf16)

    def stack_v(name, width):
        return jnp.stack([lp[name].reshape(1, width) for lp in params["layers"]])

    wqkv = stack_w("in_proj_w")                 # (L, D, 3D) bf16
    bqkv = stack_v("in_proj_b", 3 * D)          # (L, 1, 3D) f32
    wo = stack_w("out_proj_w")                  # (L, D, D)
    bo = stack_v("out_proj_b", D)
    ln1g = stack_v("ln1_g", D)
    ln1b = stack_v("ln1_b", D)
    w1 = stack_w("ffn_w1")                      # (L, D, F)
    b1 = stack_v("ffn_b1", F)
    w2 = stack_w("ffn_w2")                      # (L, F, D)
    b2 = stack_v("ffn_b2", D)
    ln2g = stack_v("ln2_g", D)
    ln2b = stack_v("ln2_b", D)

    kern = functools.partial(_transformer_kernel, num_layers=L, nhead=nhead,
                             scale=1.0 / math.sqrt(D // nhead), eps=1e-5)

    rep2 = lambda b: (0, 0)
    rep3 = lambda b: (0, 0, 0)

    out = pl.pallas_call(
        kern,
        out_shape=jax.ShapeDtypeStruct((B, 1, O), jnp.float32),
        grid=(B,),
        in_specs=[
            pl.BlockSpec((1, S, In), lambda b: (b, 0, 0)),   # src row
            pl.BlockSpec((In, D), rep2),                     # input_fc w
            pl.BlockSpec((1, D), rep2),                      # input_fc b
            pl.BlockSpec((S, D), rep2),                      # PE table
            pl.BlockSpec((L, D, 3 * D), rep3),               # in_proj w
            pl.BlockSpec((L, 1, 3 * D), rep3),               # in_proj b
            pl.BlockSpec((L, D, D), rep3),                   # out_proj w
            pl.BlockSpec((L, 1, D), rep3),                   # out_proj b
            pl.BlockSpec((L, 1, D), rep3),                   # ln1 gamma
            pl.BlockSpec((L, 1, D), rep3),                   # ln1 beta
            pl.BlockSpec((L, D, F), rep3),                   # ffn w1
            pl.BlockSpec((L, 1, F), rep3),                   # ffn b1
            pl.BlockSpec((L, F, D), rep3),                   # ffn w2
            pl.BlockSpec((L, 1, D), rep3),                   # ffn b2
            pl.BlockSpec((L, 1, D), rep3),                   # ln2 gamma
            pl.BlockSpec((L, 1, D), rep3),                   # ln2 beta
            pl.BlockSpec((1, D), rep2),                      # final-norm gamma
            pl.BlockSpec((1, D), rep2),                      # final-norm beta
            pl.BlockSpec((D, O), rep2),                      # output_fc w
            pl.BlockSpec((1, O), rep2),                      # output_fc b
        ],
        out_specs=pl.BlockSpec((1, 1, O), lambda b: (b, 0, 0)),
        compiler_params=pltpu.CompilerParams(
            dimension_semantics=("parallel",)),
    )(src,
      params["input_fc"]["w"].astype(bf16), params["input_fc"]["b"].reshape(1, D),
      pe,
      wqkv, bqkv, wo, bo, ln1g, ln1b, w1, b1, w2, b2, ln2g, ln2b,
      params["encoder_norm"]["g"].reshape(1, D),
      params["encoder_norm"]["b"].reshape(1, D),
      params["output_fc"]["w"].astype(bf16),
      params["output_fc"]["b"].reshape(1, O))

    return out.reshape(B, O)


# ----------------------------- Main -----------------------------

if __name__ == "__main__":
    input_dim, d_model, nhead = 4, 32, 4
    num_encoder_layers, dim_feedforward, output_dim = 2, 64, 3
    B, S = 2, 8

    key = jax.random.PRNGKey(0)
    kp, kx = jax.random.split(key)
    params = init_params(kp, input_dim, d_model, nhead,
                         num_encoder_layers, dim_feedforward, output_dim)
    src = jax.random.normal(kx, (B, S, input_dim), dtype=jnp.float32)

    fwd = jax.jit(functools.partial(transformer_forward, nhead=nhead))
    out = fwd(params, src)
    jax.block_until_ready(out)
    assert out.shape == (B, output_dim)
    print("KERNEL_OK")
</pallas_src>

<mosaic_0001>
module attributes {stable_mosaic.version = 11 : i64} {
  func.func @_transformer_kernel(%arg0: i32, %arg1: memref<1x8x4xf32, #tpu.memory_space<vmem>>, %arg2: memref<4x32xbf16, #tpu.memory_space<vmem>>, %arg3: memref<1x32xf32, #tpu.memory_space<vmem>>, %arg4: memref<8x32xf32, #tpu.memory_space<vmem>>, %arg5: memref<2x32x96xbf16, #tpu.memory_space<vmem>>, %arg6: memref<2x1x96xf32, #tpu.memory_space<vmem>>, %arg7: memref<2x32x32xbf16, #tpu.memory_space<vmem>>, %arg8: memref<2x1x32xf32, #tpu.memory_space<vmem>>, %arg9: memref<2x1x32xf32, #tpu.memory_space<vmem>>, %arg10: memref<2x1x32xf32, #tpu.memory_space<vmem>>, %arg11: memref<2x32x64xbf16, #tpu.memory_space<vmem>>, %arg12: memref<2x1x64xf32, #tpu.memory_space<vmem>>, %arg13: memref<2x64x32xbf16, #tpu.memory_space<vmem>>, %arg14: memref<2x1x32xf32, #tpu.memory_space<vmem>>, %arg15: memref<2x1x32xf32, #tpu.memory_space<vmem>>, %arg16: memref<2x1x32xf32, #tpu.memory_space<vmem>>, %arg17: memref<1x32xf32, #tpu.memory_space<vmem>>, %arg18: memref<1x32xf32, #tpu.memory_space<vmem>>, %arg19: memref<32x3xbf16, #tpu.memory_space<vmem>>, %arg20: memref<1x3xf32, #tpu.memory_space<vmem>>, %arg21: memref<1x1x3xf32, #tpu.memory_space<vmem>>) attributes {dimension_semantics = [#tpu.dimension_semantics<parallel>], iteration_bounds = array<i64: 2>, scalar_prefetch = 0 : i64, scratch_operands = 0 : i64, tpu.core_type = #tpu.core_type<tc>, window_params = [{transform_indices = @transform_0, window_bounds = array<i64: 1, 8, 4>}, {pipeline_mode = #tpu.pipeline_mode<synchronous>, transform_indices = @transform_1, window_bounds = array<i64: 4, 32>}, {pipeline_mode = #tpu.pipeline_mode<synchronous>, transform_indices = @transform_2, window_bounds = array<i64: 1, 32>}, {pipeline_mode = #tpu.pipeline_mode<synchronous>, transform_indices = @transform_3, window_bounds = array<i64: 8, 32>}, {pipeline_mode = #tpu.pipeline_mode<synchronous>, transform_indices = @transform_4, window_bounds = array<i64: 2, 32, 96>}, {pipeline_mode = #tpu.pipeline_mode<synchronous>, transform_indices = @transform_5, window_bounds = array<i64: 2, 1, 96>}, {pipeline_mode = #tpu.pipeline_mode<synchronous>, transform_indices = @transform_6, window_bounds = array<i64: 2, 32, 32>}, {pipeline_mode = #tpu.pipeline_mode<synchronous>, transform_indices = @transform_7, window_bounds = array<i64: 2, 1, 32>}, {pipeline_mode = #tpu.pipeline_mode<synchronous>, transform_indices = @transform_8, window_bounds = array<i64: 2, 1, 32>}, {pipeline_mode = #tpu.pipeline_mode<synchronous>, transform_indices = @transform_9, window_bounds = array<i64: 2, 1, 32>}, {pipeline_mode = #tpu.pipeline_mode<synchronous>, transform_indices = @transform_10, window_bounds = array<i64: 2, 32, 64>}, {pipeline_mode = #tpu.pipeline_mode<synchronous>, transform_indices = @transform_11, window_bounds = array<i64: 2, 1, 64>}, {pipeline_mode = #tpu.pipeline_mode<synchronous>, transform_indices = @transform_12, window_bounds = array<i64: 2, 64, 32>}, {pipeline_mode = #tpu.pipeline_mode<synchronous>, transform_indices = @transform_13, window_bounds = array<i64: 2, 1, 32>}, {pipeline_mode = #tpu.pipeline_mode<synchronous>, transform_indices = @transform_14, window_bounds = array<i64: 2, 1, 32>}, {pipeline_mode = #tpu.pipeline_mode<synchronous>, transform_indices = @transform_15, window_bounds = array<i64: 2, 1, 32>}, {pipeline_mode = #tpu.pipeline_mode<synchronous>, transform_indices = @transform_16, window_bounds = array<i64: 1, 32>}, {pipeline_mode = #tpu.pipeline_mode<synchronous>, transform_indices = @transform_17, window_bounds = array<i64: 1, 32>}, {pipeline_mode = #tpu.pipeline_mode<synchronous>, transform_indices = @transform_18, window_bounds = array<i64: 32, 3>}, {pipeline_mode = #tpu.pipeline_mode<synchronous>, transform_indices = @transform_19, window_bounds = array<i64: 1, 3>}, {transform_indices = @transform_20, window_bounds = array<i64: 1, 1, 3>}]} {
    %c0 = arith.constant 0 : index
    %c0_0 = arith.constant 0 : index
    %c0_1 = arith.constant 0 : index
    %0 = vector.load %arg1[%c0, %c0_0, %c0_1] : memref<1x8x4xf32, #tpu.memory_space<vmem>>, vector<1x8x4xf32>
    %1 = vector.shape_cast %0 : vector<1x8x4xf32> to vector<8x4xf32>
    %2 = arith.truncf %1 : vector<8x4xf32> to vector<8x4xbf16>
    %c0_2 = arith.constant 0 : index
    %c0_3 = arith.constant 0 : index
    %3 = vector.load %arg2[%c0_2, %c0_3] : memref<4x32xbf16, #tpu.memory_space<vmem>>, vector<4x32xbf16>
    %cst = arith.constant dense<0.000000e+00> : vector<8x32xf32>
    %4 = tpu.matmul %2, %3, %cst {dimension_numbers = #tpu.dot_dimension_numbers<[1], [0], [0], [1], [0, 0, 1, 1], [], []>} : vector<8x4xbf16>, vector<4x32xbf16>, vector<8x32xf32> -> vector<8x32xf32>
    %c0_4 = arith.constant 0 : index
    %c0_5 = arith.constant 0 : index
    %5 = vector.load %arg3[%c0_4, %c0_5] : memref<1x32xf32, #tpu.memory_space<vmem>>, vector<1x32xf32>
    %6 = vector.broadcast %5 : vector<1x32xf32> to vector<8x32xf32>
    %7 = arith.addf %4, %6 : vector<8x32xf32>
    %c0_6 = arith.constant 0 : index
    %c0_7 = arith.constant 0 : index
    %8 = vector.load %arg4[%c0_6, %c0_7] : memref<8x32xf32, #tpu.memory_space<vmem>>, vector<8x32xf32>
    %9 = arith.addf %7, %8 : vector<8x32xf32>
    %10 = arith.truncf %9 : vector<8x32xf32> to vector<8x32xbf16>
    %c0_8 = arith.constant 0 : index
    %c0_9 = arith.constant 0 : index
    %c0_10 = arith.constant 0 : index
    %11 = vector.load %arg5[%c0_8, %c0_9, %c0_10] : memref<2x32x96xbf16, #tpu.memory_space<vmem>>, vector<1x32x96xbf16>
    %12 = vector.shape_cast %11 : vector<1x32x96xbf16> to vector<32x96xbf16>
    %cst_11 = arith.constant dense<0.000000e+00> : vector<8x96xf32>
    %13 = tpu.matmul %10, %12, %cst_11 {dimension_numbers = #tpu.dot_dimension_numbers<[1], [0], [0], [1], [0, 0, 1, 1], [], []>} : vector<8x32xbf16>, vector<32x96xbf16>, vector<8x96xf32> -> vector<8x96xf32>
    %c0_12 = arith.constant 0 : index
    %c0_13 = arith.constant 0 : index
    %c0_14 = arith.constant 0 : index
    %14 = vector.load %arg6[%c0_12, %c0_13, %c0_14] : memref<2x1x96xf32, #tpu.memory_space<vmem>>, vector<1x1x96xf32>
    %15 = vector.shape_cast %14 : vector<1x1x96xf32> to vector<1x96xf32>
    %16 = vector.broadcast %15 : vector<1x96xf32> to vector<8x96xf32>
    %17 = arith.addf %13, %16 : vector<8x96xf32>
    %18 = vector.extract_strided_slice %17 {offsets = [0, 0], sizes = [8, 32], strides = [1, 1]} : vector<8x96xf32> to vector<8x32xf32>
    %cst_15 = arith.constant 0.353553385 : f32
    %19 = vector.broadcast %cst_15 : f32 to vector<8x32xf32>
    %20 = arith.mulf %18, %19 : vector<8x32xf32>
    %21 = arith.truncf %20 : vector<8x32xf32> to vector<8x32xbf16>
    %22 = vector.extract_strided_slice %17 {offsets = [0, 32], sizes = [8, 32], strides = [1, 1]} : vector<8x96xf32> to vector<8x32xf32>
    %23 = arith.truncf %22 : vector<8x32xf32> to vector<8x32xbf16>
    %24 = vector.extract_strided_slice %17 {offsets = [0, 64], sizes = [8, 32], strides = [1, 1]} : vector<8x96xf32> to vector<8x32xf32>
    %25 = arith.truncf %24 : vector<8x32xf32> to vector<8x32xbf16>
    %26 = vector.extract_strided_slice %21 {offsets = [0, 0], sizes = [8, 8], strides = [1, 1]} : vector<8x32xbf16> to vector<8x8xbf16>
    %27 = vector.extract_strided_slice %23 {offsets = [0, 0], sizes = [8, 8], strides = [1, 1]} : vector<8x32xbf16> to vector<8x8xbf16>
    %cst_16 = arith.constant dense<0.000000e+00> : vector<8x8xf32>
    %28 = tpu.matmul %26, %27, %cst_16 {dimension_numbers = #tpu.dot_dimension_numbers<[1], [1], [0], [0], [0, 0, 1, 0], [], []>} : vector<8x8xbf16>, vector<8x8xbf16>, vector<8x8xf32> -> vector<8x8xf32>
    %29 = vector.extract_strided_slice %21 {offsets = [0, 8], sizes = [8, 8], strides = [1, 1]} : vector<8x32xbf16> to vector<8x8xbf16>
    %30 = vector.extract_strided_slice %23 {offsets = [0, 8], sizes = [8, 8], strides = [1, 1]} : vector<8x32xbf16> to vector<8x8xbf16>
    %cst_17 = arith.constant dense<0.000000e+00> : vector<8x8xf32>
    %31 = tpu.matmul %29, %30, %cst_17 {dimension_numbers = #tpu.dot_dimension_numbers<[1], [1], [0], [0], [0, 0, 1, 0], [], []>} : vector<8x8xbf16>, vector<8x8xbf16>, vector<8x8xf32> -> vector<8x8xf32>
    %32 = vector.extract_strided_slice %21 {offsets = [0, 16], sizes = [8, 8], strides = [1, 1]} : vector<8x32xbf16> to vector<8x8xbf16>
    %33 = vector.extract_strided_slice %23 {offsets = [0, 16], sizes = [8, 8], strides = [1, 1]} : vector<8x32xbf16> to vector<8x8xbf16>
    %cst_18 = arith.constant dense<0.000000e+00> : vector<8x8xf32>
    %34 = tpu.matmul %32, %33, %cst_18 {dimension_numbers = #tpu.dot_dimension_numbers<[1], [1], [0], [0], [0, 0, 1, 0], [], []>} : vector<8x8xbf16>, vector<8x8xbf16>, vector<8x8xf32> -> vector<8x8xf32>
    %35 = vector.extract_strided_slice %21 {offsets = [0, 24], sizes = [8, 8], strides = [1, 1]} : vector<8x32xbf16> to vector<8x8xbf16>
    %36 = vector.extract_strided_slice %23 {offsets = [0, 24], sizes = [8, 8], strides = [1, 1]} : vector<8x32xbf16> to vector<8x8xbf16>
    %cst_19 = arith.constant dense<0.000000e+00> : vector<8x8xf32>
    %37 = tpu.matmul %35, %36, %cst_19 {dimension_numbers = #tpu.dot_dimension_numbers<[1], [1], [0], [0], [0, 0, 1, 0], [], []>} : vector<8x8xbf16>, vector<8x8xbf16>, vector<8x8xf32> -> vector<8x8xf32>
    %38 = tpu.concatenate %28, %31, %34, %37 in 0 : vector<8x8xf32>, vector<8x8xf32>, vector<8x8xf32>, vector<8x8xf32> -> vector<32x8xf32>
    %cst_20 = arith.constant dense<0xFF800000> : vector<32xf32>
    %39 = vector.multi_reduction <maximumf>, %38, %cst_20 [1] : vector<32x8xf32> to vector<32xf32>
    %40 = vector.shape_cast %39 : vector<32xf32> to vector<32x1xf32>
    %41 = vector.broadcast %40 : vector<32x1xf32> to vector<32x8xf32>
    %42 = arith.subf %38, %41 : vector<32x8xf32>
    %43 = math.exp %42 : vector<32x8xf32>
    %cst_21 = arith.constant dense<0.000000e+00> : vector<32xf32>
    %44 = vector.multi_reduction <add>, %43, %cst_21 [1] : vector<32x8xf32> to vector<32xf32>
    %45 = vector.shape_cast %44 : vector<32xf32> to vector<32x1xf32>
    %46 = vector.broadcast %45 : vector<32x1xf32> to vector<32x8xf32>
    %47 = arith.divf %43, %46 : vector<32x8xf32>
    %48 = vector.extract_strided_slice %47 {offsets = [0, 0], sizes = [8, 8], strides = [1, 1]} : vector<32x8xf32> to vector<8x8xf32>
    %49 = arith.truncf %48 : vector<8x8xf32> to vector<8x8xbf16>
    %50 = vector.extract_strided_slice %25 {offsets = [0, 0], sizes = [8, 8], strides = [1, 1]} : vector<8x32xbf16> to vector<8x8xbf16>
    %cst_22 = arith.constant dense<0.000000e+00> : vector<8x8xf32>
    %51 = tpu.matmul %49, %50, %cst_22 {dimension_numbers = #tpu.dot_dimension_numbers<[1], [0], [0], [1], [0, 0, 1, 1], [], []>} : vector<8x8xbf16>, vector<8x8xbf16>, vector<8x8xf32> -> vector<8x8xf32>
    %52 = vector.extract_strided_slice %47 {offsets = [8, 0], sizes = [8, 8], strides = [1, 1]} : vector<32x8xf32> to vector<8x8xf32>
    %53 = arith.truncf %52 : vector<8x8xf32> to vector<8x8xbf16>
    %54 = vector.extract_strided_slice %25 {offsets = [0, 8], sizes = [8, 8], strides = [1, 1]} : vector<8x32xbf16> to vector<8x8xbf16>
    %cst_23 = arith.constant dense<0.000000e+00> : vector<8x8xf32>
    %55 = tpu.matmul %53, %54, %cst_23 {dimension_numbers = #tpu.dot_dimension_numbers<[1], [0], [0], [1], [0, 0, 1, 1], [], []>} : vector<8x8xbf16>, vector<8x8xbf16>, vector<8x8xf32> -> vector<8x8xf32>
    %56 = vector.extract_strided_slice %47 {offsets = [16, 0], sizes = [8, 8], strides = [1, 1]} : vector<32x8xf32> to vector<8x8xf32>
    %57 = arith.truncf %56 : vector<8x8xf32> to vector<8x8xbf16>
    %58 = vector.extract_strided_slice %25 {offsets = [0, 16], sizes = [8, 8], strides = [1, 1]} : vector<8x32xbf16> to vector<8x8xbf16>
    %cst_24 = arith.constant dense<0.000000e+00> : vector<8x8xf32>
    %59 = tpu.matmul %57, %58, %cst_24 {dimension_numbers = #tpu.dot_dimension_numbers<[1], [0], [0], [1], [0, 0, 1, 1], [], []>} : vector<8x8xbf16>, vector<8x8xbf16>, vector<8x8xf32> -> vector<8x8xf32>
    %60 = vector.extract_strided_slice %47 {offsets = [24, 0], sizes = [8, 8], strides = [1, 1]} : vector<32x8xf32> to vector<8x8xf32>
    %61 = arith.truncf %60 : vector<8x8xf32> to vector<8x8xbf16>
    %62 = vector.extract_strided_slice %25 {offsets = [0, 24], sizes = [8, 8], strides = [1, 1]} : vector<8x32xbf16> to vector<8x8xbf16>
    %cst_25 = arith.constant dense<0.000000e+00> : vector<8x8xf32>
    %63 = tpu.matmul %61, %62, %cst_25 {dimension_numbers = #tpu.dot_dimension_numbers<[1], [0], [0], [1], [0, 0, 1, 1], [], []>} : vector<8x8xbf16>, vector<8x8xbf16>, vector<8x8xf32> -> vector<8x8xf32>
    %64 = tpu.concatenate %51, %55, %59, %63 in 1 : vector<8x8xf32>, vector<8x8xf32>, vector<8x8xf32>, vector<8x8xf32> -> vector<8x32xf32>
    %65 = arith.truncf %64 : vector<8x32xf32> to vector<8x32xbf16>
    %c0_26 = arith.constant 0 : index
    %c0_27 = arith.constant 0 : index
    %c0_28 = arith.constant 0 : index
    %66 = vector.load %arg7[%c0_26, %c0_27, %c0_28] : memref<2x32x32xbf16, #tpu.memory_space<vmem>>, vector<1x32x32xbf16>
    %67 = vector.shape_cast %66 : vector<1x32x32xbf16> to vector<32x32xbf16>
    %cst_29 = arith.constant dense<0.000000e+00> : vector<8x32xf32>
    %68 = tpu.matmul %65, %67, %cst_29 {dimension_numbers = #tpu.dot_dimension_numbers<[1], [0], [0], [1], [0, 0, 1, 1], [], []>} : vector<8x32xbf16>, vector<32x32xbf16>, vector<8x32xf32> -> vector<8x32xf32>
    %c0_30 = arith.constant 0 : index
    %c0_31 = arith.constant 0 : index
    %c0_32 = arith.constant 0 : index
    %69 = vector.load %arg8[%c0_30, %c0_31, %c0_32] : memref<2x1x32xf32, #tpu.memory_space<vmem>>, vector<1x1x32xf32>
    %70 = vector.shape_cast %69 : vector<1x1x32xf32> to vector<1x32xf32>
    %71 = vector.broadcast %70 : vector<1x32xf32> to vector<8x32xf32>
    %72 = arith.addf %68, %71 : vector<8x32xf32>
    %73 = arith.addf %9, %72 : vector<8x32xf32>
    %c0_33 = arith.constant 0 : index
    %c0_34 = arith.constant 0 : index
    %c0_35 = arith.constant 0 : index
    %74 = vector.load %arg9[%c0_33, %c0_34, %c0_35] : memref<2x1x32xf32, #tpu.memory_space<vmem>>, vector<1x1x32xf32>
    %75 = vector.shape_cast %74 : vector<1x1x32xf32> to vector<1x32xf32>
    %c0_36 = arith.constant 0 : index
    %c0_37 = arith.constant 0 : index
    %c0_38 = arith.constant 0 : index
    %76 = vector.load %arg10[%c0_36, %c0_37, %c0_38] : memref<2x1x32xf32, #tpu.memory_space<vmem>>, vector<1x1x32xf32>
    %77 = vector.shape_cast %76 : vector<1x1x32xf32> to vector<1x32xf32>
    %cst_39 = arith.constant dense<0.000000e+00> : vector<8xf32>
    %78 = vector.multi_reduction <add>, %73, %cst_39 [1] : vector<8x32xf32> to vector<8xf32>
    %79 = vector.shape_cast %78 : vector<8xf32> to vector<8x1xf32>
    %cst_40 = arith.constant 3.200000e+01 : f32
    %80 = vector.broadcast %cst_40 : f32 to vector<8x1xf32>
    %81 = arith.divf %79, %80 : vector<8x1xf32>
    %82 = vector.broadcast %81 : vector<8x1xf32> to vector<8x32xf32>
    %83 = arith.subf %73, %82 : vector<8x32xf32>
    %84 = arith.mulf %83, %83 : vector<8x32xf32>
    %cst_41 = arith.constant dense<0.000000e+00> : vector<8xf32>
    %85 = vector.multi_reduction <add>, %84, %cst_41 [1] : vector<8x32xf32> to vector<8xf32>
    %86 = vector.shape_cast %85 : vector<8xf32> to vector<8x1xf32>
    %cst_42 = arith.constant 3.200000e+01 : f32
    %87 = vector.broadcast %cst_42 : f32 to vector<8x1xf32>
    %88 = arith.divf %86, %87 : vector<8x1xf32>
    %89 = vector.broadcast %81 : vector<8x1xf32> to vector<8x32xf32>
    %90 = arith.subf %73, %89 : vector<8x32xf32>
    %cst_43 = arith.constant 9.99999974E-6 : f32
    %91 = vector.broadcast %cst_43 : f32 to vector<8x1xf32>
    %92 = arith.addf %88, %91 : vector<8x1xf32>
    %93 = math.rsqrt %92 : vector<8x1xf32>
    %94 = vector.broadcast %93 : vector<8x1xf32> to vector<8x32xf32>
    %95 = arith.mulf %90, %94 : vector<8x32xf32>
    %96 = vector.broadcast %75 : vector<1x32xf32> to vector<8x32xf32>
    %97 = arith.mulf %95, %96 : vector<8x32xf32>
    %98 = vector.broadcast %77 : vector<1x32xf32> to vector<8x32xf32>
    %99 = arith.addf %97, %98 : vector<8x32xf32>
    %100 = arith.truncf %99 : vector<8x32xf32> to vector<8x32xbf16>
    %c0_44 = arith.constant 0 : index
    %c0_45 = arith.constant 0 : index
    %c0_46 = arith.constant 0 : index
    %101 = vector.load %arg11[%c0_44, %c0_45, %c0_46] : memref<2x32x64xbf16, #tpu.memory_space<vmem>>, vector<1x32x64xbf16>
    %102 = vector.shape_cast %101 : vector<1x32x64xbf16> to vector<32x64xbf16>
    %cst_47 = arith.constant dense<0.000000e+00> : vector<8x64xf32>
    %103 = tpu.matmul %100, %102, %cst_47 {dimension_numbers = #tpu.dot_dimension_numbers<[1], [0], [0], [1], [0, 0, 1, 1], [], []>} : vector<8x32xbf16>, vector<32x64xbf16>, vector<8x64xf32> -> vector<8x64xf32>
    %c0_48 = arith.constant 0 : index
    %c0_49 = arith.constant 0 : index
    %c0_50 = arith.constant 0 : index
    %104 = vector.load %arg12[%c0_48, %c0_49, %c0_50] : memref<2x1x64xf32, #tpu.memory_space<vmem>>, vector<1x1x64xf32>
    %105 = vector.shape_cast %104 : vector<1x1x64xf32> to vector<1x64xf32>
    %106 = vector.broadcast %105 : vector<1x64xf32> to vector<8x64xf32>
    %107 = arith.addf %103, %106 : vector<8x64xf32>
    %cst_51 = arith.constant 0.000000e+00 : f32
    %108 = vector.broadcast %cst_51 : f32 to vector<8x64xf32>
    %109 = arith.maximumf %107, %108 : vector<8x64xf32>
    %110 = arith.truncf %109 : vector<8x64xf32> to vector<8x64xbf16>
    %c0_52 = arith.constant 0 : index
    %c0_53 = arith.constant 0 : index
    %c0_54 = arith.constant 0 : index
    %111 = vector.load %arg13[%c0_52, %c0_53, %c0_54] : memref<2x64x32xbf16, #tpu.memory_space<vmem>>, vector<1x64x32xbf16>
    %112 = vector.shape_cast %111 : vector<1x64x32xbf16> to vector<64x32xbf16>
    %cst_55 = arith.constant dense<0.000000e+00> : vector<8x32xf32>
    %113 = tpu.matmul %110, %112, %cst_55 {dimension_numbers = #tpu.dot_dimension_numbers<[1], [0], [0], [1], [0, 0, 1, 1], [], []>} : vector<8x64xbf16>, vector<64x32xbf16>, vector<8x32xf32> -> vector<8x32xf32>
    %c0_56 = arith.constant 0 : index
    %c0_57 = arith.constant 0 : index
    %c0_58 = arith.constant 0 : index
    %114 = vector.load %arg14[%c0_56, %c0_57, %c0_58] : memref<2x1x32xf32, #tpu.memory_space<vmem>>, vector<1x1x32xf32>
    %115 = vector.shape_cast %114 : vector<1x1x32xf32> to vector<1x32xf32>
    %116 = vector.broadcast %115 : vector<1x32xf32> to vector<8x32xf32>
    %117 = arith.addf %113, %116 : vector<8x32xf32>
    %118 = arith.addf %99, %117 : vector<8x32xf32>
    %c0_59 = arith.constant 0 : index
    %c0_60 = arith.constant 0 : index
    %c0_61 = arith.constant 0 : index
    %119 = vector.load %arg15[%c0_59, %c0_60, %c0_61] : memref<2x1x32xf32, #tpu.memory_space<vmem>>, vector<1x1x32xf32>
    %120 = vector.shape_cast %119 : vector<1x1x32xf32> to vector<1x32xf32>
    %c0_62 = arith.constant 0 : index
    %c0_63 = arith.constant 0 : index
    %c0_64 = arith.constant 0 : index
    %121 = vector.load %arg16[%c0_62, %c0_63, %c0_64] : memref<2x1x32xf32, #tpu.memory_space<vmem>>, vector<1x1x32xf32>
    %122 = vector.shape_cast %121 : vector<1x1x32xf32> to vector<1x32xf32>
    %cst_65 = arith.constant dense<0.000000e+00> : vector<8xf32>
    %123 = vector.multi_reduction <add>, %118, %cst_65 [1] : vector<8x32xf32> to vector<8xf32>
    %124 = vector.shape_cast %123 : vector<8xf32> to vector<8x1xf32>
    %cst_66 = arith.constant 3.200000e+01 : f32
    %125 = vector.broadcast %cst_66 : f32 to vector<8x1xf32>
    %126 = arith.divf %124, %125 : vector<8x1xf32>
    %127 = vector.broadcast %126 : vector<8x1xf32> to vector<8x32xf32>
    %128 = arith.subf %118, %127 : vector<8x32xf32>
    %129 = arith.mulf %128, %128 : vector<8x32xf32>
    %cst_67 = arith.constant dense<0.000000e+00> : vector<8xf32>
    %130 = vector.multi_reduction <add>, %129, %cst_67 [1] : vector<8x32xf32> to vector<8xf32>
    %131 = vector.shape_cast %130 : vector<8xf32> to vector<8x1xf32>
    %cst_68 = arith.constant 3.200000e+01 : f32
    %132 = vector.broadcast %cst_68 : f32 to vector<8x1xf32>
    %133 = arith.divf %131, %132 : vector<8x1xf32>
    %134 = vector.broadcast %126 : vector<8x1xf32> to vector<8x32xf32>
    %135 = arith.subf %118, %134 : vector<8x32xf32>
    %cst_69 = arith.constant 9.99999974E-6 : f32
    %136 = vector.broadcast %cst_69 : f32 to vector<8x1xf32>
    %137 = arith.addf %133, %136 : vector<8x1xf32>
    %138 = math.rsqrt %137 : vector<8x1xf32>
    %139 = vector.broadcast %138 : vector<8x1xf32> to vector<8x32xf32>
    %140 = arith.mulf %135, %139 : vector<8x32xf32>
    %141 = vector.broadcast %120 : vector<1x32xf32> to vector<8x32xf32>
    %142 = arith.mulf %140, %141 : vector<8x32xf32>
    %143 = vector.broadcast %122 : vector<1x32xf32> to vector<8x32xf32>
    %144 = arith.addf %142, %143 : vector<8x32xf32>
    %145 = arith.truncf %144 : vector<8x32xf32> to vector<8x32xbf16>
    %c1 = arith.constant 1 : index
    %c0_70 = arith.constant 0 : index
    %c0_71 = arith.constant 0 : index
    %146 = vector.load %arg5[%c1, %c0_70, %c0_71] : memref<2x32x96xbf16, #tpu.memory_space<vmem>>, vector<1x32x96xbf16>
    %147 = vector.shape_cast %146 : vector<1x32x96xbf16> to vector<32x96xbf16>
    %cst_72 = arith.constant dense<0.000000e+00> : vector<8x96xf32>
    %148 = tpu.matmul %145, %147, %cst_72 {dimension_numbers = #tpu.dot_dimension_numbers<[1], [0], [0], [1], [0, 0, 1, 1], [], []>} : vector<8x32xbf16>, vector<32x96xbf16>, vector<8x96xf32> -> vector<8x96xf32>
    %c1_73 = arith.constant 1 : index
    %c0_74 = arith.constant 0 : index
    %c0_75 = arith.constant 0 : index
    %149 = vector.load %arg6[%c1_73, %c0_74, %c0_75] : memref<2x1x96xf32, #tpu.memory_space<vmem>>, vector<1x1x96xf32>
    %150 = vector.shape_cast %149 : vector<1x1x96xf32> to vector<1x96xf32>
    %151 = vector.broadcast %150 : vector<1x96xf32> to vector<8x96xf32>
    %152 = arith.addf %148, %151 : vector<8x96xf32>
    %153 = vector.extract_strided_slice %152 {offsets = [0, 0], sizes = [8, 32], strides = [1, 1]} : vector<8x96xf32> to vector<8x32xf32>
    %cst_76 = arith.constant 0.353553385 : f32
    %154 = vector.broadcast %cst_76 : f32 to vector<8x32xf32>
    %155 = arith.mulf %153, %154 : vector<8x32xf32>
    %156 = arith.truncf %155 : vector<8x32xf32> to vector<8x32xbf16>
    %157 = vector.extract_strided_slice %152 {offsets = [0, 32], sizes = [8, 32], strides = [1, 1]} : vector<8x96xf32> to vector<8x32xf32>
    %158 = arith.truncf %157 : vector<8x32xf32> to vector<8x32xbf16>
    %159 = vector.extract_strided_slice %152 {offsets = [0, 64], sizes = [8, 32], strides = [1, 1]} : vector<8x96xf32> to vector<8x32xf32>
    %160 = arith.truncf %159 : vector<8x32xf32> to vector<8x32xbf16>
    %161 = vector.extract_strided_slice %156 {offsets = [0, 0], sizes = [8, 8], strides = [1, 1]} : vector<8x32xbf16> to vector<8x8xbf16>
    %162 = vector.extract_strided_slice %158 {offsets = [0, 0], sizes = [8, 8], strides = [1, 1]} : vector<8x32xbf16> to vector<8x8xbf16>
    %cst_77 = arith.constant dense<0.000000e+00> : vector<8x8xf32>
    %163 = tpu.matmul %161, %162, %cst_77 {dimension_numbers = #tpu.dot_dimension_numbers<[1], [1], [0], [0], [0, 0, 1, 0], [], []>} : vector<8x8xbf16>, vector<8x8xbf16>, vector<8x8xf32> -> vector<8x8xf32>
    %164 = vector.extract_strided_slice %156 {offsets = [0, 8], sizes = [8, 8], strides = [1, 1]} : vector<8x32xbf16> to vector<8x8xbf16>
    %165 = vector.extract_strided_slice %158 {offsets = [0, 8], sizes = [8, 8], strides = [1, 1]} : vector<8x32xbf16> to vector<8x8xbf16>
    %cst_78 = arith.constant dense<0.000000e+00> : vector<8x8xf32>
    %166 = tpu.matmul %164, %165, %cst_78 {dimension_numbers = #tpu.dot_dimension_numbers<[1], [1], [0], [0], [0, 0, 1, 0], [], []>} : vector<8x8xbf16>, vector<8x8xbf16>, vector<8x8xf32> -> vector<8x8xf32>
    %167 = vector.extract_strided_slice %156 {offsets = [0, 16], sizes = [8, 8], strides = [1, 1]} : vector<8x32xbf16> to vector<8x8xbf16>
    %168 = vector.extract_strided_slice %158 {offsets = [0, 16], sizes = [8, 8], strides = [1, 1]} : vector<8x32xbf16> to vector<8x8xbf16>
    %cst_79 = arith.constant dense<0.000000e+00> : vector<8x8xf32>
    %169 = tpu.matmul %167, %168, %cst_79 {dimension_numbers = #tpu.dot_dimension_numbers<[1], [1], [0], [0], [0, 0, 1, 0], [], []>} : vector<8x8xbf16>, vector<8x8xbf16>, vector<8x8xf32> -> vector<8x8xf32>
    %170 = vector.extract_strided_slice %156 {offsets = [0, 24], sizes = [8, 8], strides = [1, 1]} : vector<8x32xbf16> to vector<8x8xbf16>
    %171 = vector.extract_strided_slice %158 {offsets = [0, 24], sizes = [8, 8], strides = [1, 1]} : vector<8x32xbf16> to vector<8x8xbf16>
    %cst_80 = arith.constant dense<0.000000e+00> : vector<8x8xf32>
    %172 = tpu.matmul %170, %171, %cst_80 {dimension_numbers = #tpu.dot_dimension_numbers<[1], [1], [0], [0], [0, 0, 1, 0], [], []>} : vector<8x8xbf16>, vector<8x8xbf16>, vector<8x8xf32> -> vector<8x8xf32>
    %173 = tpu.concatenate %163, %166, %169, %172 in 0 : vector<8x8xf32>, vector<8x8xf32>, vector<8x8xf32>, vector<8x8xf32> -> vector<32x8xf32>
    %cst_81 = arith.constant dense<0xFF800000> : vector<32xf32>
    %174 = vector.multi_reduction <maximumf>, %173, %cst_81 [1] : vector<32x8xf32> to vector<32xf32>
    %175 = vector.shape_cast %174 : vector<32xf32> to vector<32x1xf32>
    %176 = vector.broadcast %175 : vector<32x1xf32> to vector<32x8xf32>
    %177 = arith.subf %173, %176 : vector<32x8xf32>
    %178 = math.exp %177 : vector<32x8xf32>
    %cst_82 = arith.constant dense<0.000000e+00> : vector<32xf32>
    %179 = vector.multi_reduction <add>, %178, %cst_82 [1] : vector<32x8xf32> to vector<32xf32>
    %180 = vector.shape_cast %179 : vector<32xf32> to vector<32x1xf32>
    %181 = vector.broadcast %180 : vector<32x1xf32> to vector<32x8xf32>
    %182 = arith.divf %178, %181 : vector<32x8xf32>
    %183 = vector.extract_strided_slice %182 {offsets = [0, 0], sizes = [8, 8], strides = [1, 1]} : vector<32x8xf32> to vector<8x8xf32>
    %184 = arith.truncf %183 : vector<8x8xf32> to vector<8x8xbf16>
    %185 = vector.extract_strided_slice %160 {offsets = [0, 0], sizes = [8, 8], strides = [1, 1]} : vector<8x32xbf16> to vector<8x8xbf16>
    %cst_83 = arith.constant dense<0.000000e+00> : vector<8x8xf32>
    %186 = tpu.matmul %184, %185, %cst_83 {dimension_numbers = #tpu.dot_dimension_numbers<[1], [0], [0], [1], [0, 0, 1, 1], [], []>} : vector<8x8xbf16>, vector<8x8xbf16>, vector<8x8xf32> -> vector<8x8xf32>
    %187 = vector.extract_strided_slice %182 {offsets = [8, 0], sizes = [8, 8], strides = [1, 1]} : vector<32x8xf32> to vector<8x8xf32>
    %188 = arith.truncf %187 : vector<8x8xf32> to vector<8x8xbf16>
    %189 = vector.extract_strided_slice %160 {offsets = [0, 8], sizes = [8, 8], strides = [1, 1]} : vector<8x32xbf16> to vector<8x8xbf16>
    %cst_84 = arith.constant dense<0.000000e+00> : vector<8x8xf32>
    %190 = tpu.matmul %188, %189, %cst_84 {dimension_numbers = #tpu.dot_dimension_numbers<[1], [0], [0], [1], [0, 0, 1, 1], [], []>} : vector<8x8xbf16>, vector<8x8xbf16>, vector<8x8xf32> -> vector<8x8xf32>
    %191 = vector.extract_strided_slice %182 {offsets = [16, 0], sizes = [8, 8], strides = [1, 1]} : vector<32x8xf32> to vector<8x8xf32>
    %192 = arith.truncf %191 : vector<8x8xf32> to vector<8x8xbf16>
    %193 = vector.extract_strided_slice %160 {offsets = [0, 16], sizes = [8, 8], strides = [1, 1]} : vector<8x32xbf16> to vector<8x8xbf16>
    %cst_85 = arith.constant dense<0.000000e+00> : vector<8x8xf32>
    %194 = tpu.matmul %192, %193, %cst_85 {dimension_numbers = #tpu.dot_dimension_numbers<[1], [0], [0], [1], [0, 0, 1, 1], [], []>} : vector<8x8xbf16>, vector<8x8xbf16>, vector<8x8xf32> -> vector<8x8xf32>
    %195 = vector.extract_strided_slice %182 {offsets = [24, 0], sizes = [8, 8], strides = [1, 1]} : vector<32x8xf32> to vector<8x8xf32>
    %196 = arith.truncf %195 : vector<8x8xf32> to vector<8x8xbf16>
    %197 = vector.extract_strided_slice %160 {offsets = [0, 24], sizes = [8, 8], strides = [1, 1]} : vector<8x32xbf16> to vector<8x8xbf16>
    %cst_86 = arith.constant dense<0.000000e+00> : vector<8x8xf32>
    %198 = tpu.matmul %196, %197, %cst_86 {dimension_numbers = #tpu.dot_dimension_numbers<[1], [0], [0], [1], [0, 0, 1, 1], [], []>} : vector<8x8xbf16>, vector<8x8xbf16>, vector<8x8xf32> -> vector<8x8xf32>
    %199 = tpu.concatenate %186, %190, %194, %198 in 1 : vector<8x8xf32>, vector<8x8xf32>, vector<8x8xf32>, vector<8x8xf32> -> vector<8x32xf32>
    %200 = arith.truncf %199 : vector<8x32xf32> to vector<8x32xbf16>
    %c1_87 = arith.constant 1 : index
    %c0_88 = arith.constant 0 : index
    %c0_89 = arith.constant 0 : index
    %201 = vector.load %arg7[%c1_87, %c0_88, %c0_89] : memref<2x32x32xbf16, #tpu.memory_space<vmem>>, vector<1x32x32xbf16>
    %202 = vector.shape_cast %201 : vector<1x32x32xbf16> to vector<32x32xbf16>
    %cst_90 = arith.constant dense<0.000000e+00> : vector<8x32xf32>
    %203 = tpu.matmul %200, %202, %cst_90 {dimension_numbers = #tpu.dot_dimension_numbers<[1], [0], [0], [1], [0, 0, 1, 1], [], []>} : vector<8x32xbf16>, vector<32x32xbf16>, vector<8x32xf32> -> vector<8x32xf32>
    %c1_91 = arith.constant 1 : index
    %c0_92 = arith.constant 0 : index
    %c0_93 = arith.constant 0 : index
    %204 = vector.load %arg8[%c1_91, %c0_92, %c0_93] : memref<2x1x32xf32, #tpu.memory_space<vmem>>, vector<1x1x32xf32>
    %205 = vector.shape_cast %204 : vector<1x1x32xf32> to vector<1x32xf32>
    %206 = vector.broadcast %205 : vector<1x32xf32> to vector<8x32xf32>
    %207 = arith.addf %203, %206 : vector<8x32xf32>
    %208 = arith.addf %144, %207 : vector<8x32xf32>
    %c1_94 = arith.constant 1 : index
    %c0_95 = arith.constant 0 : index
    %c0_96 = arith.constant 0 : index
    %209 = vector.load %arg9[%c1_94, %c0_95, %c0_96] : memref<2x1x32xf32, #tpu.memory_space<vmem>>, vector<1x1x32xf32>
    %210 = vector.shape_cast %209 : vector<1x1x32xf32> to vector<1x32xf32>
    %c1_97 = arith.constant 1 : index
    %c0_98 = arith.constant 0 : index
    %c0_99 = arith.constant 0 : index
    %211 = vector.load %arg10[%c1_97, %c0_98, %c0_99] : memref<2x1x32xf32, #tpu.memory_space<vmem>>, vector<1x1x32xf32>
    %212 = vector.shape_cast %211 : vector<1x1x32xf32> to vector<1x32xf32>
    %cst_100 = arith.constant dense<0.000000e+00> : vector<8xf32>
    %213 = vector.multi_reduction <add>, %208, %cst_100 [1] : vector<8x32xf32> to vector<8xf32>
    %214 = vector.shape_cast %213 : vector<8xf32> to vector<8x1xf32>
    %cst_101 = arith.constant 3.200000e+01 : f32
    %215 = vector.broadcast %cst_101 : f32 to vector<8x1xf32>
    %216 = arith.divf %214, %215 : vector<8x1xf32>
    %217 = vector.broadcast %216 : vector<8x1xf32> to vector<8x32xf32>
    %218 = arith.subf %208, %217 : vector<8x32xf32>
    %219 = arith.mulf %218, %218 : vector<8x32xf32>
    %cst_102 = arith.constant dense<0.000000e+00> : vector<8xf32>
    %220 = vector.multi_reduction <add>, %219, %cst_102 [1] : vector<8x32xf32> to vector<8xf32>
    %221 = vector.shape_cast %220 : vector<8xf32> to vector<8x1xf32>
    %cst_103 = arith.constant 3.200000e+01 : f32
    %222 = vector.broadcast %cst_103 : f32 to vector<8x1xf32>
    %223 = arith.divf %221, %222 : vector<8x1xf32>
    %224 = vector.broadcast %216 : vector<8x1xf32> to vector<8x32xf32>
    %225 = arith.subf %208, %224 : vector<8x32xf32>
    %cst_104 = arith.constant 9.99999974E-6 : f32
    %226 = vector.broadcast %cst_104 : f32 to vector<8x1xf32>
    %227 = arith.addf %223, %226 : vector<8x1xf32>
    %228 = math.rsqrt %227 : vector<8x1xf32>
    %229 = vector.broadcast %228 : vector<8x1xf32> to vector<8x32xf32>
    %230 = arith.mulf %225, %229 : vector<8x32xf32>
    %231 = vector.broadcast %210 : vector<1x32xf32> to vector<8x32xf32>
    %232 = arith.mulf %230, %231 : vector<8x32xf32>
    %233 = vector.broadcast %212 : vector<1x32xf32> to vector<8x32xf32>
    %234 = arith.addf %232, %233 : vector<8x32xf32>
    %235 = arith.truncf %234 : vector<8x32xf32> to vector<8x32xbf16>
    %c1_105 = arith.constant 1 : index
    %c0_106 = arith.constant 0 : index
    %c0_107 = arith.constant 0 : index
    %236 = vector.load %arg11[%c1_105, %c0_106, %c0_107] : memref<2x32x64xbf16, #tpu.memory_space<vmem>>, vector<1x32x64xbf16>
    %237 = vector.shape_cast %236 : vector<1x32x64xbf16> to vector<32x64xbf16>
    %cst_108 = arith.constant dense<0.000000e+00> : vector<8x64xf32>
    %238 = tpu.matmul %235, %237, %cst_108 {dimension_numbers = #tpu.dot_dimension_numbers<[1], [0], [0], [1], [0, 0, 1, 1], [], []>} : vector<8x32xbf16>, vector<32x64xbf16>, vector<8x64xf32> -> vector<8x64xf32>
    %c1_109 = arith.constant 1 : index
    %c0_110 = arith.constant 0 : index
    %c0_111 = arith.constant 0 : index
    %239 = vector.load %arg12[%c1_109, %c0_110, %c0_111] : memref<2x1x64xf32, #tpu.memory_space<vmem>>, vector<1x1x64xf32>
    %240 = vector.shape_cast %239 : vector<1x1x64xf32> to vector<1x64xf32>
    %241 = vector.broadcast %240 : vector<1x64xf32> to vector<8x64xf32>
    %242 = arith.addf %238, %241 : vector<8x64xf32>
    %cst_112 = arith.constant 0.000000e+00 : f32
    %243 = vector.broadcast %cst_112 : f32 to vector<8x64xf32>
    %244 = arith.maximumf %242, %243 : vector<8x64xf32>
    %245 = arith.truncf %244 : vector<8x64xf32> to vector<8x64xbf16>
    %c1_113 = arith.constant 1 : index
    %c0_114 = arith.constant 0 : index
    %c0_115 = arith.constant 0 : index
    %246 = vector.load %arg13[%c1_113, %c0_114, %c0_115] : memref<2x64x32xbf16, #tpu.memory_space<vmem>>, vector<1x64x32xbf16>
    %247 = vector.shape_cast %246 : vector<1x64x32xbf16> to vector<64x32xbf16>
    %cst_116 = arith.constant dense<0.000000e+00> : vector<8x32xf32>
    %248 = tpu.matmul %245, %247, %cst_116 {dimension_numbers = #tpu.dot_dimension_numbers<[1], [0], [0], [1], [0, 0, 1, 1], [], []>} : vector<8x64xbf16>, vector<64x32xbf16>, vector<8x32xf32> -> vector<8x32xf32>
    %c1_117 = arith.constant 1 : index
    %c0_118 = arith.constant 0 : index
    %c0_119 = arith.constant 0 : index
    %249 = vector.load %arg14[%c1_117, %c0_118, %c0_119] : memref<2x1x32xf32, #tpu.memory_space<vmem>>, vector<1x1x32xf32>
    %250 = vector.shape_cast %249 : vector<1x1x32xf32> to vector<1x32xf32>
    %251 = vector.broadcast %250 : vector<1x32xf32> to vector<8x32xf32>
    %252 = arith.addf %248, %251 : vector<8x32xf32>
    %253 = arith.addf %234, %252 : vector<8x32xf32>
    %c1_120 = arith.constant 1 : index
    %c0_121 = arith.constant 0 : index
    %c0_122 = arith.constant 0 : index
    %254 = vector.load %arg15[%c1_120, %c0_121, %c0_122] : memref<2x1x32xf32, #tpu.memory_space<vmem>>, vector<1x1x32xf32>
    %255 = vector.shape_cast %254 : vector<1x1x32xf32> to vector<1x32xf32>
    %c1_123 = arith.constant 1 : index
    %c0_124 = arith.constant 0 : index
    %c0_125 = arith.constant 0 : index
    %256 = vector.load %arg16[%c1_123, %c0_124, %c0_125] : memref<2x1x32xf32, #tpu.memory_space<vmem>>, vector<1x1x32xf32>
    %257 = vector.shape_cast %256 : vector<1x1x32xf32> to vector<1x32xf32>
    %cst_126 = arith.constant dense<0.000000e+00> : vector<8xf32>
    %258 = vector.multi_reduction <add>, %253, %cst_126 [1] : vector<8x32xf32> to vector<8xf32>
    %259 = vector.shape_cast %258 : vector<8xf32> to vector<8x1xf32>
    %cst_127 = arith.constant 3.200000e+01 : f32
    %260 = vector.broadcast %cst_127 : f32 to vector<8x1xf32>
    %261 = arith.divf %259, %260 : vector<8x1xf32>
    %262 = vector.broadcast %261 : vector<8x1xf32> to vector<8x32xf32>
    %263 = arith.subf %253, %262 : vector<8x32xf32>
    %264 = arith.mulf %263, %263 : vector<8x32xf32>
    %cst_128 = arith.constant dense<0.000000e+00> : vector<8xf32>
    %265 = vector.multi_reduction <add>, %264, %cst_128 [1] : vector<8x32xf32> to vector<8xf32>
    %266 = vector.shape_cast %265 : vector<8xf32> to vector<8x1xf32>
    %cst_129 = arith.constant 3.200000e+01 : f32
    %267 = vector.broadcast %cst_129 : f32 to vector<8x1xf32>
    %268 = arith.divf %266, %267 : vector<8x1xf32>
    %269 = vector.broadcast %261 : vector<8x1xf32> to vector<8x32xf32>
    %270 = arith.subf %253, %269 : vector<8x32xf32>
    %cst_130 = arith.constant 9.99999974E-6 : f32
    %271 = vector.broadcast %cst_130 : f32 to vector<8x1xf32>
    %272 = arith.addf %268, %271 : vector<8x1xf32>
    %273 = math.rsqrt %272 : vector<8x1xf32>
    %274 = vector.broadcast %273 : vector<8x1xf32> to vector<8x32xf32>
    %275 = arith.mulf %270, %274 : vector<8x32xf32>
    %276 = vector.broadcast %255 : vector<1x32xf32> to vector<8x32xf32>
    %277 = arith.mulf %275, %276 : vector<8x32xf32>
    %278 = vector.broadcast %257 : vector<1x32xf32> to vector<8x32xf32>
    %279 = arith.addf %277, %278 : vector<8x32xf32>
    %c0_131 = arith.constant 0 : index
    %c0_132 = arith.constant 0 : index
    %280 = vector.load %arg17[%c0_131, %c0_132] : memref<1x32xf32, #tpu.memory_space<vmem>>, vector<1x32xf32>
    %c0_133 = arith.constant 0 : index
    %c0_134 = arith.constant 0 : index
    %281 = vector.load %arg18[%c0_133, %c0_134] : memref<1x32xf32, #tpu.memory_space<vmem>>, vector<1x32xf32>
    %cst_135 = arith.constant dense<0.000000e+00> : vector<8xf32>
    %282 = vector.multi_reduction <add>, %279, %cst_135 [1] : vector<8x32xf32> to vector<8xf32>
    %283 = vector.shape_cast %282 : vector<8xf32> to vector<8x1xf32>
    %cst_136 = arith.constant 3.200000e+01 : f32
    %284 = vector.broadcast %cst_136 : f32 to vector<8x1xf32>
    %285 = arith.divf %283, %284 : vector<8x1xf32>
    %286 = vector.broadcast %285 : vector<8x1xf32> to vector<8x32xf32>
    %287 = arith.subf %279, %286 : vector<8x32xf32>
    %288 = arith.mulf %287, %287 : vector<8x32xf32>
    %cst_137 = arith.constant dense<0.000000e+00> : vector<8xf32>
    %289 = vector.multi_reduction <add>, %288, %cst_137 [1] : vector<8x32xf32> to vector<8xf32>
    %290 = vector.shape_cast %289 : vector<8xf32> to vector<8x1xf32>
    %cst_138 = arith.constant 3.200000e+01 : f32
    %291 = vector.broadcast %cst_138 : f32 to vector<8x1xf32>
    %292 = arith.divf %290, %291 : vector<8x1xf32>
    %293 = vector.broadcast %285 : vector<8x1xf32> to vector<8x32xf32>
    %294 = arith.subf %279, %293 : vector<8x32xf32>
    %cst_139 = arith.constant 9.99999974E-6 : f32
    %295 = vector.broadcast %cst_139 : f32 to vector<8x1xf32>
    %296 = arith.addf %292, %295 : vector<8x1xf32>
    %297 = math.rsqrt %296 : vector<8x1xf32>
    %298 = vector.broadcast %297 : vector<8x1xf32> to vector<8x32xf32>
    %299 = arith.mulf %294, %298 : vector<8x32xf32>
    %300 = vector.broadcast %280 : vector<1x32xf32> to vector<8x32xf32>
    %301 = arith.mulf %299, %300 : vector<8x32xf32>
    %302 = vector.broadcast %281 : vector<1x32xf32> to vector<8x32xf32>
    %303 = arith.addf %301, %302 : vector<8x32xf32>
    %cst_140 = arith.constant dense<0.000000e+00> : vector<32xf32>
    %304 = vector.multi_reduction <add>, %303, %cst_140 [0] : vector<8x32xf32> to vector<32xf32>
    %305 = vector.shape_cast %304 : vector<32xf32> to vector<1x32xf32>
    %cst_141 = arith.constant 8.000000e+00 : f32
    %306 = vector.broadcast %cst_141 : f32 to vector<1x32xf32>
    %307 = arith.divf %305, %306 : vector<1x32xf32>
    %308 = arith.truncf %307 : vector<1x32xf32> to vector<1x32xbf16>
    %c0_142 = arith.constant 0 : index
    %c0_143 = arith.constant 0 : index
    %309 = vector.load %arg19[%c0_142, %c0_143] : memref<32x3xbf16, #tpu.memory_space<vmem>>, vector<32x3xbf16>
    %cst_144 = arith.constant dense<0.000000e+00> : vector<1x3xf32>
    %310 = tpu.matmul %308, %309, %cst_144 {dimension_numbers = #tpu.dot_dimension_numbers<[1], [0], [0], [1], [0, 0, 1, 1], [], []>} : vector<1x32xbf16>, vector<32x3xbf16>, vector<1x3xf32> -> vector<1x3xf32>
    %c0_145 = arith.constant 0 : index
    %c0_146 = arith.constant 0 : index
    %311 = vector.load %arg20[%c0_145, %c0_146] : memref<1x3xf32, #tpu.memory_space<vmem>>, vector<1x3xf32>
    %312 = arith.addf %310, %311 : vector<1x3xf32>
    %c0_147 = arith.constant 0 : index
    %c0_148 = arith.constant 0 : index
    %c0_149 = arith.constant 0 : index
    %313 = vector.load %arg21[%c0_147, %c0_148, %c0_149] : memref<1x1x3xf32, #tpu.memory_space<vmem>>, vector<1x1x3xf32>
    %314 = vector.shape_cast %313 : vector<1x1x3xf32> to vector<1x3xf32>
    %315 = vector.shape_cast %312 : vector<1x3xf32> to vector<1x1x3xf32>
    tpu.vector_store %arg21[%c0_147, %c0_148, %c0_149], %315 {strides = array<i32>} : memref<1x1x3xf32, #tpu.memory_space<vmem>>, vector<1x1x3xf32>,
    return
  }
  func.func @transform_0(%arg0: i32) -> (i32, i32, i32) {
    %c0_i32 = arith.constant 0 : i32
    %c0_i32_0 = arith.constant 0 : i32
    %c0_i32_1 = arith.constant 0 : i32
    return %arg0, %c0_i32, %c0_i32_0 : i32, i32, i32
  }
  func.func @transform_1(%arg0: i32) -> (i32, i32) {
    %c0_i32 = arith.constant 0 : i32
    %c0_i32_0 = arith.constant 0 : i32
    %c0_i32_1 = arith.constant 0 : i32
    return %c0_i32, %c0_i32_0 : i32, i32
  }
  func.func @transform_2(%arg0: i32) -> (i32, i32) {
    %c0_i32 = arith.constant 0 : i32
    %c0_i32_0 = arith.constant 0 : i32
    %c0_i32_1 = arith.constant 0 : i32
    return %c0_i32, %c0_i32_0 : i32, i32
  }
  func.func @transform_3(%arg0: i32) -> (i32, i32) {
    %c0_i32 = arith.constant 0 : i32
    %c0_i32_0 = arith.constant 0 : i32
    %c0_i32_1 = arith.constant 0 : i32
    return %c0_i32, %c0_i32_0 : i32, i32
  }
  func.func @transform_4(%arg0: i32) -> (i32, i32, i32) {
    %c0_i32 = arith.constant 0 : i32
    %c0_i32_0 = arith.constant 0 : i32
    %c0_i32_1 = arith.constant 0 : i32
    %c0_i32_2 = arith.constant 0 : i32
    return %c0_i32, %c0_i32_0, %c0_i32_1 : i32, i32, i32
  }
  func.func @transform_5(%arg0: i32) -> (i32, i32, i32) {
    %c0_i32 = arith.constant 0 : i32
    %c0_i32_0 = arith.constant 0 : i32
    %c0_i32_1 = arith.constant 0 : i32
    %c0_i32_2 = arith.constant 0 : i32
    return %c0_i32, %c0_i32_0, %c0_i32_1 : i32, i32, i32
  }
  func.func @transform_6(%arg0: i32) -> (i32, i32, i32) {
    %c0_i32 = arith.constant 0 : i32
    %c0_i32_0 = arith.constant 0 : i32
    %c0_i32_1 = arith.constant 0 : i32
    %c0_i32_2 = arith.constant 0 : i32
    return %c0_i32, %c0_i32_0, %c0_i32_1 : i32, i32, i32
  }
  func.func @transform_7(%arg0: i32) -> (i32, i32, i32) {
    %c0_i32 = arith.constant 0 : i32
    %c0_i32_0 = arith.constant 0 : i32
    %c0_i32_1 = arith.constant 0 : i32
    %c0_i32_2 = arith.constant 0 : i32
    return %c0_i32, %c0_i32_0, %c0_i32_1 : i32, i32, i32
  }
  func.func @transform_8(%arg0: i32) -> (i32, i32, i32) {
    %c0_i32 = arith.constant 0 : i32
    %c0_i32_0 = arith.constant 0 : i32
    %c0_i32_1 = arith.constant 0 : i32
    %c0_i32_2 = arith.constant 0 : i32
    return %c0_i32, %c0_i32_0, %c0_i32_1 : i32, i32, i32
  }
  func.func @transform_9(%arg0: i32) -> (i32, i32, i32) {
    %c0_i32 = arith.constant 0 : i32
    %c0_i32_0 = arith.constant 0 : i32
    %c0_i32_1 = arith.constant 0 : i32
    %c0_i32_2 = arith.constant 0 : i32
    return %c0_i32, %c0_i32_0, %c0_i32_1 : i32, i32, i32
  }
  func.func @transform_10(%arg0: i32) -> (i32, i32, i32) {
    %c0_i32 = arith.constant 0 : i32
    %c0_i32_0 = arith.constant 0 : i32
    %c0_i32_1 = arith.constant 0 : i32
    %c0_i32_2 = arith.constant 0 : i32
    return %c0_i32, %c0_i32_0, %c0_i32_1 : i32, i32, i32
  }
  func.func @transform_11(%arg0: i32) -> (i32, i32, i32) {
    %c0_i32 = arith.constant 0 : i32
    %c0_i32_0 = arith.constant 0 : i32
    %c0_i32_1 = arith.constant 0 : i32
    %c0_i32_2 = arith.constant 0 : i32
    return %c0_i32, %c0_i32_0, %c0_i32_1 : i32, i32, i32
  }
  func.func @transform_12(%arg0: i32) -> (i32, i32, i32) {
    %c0_i32 = arith.constant 0 : i32
    %c0_i32_0 = arith.constant 0 : i32
    %c0_i32_1 = arith.constant 0 : i32
    %c0_i32_2 = arith.constant 0 : i32
    return %c0_i32, %c0_i32_0, %c0_i32_1 : i32, i32, i32
  }
  func.func @transform_13(%arg0: i32) -> (i32, i32, i32) {
    %c0_i32 = arith.constant 0 : i32
    %c0_i32_0 = arith.constant 0 : i32
    %c0_i32_1 = arith.constant 0 : i32
    %c0_i32_2 = arith.constant 0 : i32
    return %c0_i32, %c0_i32_0, %c0_i32_1 : i32, i32, i32
  }
  func.func @transform_14(%arg0: i32) -> (i32, i32, i32) {
    %c0_i32 = arith.constant 0 : i32
    %c0_i32_0 = arith.constant 0 : i32
    %c0_i32_1 = arith.constant 0 : i32
    %c0_i32_2 = arith.constant 0 : i32
    return %c0_i32, %c0_i32_0, %c0_i32_1 : i32, i32, i32
  }
  func.func @transform_15(%arg0: i32) -> (i32, i32, i32) {
    %c0_i32 = arith.constant 0 : i32
    %c0_i32_0 = arith.constant 0 : i32
    %c0_i32_1 = arith.constant 0 : i32
    %c0_i32_2 = arith.constant 0 : i32
    return %c0_i32, %c0_i32_0, %c0_i32_1 : i32, i32, i32
  }
  func.func @transform_16(%arg0: i32) -> (i32, i32) {
    %c0_i32 = arith.constant 0 : i32
    %c0_i32_0 = arith.constant 0 : i32
    %c0_i32_1 = arith.constant 0 : i32
    return %c0_i32, %c0_i32_0 : i32, i32
  }
  func.func @transform_17(%arg0: i32) -> (i32, i32) {
    %c0_i32 = arith.constant 0 : i32
    %c0_i32_0 = arith.constant 0 : i32
    %c0_i32_1 = arith.constant 0 : i32
    return %c0_i32, %c0_i32_0 : i32, i32
  }
  func.func @transform_18(%arg0: i32) -> (i32, i32) {
    %c0_i32 = arith.constant 0 : i32
    %c0_i32_0 = arith.constant 0 : i32
    %c0_i32_1 = arith.constant 0 : i32
    return %c0_i32, %c0_i32_0 : i32, i32
  }
  func.func @transform_19(%arg0: i32) -> (i32, i32) {
    %c0_i32 = arith.constant 0 : i32
    %c0_i32_0 = arith.constant 0 : i32
    %c0_i32_1 = arith.constant 0 : i32
    return %c0_i32, %c0_i32_0 : i32, i32
  }
  func.func @transform_20(%arg0: i32) -> (i32, i32, i32) {
    %c0_i32 = arith.constant 0 : i32
    %c0_i32_0 = arith.constant 0 : i32
    %c0_i32_1 = arith.constant 0 : i32
    return %arg0, %c0_i32, %c0_i32_0 : i32, i32, i32
  }
}

</mosaic_0001>

<llo_original>
// kernel: transformer_forward.1
$region0: #{transformer_forward.1}
  #allocation0 [shape = 'u32[]', space=smem, size = 0x4, offset = 0x4, fixed_abs, tag = 'smem constant byte address 0x4 - core index']
  #allocation1 [shape = 'u32[144,128]{1,0:T(1,128)}', space=vmem, size = 0x12000, scoped, tag = 'internal scratch']
  %s0 = inlined_call_operand.vmem [shape: f32[2,8,4], index: 0, kind: input, shape index: {}]
  %s1 = inlined_call_operand.vmem [shape: bf16[4,32], index: 1, kind: input, shape index: {}]
  %s2 = inlined_call_operand.vmem [shape: f32[1,32], index: 2, kind: input, shape index: {}]
  %s3 = inlined_call_operand.vmem [shape: f32[8,32], index: 3, kind: input, shape index: {}]
  %s4 = inlined_call_operand.vmem [shape: bf16[2,32,96], index: 4, kind: input, shape index: {}]
  %s5 = inlined_call_operand.vmem [shape: f32[2,1,96], index: 5, kind: input, shape index: {}]
  %s6 = inlined_call_operand.vmem [shape: bf16[2,32,32], index: 6, kind: input, shape index: {}]
  %s7 = inlined_call_operand.vmem [shape: f32[2,1,32], index: 7, kind: input, shape index: {}]
  %s8 = inlined_call_operand.vmem [shape: f32[2,1,32], index: 8, kind: input, shape index: {}]
  %s9 = inlined_call_operand.vmem [shape: f32[2,1,32], index: 9, kind: input, shape index: {}]
  %s10 = inlined_call_operand.vmem [shape: bf16[2,32,64], index: 10, kind: input, shape index: {}]
  %s11 = inlined_call_operand.vmem [shape: f32[2,1,64], index: 11, kind: input, shape index: {}]
  %s12 = inlined_call_operand.vmem [shape: bf16[2,64,32], index: 12, kind: input, shape index: {}]
  %s13 = inlined_call_operand.vmem [shape: f32[2,1,32], index: 13, kind: input, shape index: {}]
  %s14 = inlined_call_operand.vmem [shape: f32[2,1,32], index: 14, kind: input, shape index: {}]
  %s15 = inlined_call_operand.vmem [shape: f32[2,1,32], index: 15, kind: input, shape index: {}]
  %s16 = inlined_call_operand.vmem [shape: f32[1,32], index: 16, kind: input, shape index: {}]
  %s17 = inlined_call_operand.vmem [shape: f32[1,32], index: 17, kind: input, shape index: {}]
  %s18 = inlined_call_operand.vmem [shape: bf16[32,3], index: 18, kind: input, shape index: {}]
  %s19 = inlined_call_operand.vmem [shape: f32[1,3], index: 19, kind: input, shape index: {}]
  %s20 = inlined_call_operand.hbm [shape: f32[2,1,3], index: 20, kind: output, shape index: {}]
  %s21 = sld [smem:[#allocation0]]
  $region113: #{transformer_forward.1} parent=0
    _
  %s23 = ssub.s32 1, %s21
  %s24 = scalar_select 0, %s23, %s21
  $region1: #{transformer_forward.1} parent=0
    #allocation2 [shape = 'u8[1024]{0}', space=vmem, size = 0x400, scoped, tag = 'output window, operand 0']
    #allocation3 [shape = 's32[2]{0}', space=sflag, size = 0x8, scoped, tag = 'scoped memory for transformer_forward.1']
    %25 = vsyncpa [#allocation3], 0
    %s26 = scalar_lea.sflag [#allocation3], 1
    %27 = vsyncpa %s26, 0
    loop: start=0, step=1, limit=4
    $region2: #{transformer_forward.1} parent=1 // loop_pre_header
      _
    $region3: #{transformer_forward.1} parent=1 // loop_header
      %s29 = sphi 0, %s33
      %p30 = scmp.ge.s32.totalorder %s29, 4
      %s39 = sphi 0, %s41
      %s42 = sphi 0, %s39
      %s43 = sphi 0, %s42
      %s59 = sphi 0, %s43
      %s63 = sphi 0, %s63
      %s65 = sphi 0, %s63
      %s66 = sphi 0, %s65
      %s80 = sphi 0, %s66
      %s84 = sphi 0, %s84
      %s86 = sphi 0, %s84
      %s87 = sphi 0, %s86
      %s101 = sphi 0, %s87
      %s105 = sphi 0, %s105
      %s107 = sphi 0, %s105
      %s108 = sphi 0, %s107
      %s122 = sphi 0, %s108
      %s126 = sphi 0, %s126
      %s128 = sphi 0, %s126
      %s129 = sphi 0, %s128
      %s143 = sphi 0, %s129
      %s147 = sphi 0, %s147
      %s149 = sphi 0, %s147
      %s150 = sphi 0, %s149
      %s164 = sphi 0, %s150
      %s168 = sphi 0, %s168
      %s170 = sphi 0, %s168
      %s171 = sphi 0, %s170
      %s185 = sphi 0, %s171
      %s189 = sphi 0, %s189
      %s191 = sphi 0, %s189
      %s192 = sphi 0, %s191
      %s206 = sphi 0, %s192
      %s210 = sphi 0, %s210
      %s212 = sphi 0, %s210
      %s213 = sphi 0, %s212
      %s227 = sphi 0, %s213
      %s231 = sphi 0, %s231
      %s233 = sphi 0, %s231
      %s234 = sphi 0, %s233
      %s248 = sphi 0, %s234
      %s252 = sphi 0, %s252
      %s254 = sphi 0, %s252
      %s255 = sphi 0, %s254
      %s269 = sphi 0, %s255
      %s273 = sphi 0, %s273
      %s275 = sphi 0, %s273
      %s276 = sphi 0, %s275
      %s290 = sphi 0, %s276
      %s294 = sphi 0, %s294
      %s296 = sphi 0, %s294
      %s297 = sphi 0, %s296
      %s311 = sphi 0, %s297
      %s315 = sphi 0, %s315
      %s317 = sphi 0, %s315
      %s318 = sphi 0, %s317
      %s332 = sphi 0, %s318
      %s336 = sphi 0, %s336
      %s338 = sphi 0, %s336
      %s339 = sphi 0, %s338
      %s353 = sphi 0, %s339
      %s357 = sphi 0, %s357
      %s359 = sphi 0, %s357
      %s360 = sphi 0, %s359
      %s374 = sphi 0, %s360
      %s378 = sphi 0, %s378
      %s380 = sphi 0, %s378
      %s381 = sphi 0, %s380
      %s395 = sphi 0, %s381
      %s399 = sphi 0, %s399
      %s401 = sphi 0, %s399
      %s402 = sphi 0, %s401
      %s416 = sphi 0, %s402
      %s420 = sphi 0, %s420
      %s422 = sphi 0, %s420
      %s423 = sphi 0, %s422
      %s437 = sphi 0, %s423
      %s441 = sphi 0, %s441
      %s443 = sphi 0, %s441
      %s444 = sphi 0, %s443
      %s458 = sphi 0, %s444
      %s464 = sphi 0, %s466
      %s467 = sphi 0, %s464
      %s468 = sphi 0, %s467
      %s484 = sphi 0, %s468
    $region4: #{transformer_forward.1} parent=1 // loop_header_branch
      %32 = sbr.rel (%p30) target = $region8
    $region5: #{transformer_forward.1} parent=1 // loop_body
      %s34 = ssub.s32 %s29, 1
      %s35 = ssub.s32 %s29, 2
      %s36 = sadd.s32 %s29, 1
      %s37 = ssub.s32 %s29, %s36
      %p38 = scmp.eq.s32.totalorder %s37, 0
      %s40 = sadd.s32 %s39, 1
      %s41 = scalar_select %p38, %s39, %s40
      %p44 = pneg %p38
      %p45 = scmp.eq.s32.totalorder %s29, 1
      %p46 = por %p44, %p45
      %p47 = scmp.ne.s32.totalorder %s39, %s42
      %p48 = scmp.eq.s32.totalorder %s29, 0
      %p49 = por %p47, %p48
      %p50 = scmp.ne.s32.totalorder %s39, %s42
      %p51 = scmp.eq.s32.totalorder %s34, 1
      %p52 = por %p50, %p51
      %p53 = scmp.ne.s32.totalorder %s42, %s43
      %p54 = scmp.eq.s32.totalorder %s34, 0
      %p55 = por %p53, %p54
      %p56 = scmp.ne.s32.totalorder %s42, %s43
      %p57 = scmp.eq.s32.totalorder %s35, 1
      %p58 = por %p56, %p57
      %p60 = scmp.ne.s32.totalorder %s43, %s59
      %p61 = scmp.eq.s32.totalorder %s35, 0
      %p62 = por %p60, %p61
      %s64 = sadd.s32 %s63, 1
      %p67 = scmp.eq.s32.totalorder %s29, 1
      %p68 = scmp.ne.s32.totalorder %s63, %s65
      %p69 = scmp.eq.s32.totalorder %s29, 0
      %p70 = por %p68, %p69
      %p71 = scmp.ne.s32.totalorder %s63, %s65
      %p72 = scmp.eq.s32.totalorder %s34, 1
      %p73 = por %p71, %p72
      %p74 = scmp.ne.s32.totalorder %s65, %s66
      %p75 = scmp.eq.s32.totalorder %s34, 0
      %p76 = por %p74, %p75
      %p77 = scmp.ne.s32.totalorder %s65, %s66
      %p78 = scmp.eq.s32.totalorder %s35, 1
      %p79 = por %p77, %p78
      %p81 = scmp.ne.s32.totalorder %s66, %s80
      %p82 = scmp.eq.s32.totalorder %s35, 0
      %p83 = por %p81, %p82
      %s85 = sadd.s32 %s84, 1
      %p88 = scmp.eq.s32.totalorder %s29, 1
      %p89 = scmp.ne.s32.totalorder %s84, %s86
      %p90 = scmp.eq.s32.totalorder %s29, 0
      %p91 = por %p89, %p90
      %p92 = scmp.ne.s32.totalorder %s84, %s86
      %p93 = scmp.eq.s32.totalorder %s34, 1
      %p94 = por %p92, %p93
      %p95 = scmp.ne.s32.totalorder %s86, %s87
      %p96 = scmp.eq.s32.totalorder %s34, 0
      %p97 = por %p95, %p96
      %p98 = scmp.ne.s32.totalorder %s86, %s87
      %p99 = scmp.eq.s32.totalorder %s35, 1
      %p100 = por %p98, %p99
      %p102 = scmp.ne.s32.totalorder %s87, %s101
      %p103 = scmp.eq.s32.totalorder %s35, 0
      %p104 = por %p102, %p103
      %s106 = sadd.s32 %s105, 1
      %p109 = scmp.eq.s32.totalorder %s29, 1
      %p110 = scmp.ne.s32.totalorder %s105, %s107
      %p111 = scmp.eq.s32.totalorder %s29, 0
      %p112 = por %p110, %p111
      %p113 = scmp.ne.s32.totalorder %s105, %s107
      %p114 = scmp.eq.s32.totalorder %s34, 1
      %p115 = por %p113, %p114
      %p116 = scmp.ne.s32.totalorder %s107, %s108
      %p117 = scmp.eq.s32.totalorder %s34, 0
      %p118 = por %p116, %p117
      %p119 = scmp.ne.s32.totalorder %s107, %s108
      %p120 = scmp.eq.s32.totalorder %s35, 1
      %p121 = por %p119, %p120
      %p123 = scmp.ne.s32.totalorder %s108, %s122
      %p124 = scmp.eq.s32.totalorder %s35, 0
      %p125 = por %p123, %p124
      %s127 = sadd.s32 %s126, 1
      %p130 = scmp.eq.s32.totalorder %s29, 1
      %p131 = scmp.ne.s32.totalorder %s126, %s128
      %p132 = scmp.eq.s32.totalorder %s29, 0
      %p133 = por %p131, %p132
      %p134 = scmp.ne.s32.totalorder %s126, %s128
      %p135 = scmp.eq.s32.totalorder %s34, 1
      %p136 = por %p134, %p135
      %p137 = scmp.ne.s32.totalorder %s128, %s129
      %p138 = scmp.eq.s32.totalorder %s34, 0
      %p139 = por %p137, %p138
      %p140 = scmp.ne.s32.totalorder %s128, %s129
      %p141 = scmp.eq.s32.totalorder %s35, 1
      %p142 = por %p140, %p141
      %p144 = scmp.ne.s32.totalorder %s129, %s143
      %p145 = scmp.eq.s32.totalorder %s35, 0
      %p146 = por %p144, %p145
      %s148 = sadd.s32 %s147, 1
      %p151 = scmp.eq.s32.totalorder %s29, 1
      %p152 = scmp.ne.s32.totalorder %s147, %s149
      %p153 = scmp.eq.s32.totalorder %s29, 0
      %p154 = por %p152, %p153
      %p155 = scmp.ne.s32.totalorder %s147, %s149
      %p156 = scmp.eq.s32.totalorder %s34, 1
      %p157 = por %p155, %p156
      %p158 = scmp.ne.s32.totalorder %s149, %s150
      %p159 = scmp.eq.s32.totalorder %s34, 0
      %p160 = por %p158, %p159
      %p161 = scmp.ne.s32.totalorder %s149, %s150
      %p162 = scmp.eq.s32.totalorder %s35, 1
      %p163 = por %p161, %p162
      %p165 = scmp.ne.s32.totalorder %s150, %s164
      %p166 = scmp.eq.s32.totalorder %s35, 0
      %p167 = por %p165, %p166
      %s169 = sadd.s32 %s168, 1
      %p172 = scmp.eq.s32.totalorder %s29, 1
      %p173 = scmp.ne.s32.totalorder %s168, %s170
      %p174 = scmp.eq.s32.totalorder %s29, 0
      %p175 = por %p173, %p174
      %p176 = scmp.ne.s32.totalorder %s168, %s170
      %p177 = scmp.eq.s32.totalorder %s34, 1
      %p178 = por %p176, %p177
      %p179 = scmp.ne.s32.totalorder %s170, %s171
      %p180 = scmp.eq.s32.totalorder %s34, 0
      %p181 = por %p179, %p180
      %p182 = scmp.ne.s32.totalorder %s170, %s171
      %p183 = scmp.eq.s32.totalorder %s35, 1
      %p184 = por %p182, %p183
      %p186 = scmp.ne.s32.totalorder %s171, %s185
      %p187 = scmp.eq.s32.totalorder %s35, 0
      %p188 = por %p186, %p187
      %s190 = sadd.s32 %s189, 1
      %p193 = scmp.eq.s32.totalorder %s29, 1
      %p194 = scmp.ne.s32.totalorder %s189, %s191
      %p195 = scmp.eq.s32.totalorder %s29, 0
      %p196 = por %p194, %p195
      %p197 = scmp.ne.s32.totalorder %s189, %s191
      %p198 = scmp.eq.s32.totalorder %s34, 1
      %p199 = por %p197, %p198
      %p200 = scmp.ne.s32.totalorder %s191, %s192
      %p201 = scmp.eq.s32.totalorder %s34, 0
      %p202 = por %p200, %p201
      %p203 = scmp.ne.s32.totalorder %s191, %s192
      %p204 = scmp.eq.s32.totalorder %s35, 1
      %p205 = por %p203, %p204
      %p207 = scmp.ne.s32.totalorder %s192, %s206
      %p208 = scmp.eq.s32.totalorder %s35, 0
      %p209 = por %p207, %p208
      %s211 = sadd.s32 %s210, 1
      %p214 = scmp.eq.s32.totalorder %s29, 1
      %p215 = scmp.ne.s32.totalorder %s210, %s212
      %p216 = scmp.eq.s32.totalorder %s29, 0
      %p217 = por %p215, %p216
      %p218 = scmp.ne.s32.totalorder %s210, %s212
      %p219 = scmp.eq.s32.totalorder %s34, 1
      %p220 = por %p218, %p219
      %p221 = scmp.ne.s32.totalorder %s212, %s213
      %p222 = scmp.eq.s32.totalorder %s34, 0
      %p223 = por %p221, %p222
      %p224 = scmp.ne.s32.totalorder %s212, %s213
      %p225 = scmp.eq.s32.totalorder %s35, 1
      %p226 = por %p224, %p225
      %p228 = scmp.ne.s32.totalorder %s213, %s227
      %p229 = scmp.eq.s32.totalorder %s35, 0
      %p230 = por %p228, %p229
      %s232 = sadd.s32 %s231, 1
      %p235 = scmp.eq.s32.totalorder %s29, 1
      %p236 = scmp.ne.s32.totalorder %s231, %s233
      %p237 = scmp.eq.s32.totalorder %s29, 0
      %p238 = por %p236, %p237
      %p239 = scmp.ne.s32.totalorder %s231, %s233
      %p240 = scmp.eq.s32.totalorder %s34, 1
      %p241 = por %p239, %p240
      %p242 = scmp.ne.s32.totalorder %s233, %s234
      %p243 = scmp.eq.s32.totalorder %s34, 0
      %p244 = por %p242, %p243
      %p245 = scmp.ne.s32.totalorder %s233, %s234
      %p246 = scmp.eq.s32.totalorder %s35, 1
      %p247 = por %p245, %p246
      %p249 = scmp.ne.s32.totalorder %s234, %s248
      %p250 = scmp.eq.s32.totalorder %s35, 0
      %p251 = por %p249, %p250
      %s253 = sadd.s32 %s252, 1
      %p256 = scmp.eq.s32.totalorder %s29, 1
      %p257 = scmp.ne.s32.totalorder %s252, %s254
      %p258 = scmp.eq.s32.totalorder %s29, 0
      %p259 = por %p257, %p258
      %p260 = scmp.ne.s32.totalorder %s252, %s254
      %p261 = scmp.eq.s32.totalorder %s34, 1
      %p262 = por %p260, %p261
      %p263 = scmp.ne.s32.totalorder %s254, %s255
      %p264 = scmp.eq.s32.totalorder %s34, 0
      %p265 = por %p263, %p264
      %p266 = scmp.ne.s32.totalorder %s254, %s255
      %p267 = scmp.eq.s32.totalorder %s35, 1
      %p268 = por %p266, %p267
      %p270 = scmp.ne.s32.totalorder %s255, %s269
      %p271 = scmp.eq.s32.totalorder %s35, 0
      %p272 = por %p270, %p271
      %s274 = sadd.s32 %s273, 1
      %p277 = scmp.eq.s32.totalorder %s29, 1
      %p278 = scmp.ne.s32.totalorder %s273, %s275
      %p279 = scmp.eq.s32.totalorder %s29, 0
      %p280 = por %p278, %p279
      %p281 = scmp.ne.s32.totalorder %s273, %s275
      %p282 = scmp.eq.s32.totalorder %s34, 1
      %p283 = por %p281, %p282
      %p284 = scmp.ne.s32.totalorder %s275, %s276
      %p285 = scmp.eq.s32.totalorder %s34, 0
      %p286 = por %p284, %p285
      %p287 = scmp.ne.s32.totalorder %s275, %s276
      %p288 = scmp.eq.s32.totalorder %s35, 1
      %p289 = por %p287, %p288
      %p291 = scmp.ne.s32.totalorder %s276, %s290
      %p292 = scmp.eq.s32.totalorder %s35, 0
      %p293 = por %p291, %p292
      %s295 = sadd.s32 %s294, 1
      %p298 = scmp.eq.s32.totalorder %s29, 1
      %p299 = scmp.ne.s32.totalorder %s294, %s296
      %p300 = scmp.eq.s32.totalorder %s29, 0
      %p301 = por %p299, %p300
      %p302 = scmp.ne.s32.totalorder %s294, %s296
      %p303 = scmp.eq.s32.totalorder %s34, 1
      %p304 = por %p302, %p303
      %p305 = scmp.ne.s32.totalorder %s296, %s297
      %p306 = scmp.eq.s32.totalorder %s34, 0
      %p307 = por %p305, %p306
      %p308 = scmp.ne.s32.totalorder %s296, %s297
      %p309 = scmp.eq.s32.totalorder %s35, 1
      %p310 = por %p308, %p309
      %p312 = scmp.ne.s32.totalorder %s297, %s311
      %p313 = scmp.eq.s32.totalorder %s35, 0
      %p314 = por %p312, %p313
      %s316 = sadd.s32 %s315, 1
      %p319 = scmp.eq.s32.totalorder %s29, 1
      %p320 = scmp.ne.s32.totalorder %s315, %s317
      %p321 = scmp.eq.s32.totalorder %s29, 0
      %p322 = por %p320, %p321
      %p323 = scmp.ne.s32.totalorder %s315, %s317
      %p324 = scmp.eq.s32.totalorder %s34, 1
      %p325 = por %p323, %p324
      %p326 = scmp.ne.s32.totalorder %s317, %s318
      %p327 = scmp.eq.s32.totalorder %s34, 0
      %p328 = por %p326, %p327
      %p329 = scmp.ne.s32.totalorder %s317, %s318
      %p330 = scmp.eq.s32.totalorder %s35, 1
      %p331 = por %p329, %p330
      %p333 = scmp.ne.s32.totalorder %s318, %s332
      %p334 = scmp.eq.s32.totalorder %s35, 0
      %p335 = por %p333, %p334
      %s337 = sadd.s32 %s336, 1
      %p340 = scmp.eq.s32.totalorder %s29, 1
      %p341 = scmp.ne.s32.totalorder %s336, %s338
      %p342 = scmp.eq.s32.totalorder %s29, 0
      %p343 = por %p341, %p342
      %p344 = scmp.ne.s32.totalorder %s336, %s338
      %p345 = scmp.eq.s32.totalorder %s34, 1
      %p346 = por %p344, %p345
      %p347 = scmp.ne.s32.totalorder %s338, %s339
      %p348 = scmp.eq.s32.totalorder %s34, 0
      %p349 = por %p347, %p348
      %p350 = scmp.ne.s32.totalorder %s338, %s339
      %p351 = scmp.eq.s32.totalorder %s35, 1
      %p352 = por %p350, %p351
      %p354 = scmp.ne.s32.totalorder %s339, %s353
      %p355 = scmp.eq.s32.totalorder %s35, 0
      %p356 = por %p354, %p355
      %s358 = sadd.s32 %s357, 1
      %p361 = scmp.eq.s32.totalorder %s29, 1
      %p362 = scmp.ne.s32.totalorder %s357, %s359
      %p363 = scmp.eq.s32.totalorder %s29, 0
      %p364 = por %p362, %p363
      %p365 = scmp.ne.s32.totalorder %s357, %s359
      %p366 = scmp.eq.s32.totalorder %s34, 1
      %p367 = por %p365, %p366
      %p368 = scmp.ne.s32.totalorder %s359, %s360
      %p369 = scmp.eq.s32.totalorder %s34, 0
      %p370 = por %p368, %p369
      %p371 = scmp.ne.s32.totalorder %s359, %s360
      %p372 = scmp.eq.s32.totalorder %s35, 1
      %p373 = por %p371, %p372
      %p375 = scmp.ne.s32.totalorder %s360, %s374
      %p376 = scmp.eq.s32.totalorder %s35, 0
      %p377 = por %p375, %p376
      %s379 = sadd.s32 %s378, 1
      %p382 = scmp.eq.s32.totalorder %s29, 1
      %p383 = scmp.ne.s32.totalorder %s378, %s380
      %p384 = scmp.eq.s32.totalorder %s29, 0
      %p385 = por %p383, %p384
      %p386 = scmp.ne.s32.totalorder %s378, %s380
      %p387 = scmp.eq.s32.totalorder %s34, 1
      %p388 = por %p386, %p387
      %p389 = scmp.ne.s32.totalorder %s380, %s381
      %p390 = scmp.eq.s32.totalorder %s34, 0
      %p391 = por %p389, %p390
      %p392 = scmp.ne.s32.totalorder %s380, %s381
      %p393 = scmp.eq.s32.totalorder %s35, 1
      %p394 = por %p392, %p393
      %p396 = scmp.ne.s32.totalorder %s381, %s395
      %p397 = scmp.eq.s32.totalorder %s35, 0
      %p398 = por %p396, %p397
      %s400 = sadd.s32 %s399, 1
      %p403 = scmp.eq.s32.totalorder %s29, 1
      %p404 = scmp.ne.s32.totalorder %s399, %s401
      %p405 = scmp.eq.s32.totalorder %s29, 0
      %p406 = por %p404, %p405
      %p407 = scmp.ne.s32.totalorder %s399, %s401
      %p408 = scmp.eq.s32.totalorder %s34, 1
      %p409 = por %p407, %p408
      %p410 = scmp.ne.s32.totalorder %s401, %s402
      %p411 = scmp.eq.s32.totalorder %s34, 0
      %p412 = por %p410, %p411
      %p413 = scmp.ne.s32.totalorder %s401, %s402
      %p414 = scmp.eq.s32.totalorder %s35, 1
      %p415 = por %p413, %p414
      %p417 = scmp.ne.s32.totalorder %s402, %s416
      %p418 = scmp.eq.s32.totalorder %s35, 0
      %p419 = por %p417, %p418
      %s421 = sadd.s32 %s420, 1
      %p424 = scmp.eq.s32.totalorder %s29, 1
      %p425 = scmp.ne.s32.totalorder %s420, %s422
      %p426 = scmp.eq.s32.totalorder %s29, 0
      %p427 = por %p425, %p426
      %p428 = scmp.ne.s32.totalorder %s420, %s422
      %p429 = scmp.eq.s32.totalorder %s34, 1
      %p430 = por %p428, %p429
      %p431 = scmp.ne.s32.totalorder %s422, %s423
      %p432 = scmp.eq.s32.totalorder %s34, 0
      %p433 = por %p431, %p432
      %p434 = scmp.ne.s32.totalorder %s422, %s423
      %p435 = scmp.eq.s32.totalorder %s35, 1
      %p436 = por %p434, %p435
      %p438 = scmp.ne.s32.totalorder %s423, %s437
      %p439 = scmp.eq.s32.totalorder %s35, 0
      %p440 = por %p438, %p439
      %s442 = sadd.s32 %s441, 1
      %p445 = scmp.eq.s32.totalorder %s29, 1
      %p446 = scmp.ne.s32.totalorder %s441, %s443
      %p447 = scmp.eq.s32.totalorder %s29, 0
      %p448 = por %p446, %p447
      %p449 = scmp.ne.s32.totalorder %s441, %s443
      %p450 = scmp.eq.s32.totalorder %s34, 1
      %p451 = por %p449, %p450
      %p452 = scmp.ne.s32.totalorder %s443, %s444
      %p453 = scmp.eq.s32.totalorder %s34, 0
      %p454 = por %p452, %p453
      %p455 = scmp.ne.s32.totalorder %s443, %s444
      %p456 = scmp.eq.s32.totalorder %s35, 1
      %p457 = por %p455, %p456
      %p459 = scmp.ne.s32.totalorder %s444, %s458
      %p460 = scmp.eq.s32.totalorder %s35, 0
      %p461 = por %p459, %p460
      %s462 = ssub.s32 %s29, %s36
      %p463 = scmp.eq.s32.totalorder %s462, 0
      %s465 = sadd.s32 %s464, 1
      %s466 = scalar_select %p463, %s464, %s465
      %p469 = pneg %p463
      %p470 = scmp.eq.s32.totalorder %s29, 1
      %p471 = por %p469, %p470
      %p472 = scmp.ne.s32.totalorder %s464, %s467
      %p473 = scmp.eq.s32.totalorder %s29, 0
      %p474 = por %p472, %p473
      %p475 = scmp.ne.s32.totalorder %s464, %s467
      %p476 = scmp.eq.s32.totalorder %s34, 1
      %p477 = por %p475, %p476
      %p478 = scmp.ne.s32.totalorder %s467, %s468
      %p479 = scmp.eq.s32.totalorder %s34, 0
      %p480 = por %p478, %p479
      %p481 = scmp.ne.s32.totalorder %s467, %s468
      %p482 = scmp.eq.s32.totalorder %s35, 1
      %p483 = por %p481, %p482
      %p485 = scmp.ne.s32.totalorder %s468, %s484
      %p486 = scmp.eq.s32.totalorder %s35, 0
      %p487 = por %p485, %p486
      %p488 = scmp.le.s32.totalorder 1, %s29
      %p489 = scmp.lt.s32.totalorder %s29, 3
      %p490 = pnand %p488, %p489
      %p491 = pneg %p490
      // Predicated region
      $region9: #{transformer_forward.1} parent=5 // pred_check
        _
      $region10: #{transformer_forward.1} parent=5 // pred_check_branch
        %493 = sbr.rel (%p490) target = $region12
      $region11: #{transformer_forward.1} parent=5 // pred_region
        %s494 = ssub.s32 %s29, 1
        // Predicated region
        $region13: #{transformer_forward.1} parent=11 // pred_check
          %p495 = pneg %p76
        $region14: #{transformer_forward.1} parent=11 // pred_check_branch
          %497 = sbr.rel (%p495) target = $region16
        $region15: #{transformer_forward.1} parent=11 // pred_region
          _
        $region16: #{transformer_forward.1} parent=11 // pred_fallthru
          _
        // Predicated region
        $region17: #{transformer_forward.1} parent=11 // pred_check
          %p498 = pneg %p97
        $region18: #{transformer_forward.1} parent=11 // pred_check_branch
          %500 = sbr.rel (%p498) target = $region20
        $region19: #{transformer_forward.1} parent=11 // pred_region
          _
        $region20: #{transformer_forward.1} parent=11 // pred_fallthru
          _
        // Predicated region
        $region21: #{transformer_forward.1} parent=11 // pred_check
          %p501 = pneg %p118
        $region22: #{transformer_forward.1} parent=11 // pred_check_branch
          %503 = sbr.rel (%p501) target = $region24
        $region23: #{transformer_forward.1} parent=11 // pred_region
          _
        $region24: #{transformer_forward.1} parent=11 // pred_fallthru
          _
        // Predicated region
        $region25: #{transformer_forward.1} parent=11 // pred_check
          %p504 = pneg %p139
        $region26: #{transformer_forward.1} parent=11 // pred_check_branch
          %506 = sbr.rel (%p504) target = $region28
        $region27: #{transformer_forward.1} parent=11 // pred_region
          _
        $region28: #{transformer_forward.1} parent=11 // pred_fallthru
          _
        // Predicated region
        $region29: #{transformer_forward.1} parent=11 // pred_check
          %p507 = pneg %p160
        $region30: #{transformer_forward.1} parent=11 // pred_check_branch
          %509 = sbr.rel (%p507) target = $region32
        $region31: #{transformer_forward.1} parent=11 // pred_region
          _
        $region32: #{transformer_forward.1} parent=11 // pred_fallthru
          _
        // Predicated region
        $region33: #{transformer_forward.1} parent=11 // pred_check
          %p510 = pneg %p181
        $region34: #{transformer_forward.1} parent=11 // pred_check_branch
          %512 = sbr.rel (%p510) target = $region36
        $region35: #{transformer_forward.1} parent=11 // pred_region
          _
        $region36: #{transformer_forward.1} parent=11 // pred_fallthru
          _
        // Predicated region
        $region37: #{transformer_forward.1} parent=11 // pred_check
          %p513 = pneg %p202
        $region38: #{transformer_forward.1} parent=11 // pred_check_branch
          %515 = sbr.rel (%p513) target = $region40
        $region39: #{transformer_forward.1} parent=11 // pred_region
          _
        $region40: #{transformer_forward.1} parent=11 // pred_fallthru
          _
        // Predicated region
        $region41: #{transformer_forward.1} parent=11 // pred_check
          %p516 = pneg %p223
        $region42: #{transformer_forward.1} parent=11 // pred_check_branch
          %518 = sbr.rel (%p516) target = $region44
        $region43: #{transformer_forward.1} parent=11 // pred_region
          _
        $region44: #{transformer_forward.1} parent=11 // pred_fallthru
          _
        // Predicated region
        $region45: #{transformer_forward.1} parent=11 // pred_check
          %p519 = pneg %p244
        $region46: #{transformer_forward.1} parent=11 // pred_check_branch
          %521 = sbr.rel (%p519) target = $region48
        $region47: #{transformer_forward.1} parent=11 // pred_region
          _
        $region48: #{transformer_forward.1} parent=11 // pred_fallthru
          _
        // Predicated region
        $region49: #{transformer_forward.1} parent=11 // pred_check
          %p522 = pneg %p265
        $region50: #{transformer_forward.1} parent=11 // pred_check_branch
          %524 = sbr.rel (%p522) target = $region52
        $region51: #{transformer_forward.1} parent=11 // pred_region
          _
        $region52: #{transformer_forward.1} parent=11 // pred_fallthru
          _
        // Predicated region
        $region53: #{transformer_forward.1} parent=11 // pred_check
          %p525 = pneg %p286
        $region54: #{transformer_forward.1} parent=11 // pred_check_branch
          %527 = sbr.rel (%p525) target = $region56
        $region55: #{transformer_forward.1} parent=11 // pred_region
          _
        $region56: #{transformer_forward.1} parent=11 // pred_fallthru
          _
        // Predicated region
        $region57: #{transformer_forward.1} parent=11 // pred_check
          %p528 = pneg %p307
        $region58: #{transformer_forward.1} parent=11 // pred_check_branch
          %530 = sbr.rel (%p528) target = $region60
        $region59: #{transformer_forward.1} parent=11 // pred_region
          _
        $region60: #{transformer_forward.1} parent=11 // pred_fallthru
          _
        // Predicated region
        $region61: #{transformer_forward.1} parent=11 // pred_check
          %p531 = pneg %p328
        $region62: #{transformer_forward.1} parent=11 // pred_check_branch
          %533 = sbr.rel (%p531) target = $region64
        $region63: #{transformer_forward.1} parent=11 // pred_region
          _
        $region64: #{transformer_forward.1} parent=11 // pred_fallthru
          _
        // Predicated region
        $region65: #{transformer_forward.1} parent=11 // pred_check
          %p534 = pneg %p349
        $region66: #{transformer_forward.1} parent=11 // pred_check_branch
          %536 = sbr.rel (%p534) target = $region68
        $region67: #{transformer_forward.1} parent=11 // pred_region
          _
        $region68: #{transformer_forward.1} parent=11 // pred_fallthru
          _
        // Predicated region
        $region69: #{transformer_forward.1} parent=11 // pred_check
          %p537 = pneg %p370
        $region70: #{transformer_forward.1} parent=11 // pred_check_branch
          %539 = sbr.rel (%p537) target = $region72
        $region71: #{transformer_forward.1} parent=11 // pred_region
          _
        $region72: #{transformer_forward.1} parent=11 // pred_fallthru
          _
        // Predicated region
        $region73: #{transformer_forward.1} parent=11 // pred_check
          %p540 = pneg %p391
        $region74: #{transformer_forward.1} parent=11 // pred_check_branch
          %542 = sbr.rel (%p540) target = $region76
        $region75: #{transformer_forward.1} parent=11 // pred_region
          _
        $region76: #{transformer_forward.1} parent=11 // pred_fallthru
          _
        // Predicated region
        $region77: #{transformer_forward.1} parent=11 // pred_check
          %p543 = pneg %p412
        $region78: #{transformer_forward.1} parent=11 // pred_check_branch
          %545 = sbr.rel (%p543) target = $region80
        $region79: #{transformer_forward.1} parent=11 // pred_region
          _
        $region80: #{transformer_forward.1} parent=11 // pred_fallthru
          _
        // Predicated region
        $region81: #{transformer_forward.1} parent=11 // pred_check
          %p546 = pneg %p433
        $region82: #{transformer_forward.1} parent=11 // pred_check_branch
          %548 = sbr.rel (%p546) target = $region84
        $region83: #{transformer_forward.1} parent=11 // pred_region
          _
        $region84: #{transformer_forward.1} parent=11 // pred_fallthru
          _
        // Predicated region
        $region85: #{transformer_forward.1} parent=11 // pred_check
          %p549 = pneg %p454
        $region86: #{transformer_forward.1} parent=11 // pred_check_branch
          %551 = sbr.rel (%p549) target = $region88
        $region87: #{transformer_forward.1} parent=11 // pred_region
          _
        $region88: #{transformer_forward.1} parent=11 // pred_fallthru
          _
      $region12: #{transformer_forward.1} parent=5 // pred_fallthru
        _
      %p552 = scmp.lt.s32.totalorder %s29, 2
      // Predicated region
      $region89: #{transformer_forward.1} parent=5 // pred_check
        %p553 = pneg %p552
      $region90: #{transformer_forward.1} parent=5 // pred_check_branch
        %555 = sbr.rel (%p553) target = $region92
      $region91: #{transformer_forward.1} parent=5 // pred_region
        // Predicated region
        $region93: #{transformer_forward.1} parent=91 // pred_check
          %p556 = pneg %p49
        $region94: #{transformer_forward.1} parent=91 // pred_check_branch
          %558 = sbr.rel (%p556) target = $region96
        $region95: #{transformer_forward.1} parent=91 // pred_region
          %p559 = scmp.lt.s32.totalorder %s29, 1
          %s560 = scalar_select %p559, %s29, 1
          %s561 = smul.addr %s560, 8
          %s562 = scalar_lea.vmem %s0, %s561
        $region96: #{transformer_forward.1} parent=91 // pred_fallthru
          _
      $region92: #{transformer_forward.1} parent=5 // pred_fallthru
        _
      %p563 = scmp.le.s32.totalorder 1, %s29
      %p564 = scmp.lt.s32.totalorder %s29, 3
      %p565 = pnand %p563, %p564
      %p566 = pneg %p565
      // Predicated region
      $region97: #{transformer_forward.1} parent=5 // pred_check
        _
      $region98: #{transformer_forward.1} parent=5 // pred_check_branch
        %568 = sbr.rel (%p565) target = $region100
      $region99: #{transformer_forward.1} parent=5 // pred_region
        %s569 = ssub.s32 %s29, 1
        %p570 = scmp.lt.s32.totalorder %s34, 1
        %s571 = scalar_select %p570, %s34, 1
        %s572 = smul.addr %s571, 8
        %s573 = scalar_lea.vmem %s0, %s572
        %p574 = pneg %p55
        %p575 = pneg %p52
        %p576 = pneg %p76
        %p577 = pneg %p73
        %p578 = pneg %p97
        %p579 = pneg %p94
        %p580 = pneg %p118
        %p581 = pneg %p115
        %p582 = pneg %p139
        %p583 = pneg %p136
        %p584 = pneg %p160
        %p585 = pneg %p157
        %p586 = pneg %p181
        %p587 = pneg %p178
        %p588 = pneg %p202
        %p589 = pneg %p199
        %p590 = pneg %p223
        %p591 = pneg %p220
        %p592 = pneg %p244
        %p593 = pneg %p241
        %p594 = pneg %p265
        %p595 = pneg %p262
        %p596 = pneg %p286
        %p597 = pneg %p283
        %p598 = pneg %p307
        %p599 = pneg %p304
        %p600 = pneg %p328
        %p601 = pneg %p325
        %p602 = pneg %p349
        %p603 = pneg %p346
        %p604 = pneg %p370
        %p605 = pneg %p367
        %p606 = pneg %p391
        %p607 = pneg %p388
        %p608 = pneg %p412
        %p609 = pneg %p409
        %p610 = pneg %p433
        %p611 = pneg %p430
        %p612 = pneg %p454
        %p613 = pneg %p451
        %p614 = pneg %p480
        %p615 = pneg %p477
        %s616 = sand.u32 %s467, 1
        %s617 = scalar_lea.sflag [#allocation3], %s616
        %s618 = sand.u32 %s467, 1
        %s619 = scalar_lea.vmem [#allocation2], %s618
        %p620 = scmp.lt.s32.totalorder %s34, 1
        %s621 = scalar_select %p620, %s34, 1
        %s622 = smul.addr %s621, 8
        %s623 = scalar_lea.vmem %s0, %s622
        %v625 = vld [vmem:[%s623] sm:$0xff]
        %v626 = vpack.c.bf16 %v625, %v625
        %v627 = vld [vmem:[%s1] sm:$0x3]
        %v628 = vld [vmem:[%s2] sm:$0x1]
        %v630 = vlaneseq
        %v631 = vshrl.u32 %v630, 7
        %v632 = vsub.s32 0, %v631
        %v633 = vrot.slane %v628, %v632
        %vm635 = vcmask 31744
        %v637 = vsel %vm635, %v626, 0
        %vm639 = vcmask 1041408
        %v641 = vsel %vm639, %v627, 0
        %643 = vmatprep.subr.bf16.mxu0 0
        %644 = vmatpush1.bf16.msra.mxu0 %v641
        %645 = vmatprep.subr.bf16.mxu0 0
        %646 = vmatpush1.bf16.msra.mxu0 0
        %647 = vmatprep.subr.bf16.mxu0 0
        %648 = vmatpush1.bf16.msra.mxu0 0
        %649 = vmatprep.subr.bf16.mxu0 0
        %650 = vmatpush1.bf16.msra.mxu0 0
        %651 = vmatprep.subr.bf16.mxu0 0
        %652 = vmatpush1.bf16.msra.mxu0 0
        %653 = vmatprep.subr.bf16.mxu0 0
        %654 = vmatpush1.bf16.msra.mxu0 0
        %655 = vmatprep.subr.bf16.mxu0 0
        %656 = vmatpush1.bf16.msra.mxu0 0
        %657 = vmatprep.subr.bf16.mxu0 0
        %658 = vmatpush1.bf16.msra.mxu0 0
        %659 = vmatprep.subr.bf16.mxu0 0
        %660 = vmatpush1.bf16.msra.mxu0 0
        %661 = vmatprep.subr.bf16.mxu0 0
        %662 = vmatpush1.bf16.msra.mxu0 0
        %663 = vmatprep.subr.bf16.mxu0 0
        %664 = vmatpush1.bf16.msra.mxu0 0
        %665 = vmatprep.subr.bf16.mxu0 0
        %666 = vmatpush1.bf16.msra.mxu0 0
        %667 = vmatprep.subr.bf16.mxu0 0
        %668 = vmatpush1.bf16.msra.mxu0 0
        %669 = vmatprep.subr.bf16.mxu0 0
        %670 = vmatpush1.bf16.msra.mxu0 0
        %671 = vmatprep.subr.bf16.mxu0 0
        %672 = vmatpush1.bf16.msra.mxu0 0
        %673 = vmatprep.subr.bf16.mxu0 0
        %674 = vmatpush1.bf16.msra.mxu0 0
        %675 = vmatprep.mubr.bf16.mxu0 0
        %676 = vmatmul.mubr.bf16.gmra.mrb[0].mxu0 %v637
        %v677 = vpop.f32.mrb[0].mxu0
        %v678 = vadd.f32 %v633, %v677
        %v679 = vpop.f32.mrb[0].mxu0
        %v680 = vpop.f32.mrb[0].mxu0
        %v681 = vpop.f32.mrb[0].mxu0
        %682 = vdwg.mxu0
        %v683 = vld [vmem:[%s3] sm:$0xff]
        %v684 = vadd.f32 %v678, %v683
        %v685 = vpack.c.bf16 %v684, %v684
        %v686 = vld [vmem:[%s4] sm:$0xf]
        %v687 = vld [vmem:[%s4 + $0x4] sm:$0xf]
        %v688 = vld [vmem:[%s4 + $0x8] sm:$0xf]
        %v689 = vld [vmem:[%s4 + $0xc] sm:$0xf]
        %v690 = vld [vmem:[%s5] sm:$0x1]
        %v692 = vlaneseq
        %v693 = vshrl.u32 %v692, 7
        %v694 = vsub.s32 0, %v693
        %v695 = vrot.slane %v690, %v694
        %v701 = vunpack.c.l.b16 %v686
        %v702 = vunpack.c.l.b16 %v687
        %v703 = vunpack.c.l.b16 %v688
        %v704 = vunpack.c.l.b16 %v689
        %v705 = vpack.c.b16 %v702, %v701
        %v706 = vpack.c.b16 %v704, %v703
        %vm709 = vcmask 261120
        %v711 = vsel %vm709, %v685, 0
        %713 = vmatprep.subr.bf16.mxu0 0
        %714 = vmatpush1.bf16.msra.mxu0 %v705
        %715 = vmatprep.subr.bf16.mxu0 0
        %716 = vmatpush1.bf16.msra.mxu0 %v706
        %717 = vmatprep.subr.bf16.mxu0 0
        %718 = vmatpush1.bf16.msra.mxu0 0
        %719 = vmatprep.subr.bf16.mxu0 0
        %720 = vmatpush1.bf16.msra.mxu0 0
        %721 = vmatprep.subr.bf16.mxu0 0
        %722 = vmatpush1.bf16.msra.mxu0 0
        %723 = vmatprep.subr.bf16.mxu0 0
        %724 = vmatpush1.bf16.msra.mxu0 0
        %725 = vmatprep.subr.bf16.mxu0 0
        %726 = vmatpush1.bf16.msra.mxu0 0
        %727 = vmatprep.subr.bf16.mxu0 0
        %728 = vmatpush1.bf16.msra.mxu0 0
        %729 = vmatprep.subr.bf16.mxu0 0
        %730 = vmatpush1.bf16.msra.mxu0 0
        %731 = vmatprep.subr.bf16.mxu0 0
        %732 = vmatpush1.bf16.msra.mxu0 0
        %733 = vmatprep.subr.bf16.mxu0 0
        %734 = vmatpush1.bf16.msra.mxu0 0
        %735 = vmatprep.subr.bf16.mxu0 0
        %736 = vmatpush1.bf16.msra.mxu0 0
        %737 = vmatprep.subr.bf16.mxu0 0
        %738 = vmatpush1.bf16.msra.mxu0 0
        %739 = vmatprep.subr.bf16.mxu0 0
        %740 = vmatpush1.bf16.msra.mxu0 0
        %741 = vmatprep.subr.bf16.mxu0 0
        %742 = vmatpush1.bf16.msra.mxu0 0
        %743 = vmatprep.subr.bf16.mxu0 0
        %744 = vmatpush1.bf16.msra.mxu0 0
        %745 = vmatprep.mubr.bf16.mxu0 0
        %746 = vmatmul.mubr.bf16.gmra.mrb[0].mxu0 %v711
        %v747 = vpop.f32.mrb[0].mxu0
        %v748 = vadd.f32 %v695, %v747
        %v749 = vpop.f32.mrb[0].mxu0
        %v750 = vpop.f32.mrb[0].mxu0
        %v751 = vpop.f32.mrb[0].mxu0
        %752 = vdwg.mxu0
        %v753 = vmul.f32 %v748, 0.35355338
        %v754 = vpack.c.bf16 %v753, %v753
        %v755 = vpack.c.bf16 %v748, %v748
        %757 = vrot.lane.b32.xlu0 %v755, 96
        %v758 = vpop.permute.xlu0 %757
        %vm759 = vcmask 64512
        %v761 = vsel %vm759, %v754, 0
        %v764 = vsel %vm759, %v758, 0
        %766 = vmatprep.subr.bf16.mxu0 0
        %767 = vmatpush1.bf16.xpose.msra.mxu0 %v764
        %768 = vmatprep.subr.bf16.mxu0 0
        %769 = vmatpush1.bf16.xpose.msra.mxu0 0
        %770 = vmatprep.subr.bf16.mxu0 0
        %771 = vmatpush1.bf16.xpose.msra.mxu0 0
        %772 = vmatprep.subr.bf16.mxu0 0
        %773 = vmatpush1.bf16.xpose.msra.mxu0 0
        %774 = vmatprep.subr.bf16.mxu0 0
        %775 = vmatpush1.bf16.xpose.msra.mxu0 0
        %776 = vmatprep.subr.bf16.mxu0 0
        %777 = vmatpush1.bf16.xpose.msra.mxu0 0
        %778 = vmatprep.subr.bf16.mxu0 0
        %779 = vmatpush1.bf16.xpose.msra.mxu0 0
        %780 = vmatprep.subr.bf16.mxu0 0
        %781 = vmatpush1.bf16.xpose.msra.mxu0 0
        %782 = vmatprep.subr.bf16.mxu0 0
        %783 = vmatpush1.bf16.xpose.msra.mxu0 0
        %784 = vmatprep.subr.bf16.mxu0 0
        %785 = vmatpush1.bf16.xpose.msra.mxu0 0
        %786 = vmatprep.subr.bf16.mxu0 0
        %787 = vmatpush1.bf16.xpose.msra.mxu0 0
        %788 = vmatprep.subr.bf16.mxu0 0
        %789 = vmatpush1.bf16.xpose.msra.mxu0 0
        %790 = vmatprep.subr.bf16.mxu0 0
        %791 = vmatpush1.bf16.xpose.msra.mxu0 0
        %792 = vmatprep.subr.bf16.mxu0 0
        %793 = vmatpush1.bf16.xpose.msra.mxu0 0
        %794 = vmatprep.subr.bf16.mxu0 0
        %795 = vmatpush1.bf16.xpose.msra.mxu0 0
        %796 = vmatprep.subr.bf16.mxu0 0
        %797 = vmatpush1.bf16.xpose.msra.mxu0 0
        %798 = vmatprep.mubr.bf16.mxu0 0
        %799 = vmatmul.mubr.bf16.gmra.mrb[0].mxu0 %v761
        %v800 = vpop.f32.mrb[0].mxu0
        %v801 = vadd.f32 0.0, %v800
        %v802 = vpop.f32.mrb[0].mxu0
        %v803 = vpop.f32.mrb[0].mxu0
        %v804 = vpop.f32.mrb[0].mxu0
        %805 = vdwg.mxu0
        %807 = vrot.lane.b32.xlu0 %v754, 120
        %v808 = vpop.permute.xlu0 %807
        %809 = vrot.lane.b32.xlu0 %v755, 88
        %v810 = vpop.permute.xlu0 %809
        %v812 = vsel %vm759, %v808, 0
        %v815 = vsel %vm759, %v810, 0
        %817 = vmatprep.subr.bf16.mxu0 0
        %818 = vmatpush1.bf16.xpose.msra.mxu0 %v815
        %819 = vmatprep.subr.bf16.mxu0 0
        %820 = vmatpush1.bf16.xpose.msra.mxu0 0
        %821 = vmatprep.subr.bf16.mxu0 0
        %822 = vmatpush1.bf16.xpose.msra.mxu0 0
        %823 = vmatprep.subr.bf16.mxu0 0
        %824 = vmatpush1.bf16.xpose.msra.mxu0 0
        %825 = vmatprep.subr.bf16.mxu0 0
        %826 = vmatpush1.bf16.xpose.msra.mxu0 0
        %827 = vmatprep.subr.bf16.mxu0 0
        %828 = vmatpush1.bf16.xpose.msra.mxu0 0
        %829 = vmatprep.subr.bf16.mxu0 0
        %830 = vmatpush1.bf16.xpose.msra.mxu0 0
        %831 = vmatprep.subr.bf16.mxu0 0
        %832 = vmatpush1.bf16.xpose.msra.mxu0 0
        %833 = vmatprep.subr.bf16.mxu0 0
        %834 = vmatpush1.bf16.xpose.msra.mxu0 0
        %835 = vmatprep.subr.bf16.mxu0 0
        %836 = vmatpush1.bf16.xpose.msra.mxu0 0
        %837 = vmatprep.subr.bf16.mxu0 0
        %838 = vmatpush1.bf16.xpose.msra.mxu0 0
        %839 = vmatprep.subr.bf16.mxu0 0
        %840 = vmatpush1.bf16.xpose.msra.mxu0 0
        %841 = vmatprep.subr.bf16.mxu0 0
        %842 = vmatpush1.bf16.xpose.msra.mxu0 0
        %843 = vmatprep.subr.bf16.mxu0 0
        %844 = vmatpush1.bf16.xpose.msra.mxu0 0
        %845 = vmatprep.subr.bf16.mxu0 0
        %846 = vmatpush1.bf16.xpose.msra.mxu0 0
        %847 = vmatprep.subr.bf16.mxu0 0
        %848 = vmatpush1.bf16.xpose.msra.mxu0 0
        %849 = vmatprep.mubr.bf16.mxu0 0
        %850 = vmatmul.mubr.bf16.gmra.mrb[0].mxu0 %v812
        %v851 = vpop.f32.mrb[0].mxu0
        %v852 = vadd.f32 0.0, %v851
        %v853 = vpop.f32.mrb[0].mxu0
        %v854 = vpop.f32.mrb[0].mxu0
        %v855 = vpop.f32.mrb[0].mxu0
        %856 = vdwg.mxu0
        %857 = vrot.lane.b32.xlu0 %v754, 112
        %v858 = vpop.permute.xlu0 %857
        %859 = vrot.lane.b32.xlu0 %v755, 80
        %v860 = vpop.permute.xlu0 %859
        %v862 = vsel %vm759, %v858, 0
        %v865 = vsel %vm759, %v860, 0
        %867 = vmatprep.subr.bf16.mxu0 0
        %868 = vmatpush1.bf16.xpose.msra.mxu0 %v865
        %869 = vmatprep.subr.bf16.mxu0 0
        %870 = vmatpush1.bf16.xpose.msra.mxu0 0
        %871 = vmatprep.subr.bf16.mxu0 0
        %872 = vmatpush1.bf16.xpose.msra.mxu0 0
        %873 = vmatprep.subr.bf16.mxu0 0
        %874 = vmatpush1.bf16.xpose.msra.mxu0 0
        %875 = vmatprep.subr.bf16.mxu0 0
        %876 = vmatpush1.bf16.xpose.msra.mxu0 0
        %877 = vmatprep.subr.bf16.mxu0 0
        %878 = vmatpush1.bf16.xpose.msra.mxu0 0
        %879 = vmatprep.subr.bf16.mxu0 0
        %880 = vmatpush1.bf16.xpose.msra.mxu0 0
        %881 = vmatprep.subr.bf16.mxu0 0
        %882 = vmatpush1.bf16.xpose.msra.mxu0 0
        %883 = vmatprep.subr.bf16.mxu0 0
        %884 = vmatpush1.bf16.xpose.msra.mxu0 0
        %885 = vmatprep.subr.bf16.mxu0 0
        %886 = vmatpush1.bf16.xpose.msra.mxu0 0
        %887 = vmatprep.subr.bf16.mxu0 0
        %888 = vmatpush1.bf16.xpose.msra.mxu0 0
        %889 = vmatprep.subr.bf16.mxu0 0
        %890 = vmatpush1.bf16.xpose.msra.mxu0 0
        %891 = vmatprep.subr.bf16.mxu0 0
        %892 = vmatpush1.bf16.xpose.msra.mxu0 0
        %893 = vmatprep.subr.bf16.mxu0 0
        %894 = vmatpush1.bf16.xpose.msra.mxu0 0
        %895 = vmatprep.subr.bf16.mxu0 0
        %896 = vmatpush1.bf16.xpose.msra.mxu0 0
        %897 = vmatprep.subr.bf16.mxu0 0
        %898 = vmatpush1.bf16.xpose.msra.mxu0 0
        %899 = vmatprep.mubr.bf16.mxu0 0
        %900 = vmatmul.mubr.bf16.gmra.mrb[0].mxu0 %v862
        %v901 = vpop.f32.mrb[0].mxu0
        %v902 = vadd.f32 0.0, %v901
        %v903 = vpop.f32.mrb[0].mxu0
        %v904 = vpop.f32.mrb[0].mxu0
        %v905 = vpop.f32.mrb[0].mxu0
        %906 = vdwg.mxu0
        %907 = vrot.lane.b32.xlu0 %v754, 104
        %v908 = vpop.permute.xlu0 %907
        %909 = vrot.lane.b32.xlu0 %v755, 72
        %v910 = vpop.permute.xlu0 %909
        %v912 = vsel %vm759, %v908, 0
        %v915 = vsel %vm759, %v910, 0
        %917 = vmatprep.subr.bf16.mxu0 0
        %918 = vmatpush1.bf16.xpose.msra.mxu0 %v915
        %919 = vmatprep.subr.bf16.mxu0 0
        %920 = vmatpush1.bf16.xpose.msra.mxu0 0
        %921 = vmatprep.subr.bf16.mxu0 0
        %922 = vmatpush1.bf16.xpose.msra.mxu0 0
        %923 = vmatprep.subr.bf16.mxu0 0
        %924 = vmatpush1.bf16.xpose.msra.mxu0 0
        %925 = vmatprep.subr.bf16.mxu0 0
        %926 = vmatpush1.bf16.xpose.msra.mxu0 0
        %927 = vmatprep.subr.bf16.mxu0 0
        %928 = vmatpush1.bf16.xpose.msra.mxu0 0
        %929 = vmatprep.subr.bf16.mxu0 0
        %930 = vmatpush1.bf16.xpose.msra.mxu0 0
        %931 = vmatprep.subr.bf16.mxu0 0
        %932 = vmatpush1.bf16.xpose.msra.mxu0 0
        %933 = vmatprep.subr.bf16.mxu0 0
        %934 = vmatpush1.bf16.xpose.msra.mxu0 0
        %935 = vmatprep.subr.bf16.mxu0 0
        %936 = vmatpush1.bf16.xpose.msra.mxu0 0
        %937 = vmatprep.subr.bf16.mxu0 0
        %938 = vmatpush1.bf16.xpose.msra.mxu0 0
        %939 = vmatprep.subr.bf16.mxu0 0
        %940 = vmatpush1.bf16.xpose.msra.mxu0 0
        %941 = vmatprep.subr.bf16.mxu0 0
        %942 = vmatpush1.bf16.xpose.msra.mxu0 0
        %943 = vmatprep.subr.bf16.mxu0 0
        %944 = vmatpush1.bf16.xpose.msra.mxu0 0
        %945 = vmatprep.subr.bf16.mxu0 0
        %946 = vmatpush1.bf16.xpose.msra.mxu0 0
        %947 = vmatprep.subr.bf16.mxu0 0
        %948 = vmatpush1.bf16.xpose.msra.mxu0 0
        %949 = vmatprep.mubr.bf16.mxu0 0
        %950 = vmatmul.mubr.bf16.gmra.mrb[0].mxu0 %v912
        %v951 = vpop.f32.mrb[0].mxu0
        %v952 = vadd.f32 0.0, %v951
        %v953 = vpop.f32.mrb[0].mxu0
        %v954 = vpop.f32.mrb[0].mxu0
        %v955 = vpop.f32.mrb[0].mxu0
        %956 = vdwg.mxu0
        %v957 = vsel %vm759, %v801, -inf
        %958 = vmax.xlane.f32.xlu0 %v957
        %v959 = vpop.xlane.xlu0 %958
        %v960 = vsel %vm759, %v852, -inf
        %961 = vmax.xlane.f32.xlu0 %v960
        %v962 = vpop.xlane.xlu0 %961
        %v963 = vsel %vm759, %v902, -inf
        %964 = vmax.xlane.f32.xlu0 %v963
        %v965 = vpop.xlane.xlu0 %964
        %v966 = vsel %vm759, %v952, -inf
        %967 = vmax.xlane.f32.xlu0 %v966
        %v968 = vpop.xlane.xlu0 %967
        %v969 = vsub.f32 %v801, %v959
        %v970 = vsub.f32 %v852, %v962
        %v971 = vsub.f32 %v902, %v965
        %v972 = vsub.f32 %v952, %v968
        %v973 = vmul.f32 %v969, 1.442695
        %v974 = vpow.pop %v973
        %v975 = vmul.f32 %v970, 1.442695
        %v976 = vpow.pop %v975
        %v977 = vmul.f32 %v971, 1.442695
        %v978 = vpow.pop %v977
        %v979 = vmul.f32 %v972, 1.442695
        %v980 = vpow.pop %v979
        %v981 = vsel %vm759, %v974, 0.0
        %982 = vadd.xlane.f32.xlu0 %v981
        %v983 = vpop.xlane.xlu0 %982
        %v984 = vsel %vm759, %v976, 0.0
        %985 = vadd.xlane.f32.xlu0 %v984
        %v986 = vpop.xlane.xlu0 %985
        %v987 = vsel %vm759, %v978, 0.0
        %988 = vadd.xlane.f32.xlu0 %v987
        %v989 = vpop.xlane.xlu0 %988
        %v990 = vsel %vm759, %v980, 0.0
        %991 = vadd.xlane.f32.xlu0 %v990
        %v992 = vpop.xlane.xlu0 %991
        %v993 = vrcp.pop %v983
        %v994 = vmul.f32 %v974, %v993
        %v995 = vrcp.pop %v986
        %v996 = vmul.f32 %v976, %v995
        %v997 = vrcp.pop %v989
        %v998 = vmul.f32 %v978, %v997
        %v999 = vrcp.pop %v992
        %v1000 = vmul.f32 %v980, %v999
        %v1001 = vpack.c.bf16 %v994, %v994
        %1002 = vrot.lane.b32.xlu0 %v755, 64
        %v1003 = vpop.permute.xlu0 %1002
        %v1005 = vsel %vm759, %v1001, 0
        %vm1007 = vcmask 1043456
        %v1009 = vsel %vm1007, %v1003, 0
        %1011 = vmatprep.subr.bf16.mxu0 0
        %1012 = vmatpush1.bf16.msra.mxu0 %v1009
        %1013 = vmatprep.subr.bf16.mxu0 0
        %1014 = vmatpush1.bf16.msra.mxu0 0
        %1015 = vmatprep.subr.bf16.mxu0 0
        %1016 = vmatpush1.bf16.msra.mxu0 0
        %1017 = vmatprep.subr.bf16.mxu0 0
        %1018 = vmatpush1.bf16.msra.mxu0 0
        %1019 = vmatprep.subr.bf16.mxu0 0
        %1020 = vmatpush1.bf16.msra.mxu0 0
        %1021 = vmatprep.subr.bf16.mxu0 0
        %1022 = vmatpush1.bf16.msra.mxu0 0
        %1023 = vmatprep.subr.bf16.mxu0 0
        %1024 = vmatpush1.bf16.msra.mxu0 0
        %1025 = vmatprep.subr.bf16.mxu0 0
        %1026 = vmatpush1.bf16.msra.mxu0 0
        %1027 = vmatprep.subr.bf16.mxu0 0
        %1028 = vmatpush1.bf16.msra.mxu0 0
        %1029 = vmatprep.subr.bf16.mxu0 0
        %1030 = vmatpush1.bf16.msra.mxu0 0
        %1031 = vmatprep.subr.bf16.mxu0 0
        %1032 = vmatpush1.bf16.msra.mxu0 0
        %1033 = vmatprep.subr.bf16.mxu0 0
        %1034 = vmatpush1.bf16.msra.mxu0 0
        %1035 = vmatprep.subr.bf16.mxu0 0
        %1036 = vmatpush1.bf16.msra.mxu0 0
        %1037 = vmatprep.subr.bf16.mxu0 0
        %1038 = vmatpush1.bf16.msra.mxu0 0
        %1039 = vmatprep.subr.bf16.mxu0 0
        %1040 = vmatpush1.bf16.msra.mxu0 0
        %1041 = vmatprep.subr.bf16.mxu0 0
        %1042 = vmatpush1.bf16.msra.mxu0 0
        %1043 = vmatprep.mubr.bf16.mxu0 0
        %1044 = vmatmul.mubr.bf16.gmra.mrb[0].mxu0 %v1005
        %v1045 = vpop.f32.mrb[0].mxu0
        %v1046 = vadd.f32 0.0, %v1045
        %v1047 = vpop.f32.mrb[0].mxu0
        %v1048 = vpop.f32.mrb[0].mxu0
        %v1049 = vpop.f32.mrb[0].mxu0
        %1050 = vdwg.mxu0
        %v1051 = vpack.c.bf16 %v996, %v996
        %1052 = vrot.lane.b32.xlu0 %v755, 56
        %v1053 = vpop.permute.xlu0 %1052
        %v1055 = vsel %vm759, %v1051, 0
        %v1058 = vsel %vm1007, %v1053, 0
        %1060 = vmatprep.subr.bf16.mxu0 0
        %1061 = vmatpush1.bf16.msra.mxu0 %v1058
        %1062 = vmatprep.subr.bf16.mxu0 0
        %1063 = vmatpush1.bf16.msra.mxu0 0
        %1064 = vmatprep.subr.bf16.mxu0 0
        %1065 = vmatpush1.bf16.msra.mxu0 0
        %1066 = vmatprep.subr.bf16.mxu0 0
        %1067 = vmatpush1.bf16.msra.mxu0 0
        %1068 = vmatprep.subr.bf16.mxu0 0
        %1069 = vmatpush1.bf16.msra.mxu0 0
        %1070 = vmatprep.subr.bf16.mxu0 0
        %1071 = vmatpush1.bf16.msra.mxu0 0
        %1072 = vmatprep.subr.bf16.mxu0 0
        %1073 = vmatpush1.bf16.msra.mxu0 0
        %1074 = vmatprep.subr.bf16.mxu0 0
        %1075 = vmatpush1.bf16.msra.mxu0 0
        %1076 = vmatprep.subr.bf16.mxu0 0
        %1077 = vmatpush1.bf16.msra.mxu0 0
        %1078 = vmatprep.subr.bf16.mxu0 0
        %1079 = vmatpush1.bf16.msra.mxu0 0
        %1080 = vmatprep.subr.bf16.mxu0 0
        %1081 = vmatpush1.bf16.msra.mxu0 0
        %1082 = vmatprep.subr.bf16.mxu0 0
        %1083 = vmatpush1.bf16.msra.mxu0 0
        %1084 = vmatprep.subr.bf16.mxu0 0
        %1085 = vmatpush1.bf16.msra.mxu0 0
        %1086 = vmatprep.subr.bf16.mxu0 0
        %1087 = vmatpush1.bf16.msra.mxu0 0
        %1088 = vmatprep.subr.bf16.mxu0 0
        %1089 = vmatpush1.bf16.msra.mxu0 0
        %1090 = vmatprep.subr.bf16.mxu0 0
        %1091 = vmatpush1.bf16.msra.mxu0 0
        %1092 = vmatprep.mubr.bf16.mxu0 0
        %1093 = vmatmul.mubr.bf16.gmra.mrb[0].mxu0 %v1055
        %v1094 = vpop.f32.mrb[0].mxu0
        %v1095 = vadd.f32 0.0, %v1094
        %v1096 = vpop.f32.mrb[0].mxu0
        %v1097 = vpop.f32.mrb[0].mxu0
        %v1098 = vpop.f32.mrb[0].mxu0
        %1099 = vdwg.mxu0
        %v1100 = vpack.c.bf16 %v998, %v998
        %1101 = vrot.lane.b32.xlu0 %v755, 48
        %v1102 = vpop.permute.xlu0 %1101
        %v1104 = vsel %vm759, %v1100, 0
        %v1107 = vsel %vm1007, %v1102, 0
        %1109 = vmatprep.subr.bf16.mxu0 0
        %1110 = vmatpush1.bf16.msra.mxu0 %v1107
        %1111 = vmatprep.subr.bf16.mxu0 0
        %1112 = vmatpush1.bf16.msra.mxu0 0
        %1113 = vmatprep.subr.bf16.mxu0 0
        %1114 = vmatpush1.bf16.msra.mxu0 0
        %1115 = vmatprep.subr.bf16.mxu0 0
        %1116 = vmatpush1.bf16.msra.mxu0 0
        %1117 = vmatprep.subr.bf16.mxu0 0
        %1118 = vmatpush1.bf16.msra.mxu0 0
        %1119 = vmatprep.subr.bf16.mxu0 0
        %1120 = vmatpush1.bf16.msra.mxu0 0
        %1121 = vmatprep.subr.bf16.mxu0 0
        %1122 = vmatpush1.bf16.msra.mxu0 0
        %1123 = vmatprep.subr.bf16.mxu0 0
        %1124 = vmatpush1.bf16.msra.mxu0 0
        %1125 = vmatprep.subr.bf16.mxu0 0
        %1126 = vmatpush1.bf16.msra.mxu0 0
        %1127 = vmatprep.subr.bf16.mxu0 0
        %1128 = vmatpush1.bf16.msra.mxu0 0
        %1129 = vmatprep.subr.bf16.mxu0 0
        %1130 = vmatpush1.bf16.msra.mxu0 0
        %1131 = vmatprep.subr.bf16.mxu0 0
        %1132 = vmatpush1.bf16.msra.mxu0 0
        %1133 = vmatprep.subr.bf16.mxu0 0
        %1134 = vmatpush1.bf16.msra.mxu0 0
        %1135 = vmatprep.subr.bf16.mxu0 0
        %1136 = vmatpush1.bf16.msra.mxu0 0
        %1137 = vmatprep.subr.bf16.mxu0 0
        %1138 = vmatpush1.bf16.msra.mxu0 0
        %1139 = vmatprep.subr.bf16.mxu0 0
        %1140 = vmatpush1.bf16.msra.mxu0 0
        %1141 = vmatprep.mubr.bf16.mxu0 0
        %1142 = vmatmul.mubr.bf16.gmra.mrb[0].mxu0 %v1104
        %v1143 = vpop.f32.mrb[0].mxu0
        %v1144 = vadd.f32 0.0, %v1143
        %v1145 = vpop.f32.mrb[0].mxu0
        %v1146 = vpop.f32.mrb[0].mxu0
        %v1147 = vpop.f32.mrb[0].mxu0
        %1148 = vdwg.mxu0
        %v1149 = vpack.c.bf16 %v1000, %v1000
        %1150 = vrot.lane.b32.xlu0 %v755, 40
        %v1151 = vpop.permute.xlu0 %1150
        %v1153 = vsel %vm759, %v1149, 0
        %v1156 = vsel %vm1007, %v1151, 0
        %1158 = vmatprep.subr.bf16.mxu0 0
        %1159 = vmatpush1.bf16.msra.mxu0 %v1156
        %1160 = vmatprep.subr.bf16.mxu0 0
        %1161 = vmatpush1.bf16.msra.mxu0 0
        %1162 = vmatprep.subr.bf16.mxu0 0
        %1163 = vmatpush1.bf16.msra.mxu0 0
        %1164 = vmatprep.subr.bf16.mxu0 0
        %1165 = vmatpush1.bf16.msra.mxu0 0
        %1166 = vmatprep.subr.bf16.mxu0 0
        %1167 = vmatpush1.bf16.msra.mxu0 0
        %1168 = vmatprep.subr.bf16.mxu0 0
        %1169 = vmatpush1.bf16.msra.mxu0 0
        %1170 = vmatprep.subr.bf16.mxu0 0
        %1171 = vmatpush1.bf16.msra.mxu0 0
        %1172 = vmatprep.subr.bf16.mxu0 0
        %1173 = vmatpush1.bf16.msra.mxu0 0
        %1174 = vmatprep.subr.bf16.mxu0 0
        %1175 = vmatpush1.bf16.msra.mxu0 0
        %1176 = vmatprep.subr.bf16.mxu0 0
        %1177 = vmatpush1.bf16.msra.mxu0 0
        %1178 = vmatprep.subr.bf16.mxu0 0
        %1179 = vmatpush1.bf16.msra.mxu0 0
        %1180 = vmatprep.subr.bf16.mxu0 0
        %1181 = vmatpush1.bf16.msra.mxu0 0
        %1182 = vmatprep.subr.bf16.mxu0 0
        %1183 = vmatpush1.bf16.msra.mxu0 0
        %1184 = vmatprep.subr.bf16.mxu0 0
        %1185 = vmatpush1.bf16.msra.mxu0 0
        %1186 = vmatprep.subr.bf16.mxu0 0
        %1187 = vmatpush1.bf16.msra.mxu0 0
        %1188 = vmatprep.subr.bf16.mxu0 0
        %1189 = vmatpush1.bf16.msra.mxu0 0
        %1190 = vmatprep.mubr.bf16.mxu0 0
        %1191 = vmatmul.mubr.bf16.gmra.mrb[0].mxu0 %v1153
        %v1192 = vpop.f32.mrb[0].mxu0
        %v1193 = vadd.f32 0.0, %v1192
        %v1194 = vpop.f32.mrb[0].mxu0
        %v1195 = vpop.f32.mrb[0].mxu0
        %v1196 = vpop.f32.mrb[0].mxu0
        %1197 = vdwg.mxu0
        %1199 = vrot.lane.b32.xlu0 %v1095, 8
        %v1200 = vpop.permute.xlu0 %1199
        %1203 = vrot.lane.b32.xlu0 %v1144, 16
        %v1204 = vpop.permute.xlu0 %1203
        %1207 = vrot.lane.b32.xlu0 %v1193, 24
        %v1208 = vpop.permute.xlu0 %1207
        %v1210 = vsel %vm759, %v1046, %v1200
        %vm1211 = vcmask 130048
        %v1212 = vsel %vm1211, %v1210, %v1204
        %vm1213 = vcmask 195584
        %v1214 = vsel %vm1213, %v1212, %v1208
        %v1215 = vpack.c.bf16 %v1214, %v1214
        %v1216 = vld [vmem:[%s6] sm:$0xf]
        %v1217 = vld [vmem:[%s6 + $0x4] sm:$0xf]
        %v1218 = vld [vmem:[%s6 + $0x8] sm:$0xf]
        %v1219 = vld [vmem:[%s6 + $0xc] sm:$0xf]
        %v1220 = vld [vmem:[%s7] sm:$0x1]
        %v1222 = vlaneseq
        %v1223 = vshrl.u32 %v1222, 7
        %v1224 = vsub.s32 0, %v1223
        %v1225 = vrot.slane %v1220, %v1224
        %v1231 = vunpack.c.l.b16 %v1216
        %v1232 = vunpack.c.l.b16 %v1217
        %v1233 = vunpack.c.l.b16 %v1218
        %v1234 = vunpack.c.l.b16 %v1219
        %v1235 = vpack.c.b16 %v1232, %v1231
        %v1236 = vpack.c.b16 %v1234, %v1233
        %v1240 = vsel %vm709, %v1215, 0
        %1242 = vmatprep.subr.bf16.mxu0 0
        %1243 = vmatpush1.bf16.msra.mxu0 %v1235
        %1244 = vmatprep.subr.bf16.mxu0 0
        %1245 = vmatpush1.bf16.msra.mxu0 %v1236
        %1246 = vmatprep.subr.bf16.mxu0 0
        %1247 = vmatpush1.bf16.msra.mxu0 0
        %1248 = vmatprep.subr.bf16.mxu0 0
        %1249 = vmatpush1.bf16.msra.mxu0 0
        %1250 = vmatprep.subr.bf16.mxu0 0
        %1251 = vmatpush1.bf16.msra.mxu0 0
        %1252 = vmatprep.subr.bf16.mxu0 0
        %1253 = vmatpush1.bf16.msra.mxu0 0
        %1254 = vmatprep.subr.bf16.mxu0 0
        %1255 = vmatpush1.bf16.msra.mxu0 0
        %1256 = vmatprep.subr.bf16.mxu0 0
        %1257 = vmatpush1.bf16.msra.mxu0 0
        %1258 = vmatprep.subr.bf16.mxu0 0
        %1259 = vmatpush1.bf16.msra.mxu0 0
        %1260 = vmatprep.subr.bf16.mxu0 0
        %1261 = vmatpush1.bf16.msra.mxu0 0
        %1262 = vmatprep.subr.bf16.mxu0 0
        %1263 = vmatpush1.bf16.msra.mxu0 0
        %1264 = vmatprep.subr.bf16.mxu0 0
        %1265 = vmatpush1.bf16.msra.mxu0 0
        %1266 = vmatprep.subr.bf16.mxu0 0
        %1267 = vmatpush1.bf16.msra.mxu0 0
        %1268 = vmatprep.subr.bf16.mxu0 0
        %1269 = vmatpush1.bf16.msra.mxu0 0
        %1270 = vmatprep.subr.bf16.mxu0 0
        %1271 = vmatpush1.bf16.msra.mxu0 0
        %1272 = vmatprep.subr.bf16.mxu0 0
        %1273 = vmatpush1.bf16.msra.mxu0 0
        %1274 = vmatprep.mubr.bf16.mxu0 0
        %1275 = vmatmul.mubr.bf16.gmra.mrb[0].mxu0 %v1240
        %v1276 = vpop.f32.mrb[0].mxu0
        %v1277 = vadd.f32 %v1225, %v1276
        %v1278 = vpop.f32.mrb[0].mxu0
        %v1279 = vpop.f32.mrb[0].mxu0
        %v1280 = vpop.f32.mrb[0].mxu0
        %1281 = vdwg.mxu0
        %v1282 = vadd.f32 %v684, %v1277
        %v1283 = vld [vmem:[%s8] sm:$0x1]
        %v1284 = vld [vmem:[%s9] sm:$0x1]
        %v1285 = vsel %vm709, %v1282, 0.0
        %1286 = vadd.xlane.f32.xlu0 %v1285
        %v1287 = vpop.xlane.xlu0 %1286
        %v1288 = vrcp.pop 32.0
        %v1289 = vmul.f32 %v1287, %v1288
        %v1290 = vsub.f32 %v1282, %v1289
        %v1291 = vmul.f32 %v1290, %v1290
        %v1292 = vsel %vm709, %v1291, 0.0
        %1293 = vadd.xlane.f32.xlu0 %v1292
        %v1294 = vpop.xlane.xlu0 %1293
        %v1295 = vmul.f32 %v1294, %v1288
        %v1296 = vadd.f32 %v1295, 1e-05
        %v1297 = vrsqrt.pop %v1296
        %v1298 = vmul.f32 %v1290, %v1297
        %v1300 = vlaneseq
        %v1301 = vshrl.u32 %v1300, 7
        %v1302 = vsub.s32 0, %v1301
        %v1303 = vrot.slane %v1283, %v1302
        %v1305 = vmul.f32 %v1298, %v1303
        %v1307 = vlaneseq
        %v1308 = vshrl.u32 %v1307, 7
        %v1309 = vsub.s32 0, %v1308
        %v1310 = vrot.slane %v1284, %v1309
        %v1312 = vadd.f32 %v1305, %v1310
        %v1313 = vpack.c.bf16 %v1312, %v1312
        %v1314 = vld [vmem:[%s10] sm:$0xf]
        %v1315 = vld [vmem:[%s10 + $0x4] sm:$0xf]
        %v1316 = vld [vmem:[%s10 + $0x8] sm:$0xf]
        %v1317 = vld [vmem:[%s10 + $0xc] sm:$0xf]
        %v1318 = vld [vmem:[%s11] sm:$0x1]
        %v1320 = vlaneseq
        %v1321 = vshrl.u32 %v1320, 7
        %v1322 = vsub.s32 0, %v1321
        %v1323 = vrot.slane %v1318, %v1322
        %v1329 = vunpack.c.l.b16 %v1314
        %v1330 = vunpack.c.l.b16 %v1315
        %v1331 = vunpack.c.l.b16 %v1316
        %v1332 = vunpack.c.l.b16 %v1317
        %v1333 = vpack.c.b16 %v1330, %v1329
        %v1334 = vpack.c.b16 %v1332, %v1331
        %v1338 = vsel %vm709, %v1313, 0
        %1340 = vmatprep.subr.bf16.mxu0 0
        %1341 = vmatpush1.bf16.msra.mxu0 %v1333
        %1342 = vmatprep.subr.bf16.mxu0 0
        %1343 = vmatpush1.bf16.msra.mxu0 %v1334
        %1344 = vmatprep.subr.bf16.mxu0 0
        %1345 = vmatpush1.bf16.msra.mxu0 0
        %1346 = vmatprep.subr.bf16.mxu0 0
        %1347 = vmatpush1.bf16.msra.mxu0 0
        %1348 = vmatprep.subr.bf16.mxu0 0
        %1349 = vmatpush1.bf16.msra.mxu0 0
        %1350 = vmatprep.subr.bf16.mxu0 0
        %1351 = vmatpush1.bf16.msra.mxu0 0
        %1352 = vmatprep.subr.bf16.mxu0 0
        %1353 = vmatpush1.bf16.msra.mxu0 0
        %1354 = vmatprep.subr.bf16.mxu0 0
        %1355 = vmatpush1.bf16.msra.mxu0 0
        %1356 = vmatprep.subr.bf16.mxu0 0
        %1357 = vmatpush1.bf16.msra.mxu0 0
        %1358 = vmatprep.subr.bf16.mxu0 0
        %1359 = vmatpush1.bf16.msra.mxu0 0
        %1360 = vmatprep.subr.bf16.mxu0 0
        %1361 = vmatpush1.bf16.msra.mxu0 0
        %1362 = vmatprep.subr.bf16.mxu0 0
        %1363 = vmatpush1.bf16.msra.mxu0 0
        %1364 = vmatprep.subr.bf16.mxu0 0
        %1365 = vmatpush1.bf16.msra.mxu0 0
        %1366 = vmatprep.subr.bf16.mxu0 0
        %1367 = vmatpush1.bf16.msra.mxu0 0
        %1368 = vmatprep.subr.bf16.mxu0 0
        %1369 = vmatpush1.bf16.msra.mxu0 0
        %1370 = vmatprep.subr.bf16.mxu0 0
        %1371 = vmatpush1.bf16.msra.mxu0 0
        %1372 = vmatprep.mubr.bf16.mxu0 0
        %1373 = vmatmul.mubr.bf16.gmra.mrb[0].mxu0 %v1338
        %v1374 = vpop.f32.mrb[0].mxu0
        %v1375 = vadd.f32 %v1323, %v1374
        %v1376 = vpop.f32.mrb[0].mxu0
        %v1377 = vpop.f32.mrb[0].mxu0
        %v1378 = vpop.f32.mrb[0].mxu0
        %1379 = vdwg.mxu0
        %v1380 = vmax.f32 %v1375, 0.0
        %v1381 = vpack.c.bf16 %v1380, %v1380
        %v1382 = vld [vmem:[%s12] sm:$0xf]
        %v1383 = vld [vmem:[%s12 + $0x4] sm:$0xf]
        %v1384 = vld [vmem:[%s12 + $0x8] sm:$0xf]
        %v1385 = vld [vmem:[%s12 + $0xc] sm:$0xf]
        %v1386 = vld [vmem:[%s12 + $0x10] sm:$0xf]
        %v1387 = vld [vmem:[%s12 + $0x14] sm:$0xf]
        %v1388 = vld [vmem:[%s12 + $0x18] sm:$0xf]
        %v1389 = vld [vmem:[%s12 + $0x1c] sm:$0xf]
        %v1390 = vld [vmem:[%s13] sm:$0x1]
        %v1392 = vlaneseq
        %v1393 = vshrl.u32 %v1392, 7
        %v1394 = vsub.s32 0, %v1393
        %v1395 = vrot.slane %v1390, %v1394
        %v1405 = vunpack.c.l.b16 %v1382
        %v1406 = vunpack.c.l.b16 %v1383
        %v1407 = vunpack.c.l.b16 %v1384
        %v1408 = vunpack.c.l.b16 %v1385
        %v1409 = vunpack.c.l.b16 %v1386
        %v1410 = vunpack.c.l.b16 %v1387
        %v1411 = vunpack.c.l.b16 %v1388
        %v1412 = vunpack.c.l.b16 %v1389
        %v1413 = vpack.c.b16 %v1406, %v1405
        %v1414 = vpack.c.b16 %v1408, %v1407
        %v1415 = vpack.c.b16 %v1410, %v1409
        %v1416 = vpack.c.b16 %v1412, %v1411
        %vm1421 = vcmask 523264
        %v1423 = vsel %vm1421, %v1381, 0
        %1425 = vmatprep.subr.bf16.mxu0 0
        %1426 = vmatpush1.bf16.msra.mxu0 %v1413
        %1427 = vmatprep.subr.bf16.mxu0 0
        %1428 = vmatpush1.bf16.msra.mxu0 %v1414
        %1429 = vmatprep.subr.bf16.mxu0 0
        %1430 = vmatpush1.bf16.msra.mxu0 %v1415
        %1431 = vmatprep.subr.bf16.mxu0 0
        %1432 = vmatpush1.bf16.msra.mxu0 %v1416
        %1433 = vmatprep.subr.bf16.mxu0 0
        %1434 = vmatpush1.bf16.msra.mxu0 0
        %1435 = vmatprep.subr.bf16.mxu0 0
        %1436 = vmatpush1.bf16.msra.mxu0 0
        %1437 = vmatprep.subr.bf16.mxu0 0
        %1438 = vmatpush1.bf16.msra.mxu0 0
        %1439 = vmatprep.subr.bf16.mxu0 0
        %1440 = vmatpush1.bf16.msra.mxu0 0
        %1441 = vmatprep.subr.bf16.mxu0 0
        %1442 = vmatpush1.bf16.msra.mxu0 0
        %1443 = vmatprep.subr.bf16.mxu0 0
        %1444 = vmatpush1.bf16.msra.mxu0 0
        %1445 = vmatprep.subr.bf16.mxu0 0
        %1446 = vmatpush1.bf16.msra.mxu0 0
        %1447 = vmatprep.subr.bf16.mxu0 0
        %1448 = vmatpush1.bf16.msra.mxu0 0
        %1449 = vmatprep.subr.bf16.mxu0 0
        %1450 = vmatpush1.bf16.msra.mxu0 0
        %1451 = vmatprep.subr.bf16.mxu0 0
        %1452 = vmatpush1.bf16.msra.mxu0 0
        %1453 = vmatprep.subr.bf16.mxu0 0
        %1454 = vmatpush1.bf16.msra.mxu0 0
        %1455 = vmatprep.subr.bf16.mxu0 0
        %1456 = vmatpush1.bf16.msra.mxu0 0
        %1457 = vmatprep.mubr.bf16.mxu0 0
        %1458 = vmatmul.mubr.bf16.gmra.mrb[0].mxu0 %v1423
        %v1459 = vpop.f32.mrb[0].mxu0
        %v1460 = vadd.f32 %v1395, %v1459
        %v1461 = vpop.f32.mrb[0].mxu0
        %v1462 = vpop.f32.mrb[0].mxu0
        %v1463 = vpop.f32.mrb[0].mxu0
        %1464 = vdwg.mxu0
        %v1465 = vadd.f32 %v1312, %v1460
        %v1466 = vld [vmem:[%s14] sm:$0x1]
        %v1467 = vld [vmem:[%s15] sm:$0x1]
        %v1468 = vsel %vm709, %v1465, 0.0
        %1469 = vadd.xlane.f32.xlu0 %v1468
        %v1470 = vpop.xlane.xlu0 %1469
        %v1471 = vmul.f32 %v1470, %v1288
        %v1472 = vsub.f32 %v1465, %v1471
        %v1473 = vmul.f32 %v1472, %v1472
        %v1474 = vsel %vm709, %v1473, 0.0
        %1475 = vadd.xlane.f32.xlu0 %v1474
        %v1476 = vpop.xlane.xlu0 %1475
        %v1477 = vmul.f32 %v1476, %v1288
        %v1478 = vadd.f32 %v1477, 1e-05
        %v1479 = vrsqrt.pop %v1478
        %v1480 = vmul.f32 %v1472, %v1479
        %v1482 = vlaneseq
        %v1483 = vshrl.u32 %v1482, 7
        %v1484 = vsub.s32 0, %v1483
        %v1485 = vrot.slane %v1466, %v1484
        %v1487 = vmul.f32 %v1480, %v1485
        %v1489 = vlaneseq
        %v1490 = vshrl.u32 %v1489, 7
        %v1491 = vsub.s32 0, %v1490
        %v1492 = vrot.slane %v1467, %v1491
        %v1494 = vadd.f32 %v1487, %v1492
        %v1495 = vpack.c.bf16 %v1494, %v1494
        %s1496 = scalar_lea.vmem %s4, 16
        %v1497 = vld [vmem:[%s1496] sm:$0xf]
        %v1498 = vld [vmem:[%s1496 + $0x4] sm:$0xf]
        %v1499 = vld [vmem:[%s1496 + $0x8] sm:$0xf]
        %v1500 = vld [vmem:[%s1496 + $0xc] sm:$0xf]
        %s1501 = scalar_lea.vmem %s5, 1
        %v1502 = vld [vmem:[%s1501] sm:$0x1]
        %v1504 = vlaneseq
        %v1505 = vshrl.u32 %v1504, 7
        %v1506 = vsub.s32 0, %v1505
        %v1507 = vrot.slane %v1502, %v1506
        %v1513 = vunpack.c.l.b16 %v1497
        %v1514 = vunpack.c.l.b16 %v1498
        %v1515 = vunpack.c.l.b16 %v1499
        %v1516 = vunpack.c.l.b16 %v1500
        %v1517 = vpack.c.b16 %v1514, %v1513
        %v1518 = vpack.c.b16 %v1516, %v1515
        %v1522 = vsel %vm709, %v1495, 0
        %1524 = vmatprep.subr.bf16.mxu0 0
        %1525 = vmatpush1.bf16.msra.mxu0 %v1517
        %1526 = vmatprep.subr.bf16.mxu0 0
        %1527 = vmatpush1.bf16.msra.mxu0 %v1518
        %1528 = vmatprep.subr.bf16.mxu0 0
        %1529 = vmatpush1.bf16.msra.mxu0 0
        %1530 = vmatprep.subr.bf16.mxu0 0
        %1531 = vmatpush1.bf16.msra.mxu0 0
        %1532 = vmatprep.subr.bf16.mxu0 0
        %1533 = vmatpush1.bf16.msra.mxu0 0
        %1534 = vmatprep.subr.bf16.mxu0 0
        %1535 = vmatpush1.bf16.msra.mxu0 0
        %1536 = vmatprep.subr.bf16.mxu0 0
        %1537 = vmatpush1.bf16.msra.mxu0 0
        %1538 = vmatprep.subr.bf16.mxu0 0
        %1539 = vmatpush1.bf16.msra.mxu0 0
        %1540 = vmatprep.subr.bf16.mxu0 0
        %1541 = vmatpush1.bf16.msra.mxu0 0
        %1542 = vmatprep.subr.bf16.mxu0 0
        %1543 = vmatpush1.bf16.msra.mxu0 0
        %1544 = vmatprep.subr.bf16.mxu0 0
        %1545 = vmatpush1.bf16.msra.mxu0 0
        %1546 = vmatprep.subr.bf16.mxu0 0
        %1547 = vmatpush1.bf16.msra.mxu0 0
        %1548 = vmatprep.subr.bf16.mxu0 0
        %1549 = vmatpush1.bf16.msra.mxu0 0
        %1550 = vmatprep.subr.bf16.mxu0 0
        %1551 = vmatpush1.bf16.msra.mxu0 0
        %1552 = vmatprep.subr.bf16.mxu0 0
        %1553 = vmatpush1.bf16.msra.mxu0 0
        %1554 = vmatprep.subr.bf16.mxu0 0
        %1555 = vmatpush1.bf16.msra.mxu0 0
        %1556 = vmatprep.mubr.bf16.mxu0 0
        %1557 = vmatmul.mubr.bf16.gmra.mrb[0].mxu0 %v1522
        %v1558 = vpop.f32.mrb[0].mxu0
        %v1559 = vadd.f32 %v1507, %v1558
        %v1560 = vpop.f32.mrb[0].mxu0
        %v1561 = vpop.f32.mrb[0].mxu0
        %v1562 = vpop.f32.mrb[0].mxu0
        %1563 = vdwg.mxu0
        %v1564 = vmul.f32 %v1559, 0.35355338
        %v1565 = vpack.c.bf16 %v1564, %v1564
        %v1566 = vpack.c.bf16 %v1559, %v1559
        %1568 = vrot.lane.b32.xlu0 %v1566, 96
        %v1569 = vpop.permute.xlu0 %1568
        %v1571 = vsel %vm759, %v1565, 0
        %v1574 = vsel %vm759, %v1569, 0
        %1576 = vmatprep.subr.bf16.mxu0 0
        %1577 = vmatpush1.bf16.xpose.msra.mxu0 %v1574
        %1578 = vmatprep.subr.bf16.mxu0 0
        %1579 = vmatpush1.bf16.xpose.msra.mxu0 0
        %1580 = vmatprep.subr.bf16.mxu0 0
        %1581 = vmatpush1.bf16.xpose.msra.mxu0 0
        %1582 = vmatprep.subr.bf16.mxu0 0
        %1583 = vmatpush1.bf16.xpose.msra.mxu0 0
        %1584 = vmatprep.subr.bf16.mxu0 0
        %1585 = vmatpush1.bf16.xpose.msra.mxu0 0
        %1586 = vmatprep.subr.bf16.mxu0 0
        %1587 = vmatpush1.bf16.xpose.msra.mxu0 0
        %1588 = vmatprep.subr.bf16.mxu0 0
        %1589 = vmatpush1.bf16.xpose.msra.mxu0 0
        %1590 = vmatprep.subr.bf16.mxu0 0
        %1591 = vmatpush1.bf16.xpose.msra.mxu0 0
        %1592 = vmatprep.subr.bf16.mxu0 0
        %1593 = vmatpush1.bf16.xpose.msra.mxu0 0
        %1594 = vmatprep.subr.bf16.mxu0 0
        %1595 = vmatpush1.bf16.xpose.msra.mxu0 0
        %1596 = vmatprep.subr.bf16.mxu0 0
        %1597 = vmatpush1.bf16.xpose.msra.mxu0 0
        %1598 = vmatprep.subr.bf16.mxu0 0
        %1599 = vmatpush1.bf16.xpose.msra.mxu0 0
        %1600 = vmatprep.subr.bf16.mxu0 0
        %1601 = vmatpush1.bf16.xpose.msra.mxu0 0
        %1602 = vmatprep.subr.bf16.mxu0 0
        %1603 = vmatpush1.bf16.xpose.msra.mxu0 0
        %1604 = vmatprep.subr.bf16.mxu0 0
        %1605 = vmatpush1.bf16.xpose.msra.mxu0 0
        %1606 = vmatprep.subr.bf16.mxu0 0
        %1607 = vmatpush1.bf16.xpose.msra.mxu0 0
        %1608 = vmatprep.mubr.bf16.mxu0 0
        %1609 = vmatmul.mubr.bf16.gmra.mrb[0].mxu0 %v1571
        %v1610 = vpop.f32.mrb[0].mxu0
        %v1611 = vadd.f32 0.0, %v1610
        %v1612 = vpop.f32.mrb[0].mxu0
        %v1613 = vpop.f32.mrb[0].mxu0
        %v1614 = vpop.f32.mrb[0].mxu0
        %1615 = vdwg.mxu0
        %1617 = vrot.lane.b32.xlu0 %v1565, 120
        %v1618 = vpop.permute.xlu0 %1617
        %1619 = vrot.lane.b32.xlu0 %v1566, 88
        %v1620 = vpop.permute.xlu0 %1619
        %v1622 = vsel %vm759, %v1618, 0
        %v1625 = vsel %vm759, %v1620, 0
        %1627 = vmatprep.subr.bf16.mxu0 0
        %1628 = vmatpush1.bf16.xpose.msra.mxu0 %v1625
        %1629 = vmatprep.subr.bf16.mxu0 0
        %1630 = vmatpush1.bf16.xpose.msra.mxu0 0
        %1631 = vmatprep.subr.bf16.mxu0 0
        %1632 = vmatpush1.bf16.xpose.msra.mxu0 0
        %1633 = vmatprep.subr.bf16.mxu0 0
        %1634 = vmatpush1.bf16.xpose.msra.mxu0 0
        %1635 = vmatprep.subr.bf16.mxu0 0
        %1636 = vmatpush1.bf16.xpose.msra.mxu0 0
        %1637 = vmatprep.subr.bf16.mxu0 0
        %1638 = vmatpush1.bf16.xpose.msra.mxu0 0
        %1639 = vmatprep.subr.bf16.mxu0 0
        %1640 = vmatpush1.bf16.xpose.msra.mxu0 0
        %1641 = vmatprep.subr.bf16.mxu0 0
        %1642 = vmatpush1.bf16.xpose.msra.mxu0 0
        %1643 = vmatprep.subr.bf16.mxu0 0
        %1644 = vmatpush1.bf16.xpose.msra.mxu0 0
        %1645 = vmatprep.subr.bf16.mxu0 0
        %1646 = vmatpush1.bf16.xpose.msra.mxu0 0
        %1647 = vmatprep.subr.bf16.mxu0 0
        %1648 = vmatpush1.bf16.xpose.msra.mxu0 0
        %1649 = vmatprep.subr.bf16.mxu0 0
        %1650 = vmatpush1.bf16.xpose.msra.mxu0 0
        %1651 = vmatprep.subr.bf16.mxu0 0
        %1652 = vmatpush1.bf16.xpose.msra.mxu0 0
        %1653 = vmatprep.subr.bf16.mxu0 0
        %1654 = vmatpush1.bf16.xpose.msra.mxu0 0
        %1655 = vmatprep.subr.bf16.mxu0 0
        %1656 = vmatpush1.bf16.xpose.msra.mxu0 0
        %1657 = vmatprep.subr.bf16.mxu0 0
        %1658 = vmatpush1.bf16.xpose.msra.mxu0 0
        %1659 = vmatprep.mubr.bf16.mxu0 0
        %1660 = vmatmul.mubr.bf16.gmra.mrb[0].mxu0 %v1622
        %v1661 = vpop.f32.mrb[0].mxu0
        %v1662 = vadd.f32 0.0, %v1661
        %v1663 = vpop.f32.mrb[0].mxu0
        %v1664 = vpop.f32.mrb[0].mxu0
        %v1665 = vpop.f32.mrb[0].mxu0
        %1666 = vdwg.mxu0
        %1667 = vrot.lane.b32.xlu0 %v1565, 112
        %v1668 = vpop.permute.xlu0 %1667
        %1669 = vrot.lane.b32.xlu0 %v1566, 80
        %v1670 = vpop.permute.xlu0 %1669
        %v1672 = vsel %vm759, %v1668, 0
        %v1675 = vsel %vm759, %v1670, 0
        %1677 = vmatprep.subr.bf16.mxu0 0
        %1678 = vmatpush1.bf16.xpose.msra.mxu0 %v1675
        %1679 = vmatprep.subr.bf16.mxu0 0
        %1680 = vmatpush1.bf16.xpose.msra.mxu0 0
        %1681 = vmatprep.subr.bf16.mxu0 0
        %1682 = vmatpush1.bf16.xpose.msra.mxu0 0
        %1683 = vmatprep.subr.bf16.mxu0 0
        %1684 = vmatpush1.bf16.xpose.msra.mxu0 0
        %1685 = vmatprep.subr.bf16.mxu0 0
        %1686 = vmatpush1.bf16.xpose.msra.mxu0 0
        %1687 = vmatprep.subr.bf16.mxu0 0
        %1688 = vmatpush1.bf16.xpose.msra.mxu0 0
        %1689 = vmatprep.subr.bf16.mxu0 0
        %1690 = vmatpush1.bf16.xpose.msra.mxu0 0
        %1691 = vmatprep.subr.bf16.mxu0 0
        %1692 = vmatpush1.bf16.xpose.msra.mxu0 0
        %1693 = vmatprep.subr.bf16.mxu0 0
        %1694 = vmatpush1.bf16.xpose.msra.mxu0 0
        %1695 = vmatprep.subr.bf16.mxu0 0
        %1696 = vmatpush1.bf16.xpose.msra.mxu0 0
        %1697 = vmatprep.subr.bf16.mxu0 0
        %1698 = vmatpush1.bf16.xpose.msra.mxu0 0
        %1699 = vmatprep.subr.bf16.mxu0 0
        %1700 = vmatpush1.bf16.xpose.msra.mxu0 0
        %1701 = vmatprep.subr.bf16.mxu0 0
        %1702 = vmatpush1.bf16.xpose.msra.mxu0 0
        %1703 = vmatprep.subr.bf16.mxu0 0
        %1704 = vmatpush1.bf16.xpose.msra.mxu0 0
        %1705 = vmatprep.subr.bf16.mxu0 0
        %1706 = vmatpush1.bf16.xpose.msra.mxu0 0
        %1707 = vmatprep.subr.bf16.mxu0 0
        %1708 = vmatpush1.bf16.xpose.msra.mxu0 0
        %1709 = vmatprep.mubr.bf16.mxu0 0
        %1710 = vmatmul.mubr.bf16.gmra.mrb[0].mxu0 %v1672
        %v1711 = vpop.f32.mrb[0].mxu0
        %v1712 = vadd.f32 0.0, %v1711
        %v1713 = vpop.f32.mrb[0].mxu0
        %v1714 = vpop.f32.mrb[0].mxu0
        %v1715 = vpop.f32.mrb[0].mxu0
        %1716 = vdwg.mxu0
        %1717 = vrot.lane.b32.xlu0 %v1565, 104
        %v1718 = vpop.permute.xlu0 %1717
        %1719 = vrot.lane.b32.xlu0 %v1566, 72
        %v1720 = vpop.permute.xlu0 %1719
        %v1722 = vsel %vm759, %v1718, 0
        %v1725 = vsel %vm759, %v1720, 0
        %1727 = vmatprep.subr.bf16.mxu0 0
        %1728 = vmatpush1.bf16.xpose.msra.mxu0 %v1725
        %1729 = vmatprep.subr.bf16.mxu0 0
        %1730 = vmatpush1.bf16.xpose.msra.mxu0 0
        %1731 = vmatprep.subr.bf16.mxu0 0
        %1732 = vmatpush1.bf16.xpose.msra.mxu0 0
        %1733 = vmatprep.subr.bf16.mxu0 0
        %1734 = vmatpush1.bf16.xpose.msra.mxu0 0
        %1735 = vmatprep.subr.bf16.mxu0 0
        %1736 = vmatpush1.bf16.xpose.msra.mxu0 0
        %1737 = vmatprep.subr.bf16.mxu0 0
        %1738 = vmatpush1.bf16.xpose.msra.mxu0 0
        %1739 = vmatprep.subr.bf16.mxu0 0
        %1740 = vmatpush1.bf16.xpose.msra.mxu0 0
        %1741 = vmatprep.subr.bf16.mxu0 0
        %1742 = vmatpush1.bf16.xpose.msra.mxu0 0
        %1743 = vmatprep.subr.bf16.mxu0 0
        %1744 = vmatpush1.bf16.xpose.msra.mxu0 0
        %1745 = vmatprep.subr.bf16.mxu0 0
        %1746 = vmatpush1.bf16.xpose.msra.mxu0 0
        %1747 = vmatprep.subr.bf16.mxu0 0
        %1748 = vmatpush1.bf16.xpose.msra.mxu0 0
        %1749 = vmatprep.subr.bf16.mxu0 0
        %1750 = vmatpush1.bf16.xpose.msra.mxu0 0
        %1751 = vmatprep.subr.bf16.mxu0 0
        %1752 = vmatpush1.bf16.xpose.msra.mxu0 0
        %1753 = vmatprep.subr.bf16.mxu0 0
        %1754 = vmatpush1.bf16.xpose.msra.mxu0 0
        %1755 = vmatprep.subr.bf16.mxu0 0
        %1756 = vmatpush1.bf16.xpose.msra.mxu0 0
        %1757 = vmatprep.subr.bf16.mxu0 0
        %1758 = vmatpush1.bf16.xpose.msra.mxu0 0
        %1759 = vmatprep.mubr.bf16.mxu0 0
        %1760 = vmatmul.mubr.bf16.gmra.mrb[0].mxu0 %v1722
        %v1761 = vpop.f32.mrb[0].mxu0
        %v1762 = vadd.f32 0.0, %v1761
        %v1763 = vpop.f32.mrb[0].mxu0
        %v1764 = vpop.f32.mrb[0].mxu0
        %v1765 = vpop.f32.mrb[0].mxu0
        %1766 = vdwg.mxu0
        %v1767 = vsel %vm759, %v1611, -inf
        %1768 = vmax.xlane.f32.xlu0 %v1767
        %v1769 = vpop.xlane.xlu0 %1768
        %v1770 = vsel %vm759, %v1662, -inf
        %1771 = vmax.xlane.f32.xlu0 %v1770
        %v1772 = vpop.xlane.xlu0 %1771
        %v1773 = vsel %vm759, %v1712, -inf
        %1774 = vmax.xlane.f32.xlu0 %v1773
        %v1775 = vpop.xlane.xlu0 %1774
        %v1776 = vsel %vm759, %v1762, -inf
        %1777 = vmax.xlane.f32.xlu0 %v1776
        %v1778 = vpop.xlane.xlu0 %1777
        %v1779 = vsub.f32 %v1611, %v1769
        %v1780 = vsub.f32 %v1662, %v1772
        %v1781 = vsub.f32 %v1712, %v1775
        %v1782 = vsub.f32 %v1762, %v1778
        %v1783 = vmul.f32 %v1779, 1.442695
        %v1784 = vpow.pop %v1783
        %v1785 = vmul.f32 %v1780, 1.442695
        %v1786 = vpow.pop %v1785
        %v1787 = vmul.f32 %v1781, 1.442695
        %v1788 = vpow.pop %v1787
        %v1789 = vmul.f32 %v1782, 1.442695
        %v1790 = vpow.pop %v1789
        %v1791 = vsel %vm759, %v1784, 0.0
        %1792 = vadd.xlane.f32.xlu0 %v1791
        %v1793 = vpop.xlane.xlu0 %1792
        %v1794 = vsel %vm759, %v1786, 0.0
        %1795 = vadd.xlane.f32.xlu0 %v1794
        %v1796 = vpop.xlane.xlu0 %1795
        %v1797 = vsel %vm759, %v1788, 0.0
        %1798 = vadd.xlane.f32.xlu0 %v1797
        %v1799 = vpop.xlane.xlu0 %1798
        %v1800 = vsel %vm759, %v1790, 0.0
        %1801 = vadd.xlane.f32.xlu0 %v1800
        %v1802 = vpop.xlane.xlu0 %1801
        %v1803 = vrcp.pop %v1793
        %v1804 = vmul.f32 %v1784, %v1803
        %v1805 = vrcp.pop %v1796
        %v1806 = vmul.f32 %v1786, %v1805
        %v1807 = vrcp.pop %v1799
        %v1808 = vmul.f32 %v1788, %v1807
        %v1809 = vrcp.pop %v1802
        %v1810 = vmul.f32 %v1790, %v1809
        %v1811 = vpack.c.bf16 %v1804, %v1804
        %1812 = vrot.lane.b32.xlu0 %v1566, 64
        %v1813 = vpop.permute.xlu0 %1812
        %v1815 = vsel %vm759, %v1811, 0
        %v1818 = vsel %vm1007, %v1813, 0
        %1820 = vmatprep.subr.bf16.mxu0 0
        %1821 = vmatpush1.bf16.msra.mxu0 %v1818
        %1822 = vmatprep.subr.bf16.mxu0 0
        %1823 = vmatpush1.bf16.msra.mxu0 0
        %1824 = vmatprep.subr.bf16.mxu0 0
        %1825 = vmatpush1.bf16.msra.mxu0 0
        %1826 = vmatprep.subr.bf16.mxu0 0
        %1827 = vmatpush1.bf16.msra.mxu0 0
        %1828 = vmatprep.subr.bf16.mxu0 0
        %1829 = vmatpush1.bf16.msra.mxu0 0
        %1830 = vmatprep.subr.bf16.mxu0 0
        %1831 = vmatpush1.bf16.msra.mxu0 0
        %1832 = vmatprep.subr.bf16.mxu0 0
        %1833 = vmatpush1.bf16.msra.mxu0 0
        %1834 = vmatprep.subr.bf16.mxu0 0
        %1835 = vmatpush1.bf16.msra.mxu0 0
        %1836 = vmatprep.subr.bf16.mxu0 0
        %1837 = vmatpush1.bf16.msra.mxu0 0
        %1838 = vmatprep.subr.bf16.mxu0 0
        %1839 = vmatpush1.bf16.msra.mxu0 0
        %1840 = vmatprep.subr.bf16.mxu0 0
        %1841 = vmatpush1.bf16.msra.mxu0 0
        %1842 = vmatprep.subr.bf16.mxu0 0
        %1843 = vmatpush1.bf16.msra.mxu0 0
        %1844 = vmatprep.subr.bf16.mxu0 0
        %1845 = vmatpush1.bf16.msra.mxu0 0
        %1846 = vmatprep.subr.bf16.mxu0 0
        %1847 = vmatpush1.bf16.msra.mxu0 0
        %1848 = vmatprep.subr.bf16.mxu0 0
        %1849 = vmatpush1.bf16.msra.mxu0 0
        %1850 = vmatprep.subr.bf16.mxu0 0
        %1851 = vmatpush1.bf16.msra.mxu0 0
        %1852 = vmatprep.mubr.bf16.mxu0 0
        %1853 = vmatmul.mubr.bf16.gmra.mrb[0].mxu0 %v1815
        %v1854 = vpop.f32.mrb[0].mxu0
        %v1855 = vadd.f32 0.0, %v1854
        %v1856 = vpop.f32.mrb[0].mxu0
        %v1857 = vpop.f32.mrb[0].mxu0
        %v1858 = vpop.f32.mrb[0].mxu0
        %1859 = vdwg.mxu0
        %v1860 = vpack.c.bf16 %v1806, %v1806
        %1861 = vrot.lane.b32.xlu0 %v1566, 56
        %v1862 = vpop.permute.xlu0 %1861
        %v1864 = vsel %vm759, %v1860, 0
        %v1867 = vsel %vm1007, %v1862, 0
        %1869 = vmatprep.subr.bf16.mxu0 0
        %1870 = vmatpush1.bf16.msra.mxu0 %v1867
        %1871 = vmatprep.subr.bf16.mxu0 0
        %1872 = vmatpush1.bf16.msra.mxu0 0
        %1873 = vmatprep.subr.bf16.mxu0 0
        %1874 = vmatpush1.bf16.msra.mxu0 0
        %1875 = vmatprep.subr.bf16.mxu0 0
        %1876 = vmatpush1.bf16.msra.mxu0 0
        %1877 = vmatprep.subr.bf16.mxu0 0
        %1878 = vmatpush1.bf16.msra.mxu0 0
        %1879 = vmatprep.subr.bf16.mxu0 0
        %1880 = vmatpush1.bf16.msra.mxu0 0
        %1881 = vmatprep.subr.bf16.mxu0 0
        %1882 = vmatpush1.bf16.msra.mxu0 0
        %1883 = vmatprep.subr.bf16.mxu0 0
        %1884 = vmatpush1.bf16.msra.mxu0 0
        %1885 = vmatprep.subr.bf16.mxu0 0
        %1886 = vmatpush1.bf16.msra.mxu0 0
        %1887 = vmatprep.subr.bf16.mxu0 0
        %1888 = vmatpush1.bf16.msra.mxu0 0
        %1889 = vmatprep.subr.bf16.mxu0 0
        %1890 = vmatpush1.bf16.msra.mxu0 0
        %1891 = vmatprep.subr.bf16.mxu0 0
        %1892 = vmatpush1.bf16.msra.mxu0 0
        %1893 = vmatprep.subr.bf16.mxu0 0
        %1894 = vmatpush1.bf16.msra.mxu0 0
        %1895 = vmatprep.subr.bf16.mxu0 0
        %1896 = vmatpush1.bf16.msra.mxu0 0
        %1897 = vmatprep.subr.bf16.mxu0 0
        %1898 = vmatpush1.bf16.msra.mxu0 0
        %1899 = vmatprep.subr.bf16.mxu0 0
        %1900 = vmatpush1.bf16.msra.mxu0 0
        %1901 = vmatprep.mubr.bf16.mxu0 0
        %1902 = vmatmul.mubr.bf16.gmra.mrb[0].mxu0 %v1864
        %v1903 = vpop.f32.mrb[0].mxu0
        %v1904 = vadd.f32 0.0, %v1903
        %v1905 = vpop.f32.mrb[0].mxu0
        %v1906 = vpop.f32.mrb[0].mxu0
        %v1907 = vpop.f32.mrb[0].mxu0
        %1908 = vdwg.mxu0
        %v1909 = vpack.c.bf16 %v1808, %v1808
        %1910 = vrot.lane.b32.xlu0 %v1566, 48
        %v1911 = vpop.permute.xlu0 %1910
        %v1913 = vsel %vm759, %v1909, 0
        %v1916 = vsel %vm1007, %v1911, 0
        %1918 = vmatprep.subr.bf16.mxu0 0
        %1919 = vmatpush1.bf16.msra.mxu0 %v1916
        %1920 = vmatprep.subr.bf16.mxu0 0
        %1921 = vmatpush1.bf16.msra.mxu0 0
        %1922 = vmatprep.subr.bf16.mxu0 0
        %1923 = vmatpush1.bf16.msra.mxu0 0
        %1924 = vmatprep.subr.bf16.mxu0 0
        %1925 = vmatpush1.bf16.msra.mxu0 0
        %1926 = vmatprep.subr.bf16.mxu0 0
        %1927 = vmatpush1.bf16.msra.mxu0 0
        %1928 = vmatprep.subr.bf16.mxu0 0
        %1929 = vmatpush1.bf16.msra.mxu0 0
        %1930 = vmatprep.subr.bf16.mxu0 0
        %1931 = vmatpush1.bf16.msra.mxu0 0
        %1932 = vmatprep.subr.bf16.mxu0 0
        %1933 = vmatpush1.bf16.msra.mxu0 0
        %1934 = vmatprep.subr.bf16.mxu0 0
        %1935 = vmatpush1.bf16.msra.mxu0 0
        %1936 = vmatprep.subr.bf16.mxu0 0
        %1937 = vmatpush1.bf16.msra.mxu0 0
        %1938 = vmatprep.subr.bf16.mxu0 0
        %1939 = vmatpush1.bf16.msra.mxu0 0
        %1940 = vmatprep.subr.bf16.mxu0 0
        %1941 = vmatpush1.bf16.msra.mxu0 0
        %1942 = vmatprep.subr.bf16.mxu0 0
        %1943 = vmatpush1.bf16.msra.mxu0 0
        %1944 = vmatprep.subr.bf16.mxu0 0
        %1945 = vmatpush1.bf16.msra.mxu0 0
        %1946 = vmatprep.subr.bf16.mxu0 0
        %1947 = vmatpush1.bf16.msra.mxu0 0
        %1948 = vmatprep.subr.bf16.mxu0 0
        %1949 = vmatpush1.bf16.msra.mxu0 0
        %1950 = vmatprep.mubr.bf16.mxu0 0
        %1951 = vmatmul.mubr.bf16.gmra.mrb[0].mxu0 %v1913
        %v1952 = vpop.f32.mrb[0].mxu0
        %v1953 = vadd.f32 0.0, %v1952
        %v1954 = vpop.f32.mrb[0].mxu0
        %v1955 = vpop.f32.mrb[0].mxu0
        %v1956 = vpop.f32.mrb[0].mxu0
        %1957 = vdwg.mxu0
        %v1958 = vpack.c.bf16 %v1810, %v1810
        %1959 = vrot.lane.b32.xlu0 %v1566, 40
        %v1960 = vpop.permute.xlu0 %1959
        %v1962 = vsel %vm759, %v1958, 0
        %v1965 = vsel %vm1007, %v1960, 0
        %1967 = vmatprep.subr.bf16.mxu0 0
        %1968 = vmatpush1.bf16.msra.mxu0 %v1965
        %1969 = vmatprep.subr.bf16.mxu0 0
        %1970 = vmatpush1.bf16.msra.mxu0 0
        %1971 = vmatprep.subr.bf16.mxu0 0
        %1972 = vmatpush1.bf16.msra.mxu0 0
        %1973 = vmatprep.subr.bf16.mxu0 0
        %1974 = vmatpush1.bf16.msra.mxu0 0
        %1975 = vmatprep.subr.bf16.mxu0 0
        %1976 = vmatpush1.bf16.msra.mxu0 0
        %1977 = vmatprep.subr.bf16.mxu0 0
        %1978 = vmatpush1.bf16.msra.mxu0 0
        %1979 = vmatprep.subr.bf16.mxu0 0
        %1980 = vmatpush1.bf16.msra.mxu0 0
        %1981 = vmatprep.subr.bf16.mxu0 0
        %1982 = vmatpush1.bf16.msra.mxu0 0
        %1983 = vmatprep.subr.bf16.mxu0 0
        %1984 = vmatpush1.bf16.msra.mxu0 0
        %1985 = vmatprep.subr.bf16.mxu0 0
        %1986 = vmatpush1.bf16.msra.mxu0 0
        %1987 = vmatprep.subr.bf16.mxu0 0
        %1988 = vmatpush1.bf16.msra.mxu0 0
        %1989 = vmatprep.subr.bf16.mxu0 0
        %1990 = vmatpush1.bf16.msra.mxu0 0
        %1991 = vmatprep.subr.bf16.mxu0 0
        %1992 = vmatpush1.bf16.msra.mxu0 0
        %1993 = vmatprep.subr.bf16.mxu0 0
        %1994 = vmatpush1.bf16.msra.mxu0 0
        %1995 = vmatprep.subr.bf16.mxu0 0
        %1996 = vmatpush1.bf16.msra.mxu0 0
        %1997 = vmatprep.subr.bf16.mxu0 0
        %1998 = vmatpush1.bf16.msra.mxu0 0
        %1999 = vmatprep.mubr.bf16.mxu0 0
        %2000 = vmatmul.mubr.bf16.gmra.mrb[0].mxu0 %v1962
        %v2001 = vpop.f32.mrb[0].mxu0
        %v2002 = vadd.f32 0.0, %v2001
        %v2003 = vpop.f32.mrb[0].mxu0
        %v2004 = vpop.f32.mrb[0].mxu0
        %v2005 = vpop.f32.mrb[0].mxu0
        %2006 = vdwg.mxu0
        %2008 = vrot.lane.b32.xlu0 %v1904, 8
        %v2009 = vpop.permute.xlu0 %2008
        %2012 = vrot.lane.b32.xlu0 %v1953, 16
        %v2013 = vpop.permute.xlu0 %2012
        %2016 = vrot.lane.b32.xlu0 %v2002, 24
        %v2017 = vpop.permute.xlu0 %2016
        %v2019 = vsel %vm759, %v1855, %v2009
        %v2020 = vsel %vm1211, %v2019, %v2013
        %v2021 = vsel %vm1213, %v2020, %v2017
        %v2022 = vpack.c.bf16 %v2021, %v2021
        %s2023 = scalar_lea.vmem %s6, 16
        %v2024 = vld [vmem:[%s2023] sm:$0xf]
        %v2025 = vld [vmem:[%s2023 + $0x4] sm:$0xf]
        %v2026 = vld [vmem:[%s2023 + $0x8] sm:$0xf]
        %v2027 = vld [vmem:[%s2023 + $0xc] sm:$0xf]
        %s2028 = scalar_lea.vmem %s7, 1
        %v2029 = vld [vmem:[%s2028] sm:$0x1]
        %v2031 = vlaneseq
        %v2032 = vshrl.u32 %v2031, 7
        %v2033 = vsub.s32 0, %v2032
        %v2034 = vrot.slane %v2029, %v2033
        %v2040 = vunpack.c.l.b16 %v2024
        %v2041 = vunpack.c.l.b16 %v2025
        %v2042 = vunpack.c.l.b16 %v2026
        %v2043 = vunpack.c.l.b16 %v2027
        %v2044 = vpack.c.b16 %v2041, %v2040
        %v2045 = vpack.c.b16 %v2043, %v2042
        %v2049 = vsel %vm709, %v2022, 0
        %2051 = vmatprep.subr.bf16.mxu0 0
        %2052 = vmatpush1.bf16.msra.mxu0 %v2044
        %2053 = vmatprep.subr.bf16.mxu0 0
        %2054 = vmatpush1.bf16.msra.mxu0 %v2045
        %2055 = vmatprep.subr.bf16.mxu0 0
        %2056 = vmatpush1.bf16.msra.mxu0 0
        %2057 = vmatprep.subr.bf16.mxu0 0
        %2058 = vmatpush1.bf16.msra.mxu0 0
        %2059 = vmatprep.subr.bf16.mxu0 0
        %2060 = vmatpush1.bf16.msra.mxu0 0
        %2061 = vmatprep.subr.bf16.mxu0 0
        %2062 = vmatpush1.bf16.msra.mxu0 0
        %2063 = vmatprep.subr.bf16.mxu0 0
        %2064 = vmatpush1.bf16.msra.mxu0 0
        %2065 = vmatprep.subr.bf16.mxu0 0
        %2066 = vmatpush1.bf16.msra.mxu0 0
        %2067 = vmatprep.subr.bf16.mxu0 0
        %2068 = vmatpush1.bf16.msra.mxu0 0
        %2069 = vmatprep.subr.bf16.mxu0 0
        %2070 = vmatpush1.bf16.msra.mxu0 0
        %2071 = vmatprep.subr.bf16.mxu0 0
        %2072 = vmatpush1.bf16.msra.mxu0 0
        %2073 = vmatprep.subr.bf16.mxu0 0
        %2074 = vmatpush1.bf16.msra.mxu0 0
        %2075 = vmatprep.subr.bf16.mxu0 0
        %2076 = vmatpush1.bf16.msra.mxu0 0
        %2077 = vmatprep.subr.bf16.mxu0 0
        %2078 = vmatpush1.bf16.msra.mxu0 0
        %2079 = vmatprep.subr.bf16.mxu0 0
        %2080 = vmatpush1.bf16.msra.mxu0 0
        %2081 = vmatprep.subr.bf16.mxu0 0
        %2082 = vmatpush1.bf16.msra.mxu0 0
        %2083 = vmatprep.mubr.bf16.mxu0 0
        %2084 = vmatmul.mubr.bf16.gmra.mrb[0].mxu0 %v2049
        %v2085 = vpop.f32.mrb[0].mxu0
        %v2086 = vadd.f32 %v2034, %v2085
        %v2087 = vpop.f32.mrb[0].mxu0
        %v2088 = vpop.f32.mrb[0].mxu0
        %v2089 = vpop.f32.mrb[0].mxu0
        %2090 = vdwg.mxu0
        %v2091 = vadd.f32 %v1494, %v2086
        %s2092 = scalar_lea.vmem %s8, 1
        %v2093 = vld [vmem:[%s2092] sm:$0x1]
        %s2094 = scalar_lea.vmem %s9, 1
        %v2095 = vld [vmem:[%s2094] sm:$0x1]
        %v2096 = vsel %vm709, %v2091, 0.0
        %2097 = vadd.xlane.f32.xlu0 %v2096
        %v2098 = vpop.xlane.xlu0 %2097
        %v2099 = vmul.f32 %v2098, %v1288
        %v2100 = vsub.f32 %v2091, %v2099
        %v2101 = vmul.f32 %v2100, %v2100
        %v2102 = vsel %vm709, %v2101, 0.0
        %2103 = vadd.xlane.f32.xlu0 %v2102
        %v2104 = vpop.xlane.xlu0 %2103
        %v2105 = vmul.f32 %v2104, %v1288
        %v2106 = vadd.f32 %v2105, 1e-05
        %v2107 = vrsqrt.pop %v2106
        %v2108 = vmul.f32 %v2100, %v2107
        %v2110 = vlaneseq
        %v2111 = vshrl.u32 %v2110, 7
        %v2112 = vsub.s32 0, %v2111
        %v2113 = vrot.slane %v2093, %v2112
        %v2115 = vmul.f32 %v2108, %v2113
        %v2117 = vlaneseq
        %v2118 = vshrl.u32 %v2117, 7
        %v2119 = vsub.s32 0, %v2118
        %v2120 = vrot.slane %v2095, %v2119
        %v2122 = vadd.f32 %v2115, %v2120
        %v2123 = vpack.c.bf16 %v2122, %v2122
        %s2124 = scalar_lea.vmem %s10, 16
        %v2125 = vld [vmem:[%s2124] sm:$0xf]
        %v2126 = vld [vmem:[%s2124 + $0x4] sm:$0xf]
        %v2127 = vld [vmem:[%s2124 + $0x8] sm:$0xf]
        %v2128 = vld [vmem:[%s2124 + $0xc] sm:$0xf]
        %s2129 = scalar_lea.vmem %s11, 1
        %v2130 = vld [vmem:[%s2129] sm:$0x1]
        %v2132 = vlaneseq
        %v2133 = vshrl.u32 %v2132, 7
        %v2134 = vsub.s32 0, %v2133
        %v2135 = vrot.slane %v2130, %v2134
        %v2141 = vunpack.c.l.b16 %v2125
        %v2142 = vunpack.c.l.b16 %v2126
        %v2143 = vunpack.c.l.b16 %v2127
        %v2144 = vunpack.c.l.b16 %v2128
        %v2145 = vpack.c.b16 %v2142, %v2141
        %v2146 = vpack.c.b16 %v2144, %v2143
        %v2150 = vsel %vm709, %v2123, 0
        %2152 = vmatprep.subr.bf16.mxu0 0
        %2153 = vmatpush1.bf16.msra.mxu0 %v2145
        %2154 = vmatprep.subr.bf16.mxu0 0
        %2155 = vmatpush1.bf16.msra.mxu0 %v2146
        %2156 = vmatprep.subr.bf16.mxu0 0
        %2157 = vmatpush1.bf16.msra.mxu0 0
        %2158 = vmatprep.subr.bf16.mxu0 0
        %2159 = vmatpush1.bf16.msra.mxu0 0
        %2160 = vmatprep.subr.bf16.mxu0 0
        %2161 = vmatpush1.bf16.msra.mxu0 0
        %2162 = vmatprep.subr.bf16.mxu0 0
        %2163 = vmatpush1.bf16.msra.mxu0 0
        %2164 = vmatprep.subr.bf16.mxu0 0
        %2165 = vmatpush1.bf16.msra.mxu0 0
        %2166 = vmatprep.subr.bf16.mxu0 0
        %2167 = vmatpush1.bf16.msra.mxu0 0
        %2168 = vmatprep.subr.bf16.mxu0 0
        %2169 = vmatpush1.bf16.msra.mxu0 0
        %2170 = vmatprep.subr.bf16.mxu0 0
        %2171 = vmatpush1.bf16.msra.mxu0 0
        %2172 = vmatprep.subr.bf16.mxu0 0
        %2173 = vmatpush1.bf16.msra.mxu0 0
        %2174 = vmatprep.subr.bf16.mxu0 0
        %2175 = vmatpush1.bf16.msra.mxu0 0
        %2176 = vmatprep.subr.bf16.mxu0 0
        %2177 = vmatpush1.bf16.msra.mxu0 0
        %2178 = vmatprep.subr.bf16.mxu0 0
        %2179 = vmatpush1.bf16.msra.mxu0 0
        %2180 = vmatprep.subr.bf16.mxu0 0
        %2181 = vmatpush1.bf16.msra.mxu0 0
        %2182 = vmatprep.subr.bf16.mxu0 0
        %2183 = vmatpush1.bf16.msra.mxu0 0
        %2184 = vmatprep.mubr.bf16.mxu0 0
        %2185 = vmatmul.mubr.bf16.gmra.mrb[0].mxu0 %v2150
        %v2186 = vpop.f32.mrb[0].mxu0
        %v2187 = vadd.f32 %v2135, %v2186
        %v2188 = vpop.f32.mrb[0].mxu0
        %v2189 = vpop.f32.mrb[0].mxu0
        %v2190 = vpop.f32.mrb[0].mxu0
        %2191 = vdwg.mxu0
        %v2192 = vmax.f32 %v2187, 0.0
        %v2193 = vpack.c.bf16 %v2192, %v2192
        %s2194 = scalar_lea.vmem %s12, 32
        %v2195 = vld [vmem:[%s2194] sm:$0xf]
        %v2196 = vld [vmem:[%s2194 + $0x4] sm:$0xf]
        %v2197 = vld [vmem:[%s2194 + $0x8] sm:$0xf]
        %v2198 = vld [vmem:[%s2194 + $0xc] sm:$0xf]
        %v2199 = vld [vmem:[%s2194 + $0x10] sm:$0xf]
        %v2200 = vld [vmem:[%s2194 + $0x14] sm:$0xf]
        %v2201 = vld [vmem:[%s2194 + $0x18] sm:$0xf]
        %v2202 = vld [vmem:[%s2194 + $0x1c] sm:$0xf]
        %s2203 = scalar_lea.vmem %s13, 1
        %v2204 = vld [vmem:[%s2203] sm:$0x1]
        %v2206 = vlaneseq
        %v2207 = vshrl.u32 %v2206, 7
        %v2208 = vsub.s32 0, %v2207
        %v2209 = vrot.slane %v2204, %v2208
        %v2219 = vunpack.c.l.b16 %v2195
        %v2220 = vunpack.c.l.b16 %v2196
        %v2221 = vunpack.c.l.b16 %v2197
        %v2222 = vunpack.c.l.b16 %v2198
        %v2223 = vunpack.c.l.b16 %v2199
        %v2224 = vunpack.c.l.b16 %v2200
        %v2225 = vunpack.c.l.b16 %v2201
        %v2226 = vunpack.c.l.b16 %v2202
        %v2227 = vpack.c.b16 %v2220, %v2219
        %v2228 = vpack.c.b16 %v2222, %v2221
        %v2229 = vpack.c.b16 %v2224, %v2223
        %v2230 = vpack.c.b16 %v2226, %v2225
        %v2236 = vsel %vm1421, %v2193, 0
        %2238 = vmatprep.subr.bf16.mxu0 0
        %2239 = vmatpush1.bf16.msra.mxu0 %v2227
        %2240 = vmatprep.subr.bf16.mxu0 0
        %2241 = vmatpush1.bf16.msra.mxu0 %v2228
        %2242 = vmatprep.subr.bf16.mxu0 0
        %2243 = vmatpush1.bf16.msra.mxu0 %v2229
        %2244 = vmatprep.subr.bf16.mxu0 0
        %2245 = vmatpush1.bf16.msra.mxu0 %v2230
        %2246 = vmatprep.subr.bf16.mxu0 0
        %2247 = vmatpush1.bf16.msra.mxu0 0
        %2248 = vmatprep.subr.bf16.mxu0 0
        %2249 = vmatpush1.bf16.msra.mxu0 0
        %2250 = vmatprep.subr.bf16.mxu0 0
        %2251 = vmatpush1.bf16.msra.mxu0 0
        %2252 = vmatprep.subr.bf16.mxu0 0
        %2253 = vmatpush1.bf16.msra.mxu0 0
        %2254 = vmatprep.subr.bf16.mxu0 0
        %2255 = vmatpush1.bf16.msra.mxu0 0
        %2256 = vmatprep.subr.bf16.mxu0 0
        %2257 = vmatpush1.bf16.msra.mxu0 0
        %2258 = vmatprep.subr.bf16.mxu0 0
        %2259 = vmatpush1.bf16.msra.mxu0 0
        %2260 = vmatprep.subr.bf16.mxu0 0
        %2261 = vmatpush1.bf16.msra.mxu0 0
        %2262 = vmatprep.subr.bf16.mxu0 0
        %2263 = vmatpush1.bf16.msra.mxu0 0
        %2264 = vmatprep.subr.bf16.mxu0 0
        %2265 = vmatpush1.bf16.msra.mxu0 0
        %2266 = vmatprep.subr.bf16.mxu0 0
        %2267 = vmatpush1.bf16.msra.mxu0 0
        %2268 = vmatprep.subr.bf16.mxu0 0
        %2269 = vmatpush1.bf16.msra.mxu0 0
        %2270 = vmatprep.mubr.bf16.mxu0 0
        %2271 = vmatmul.mubr.bf16.gmra.mrb[0].mxu0 %v2236
        %v2272 = vpop.f32.mrb[0].mxu0
        %v2273 = vadd.f32 %v2209, %v2272
        %v2274 = vpop.f32.mrb[0].mxu0
        %v2275 = vpop.f32.mrb[0].mxu0
        %v2276 = vpop.f32.mrb[0].mxu0
        %2277 = vdwg.mxu0
        %v2278 = vadd.f32 %v2122, %v2273
        %s2279 = scalar_lea.vmem %s14, 1
        %v2280 = vld [vmem:[%s2279] sm:$0x1]
        %s2281 = scalar_lea.vmem %s15, 1
        %v2282 = vld [vmem:[%s2281] sm:$0x1]
        %v2283 = vsel %vm709, %v2278, 0.0
        %2284 = vadd.xlane.f32.xlu0 %v2283
        %v2285 = vpop.xlane.xlu0 %2284
        %v2286 = vmul.f32 %v2285, %v1288
        %v2287 = vsub.f32 %v2278, %v2286
        %v2288 = vmul.f32 %v2287, %v2287
        %v2289 = vsel %vm709, %v2288, 0.0
        %2290 = vadd.xlane.f32.xlu0 %v2289
        %v2291 = vpop.xlane.xlu0 %2290
        %v2292 = vmul.f32 %v2291, %v1288
        %v2293 = vadd.f32 %v2292, 1e-05
        %v2294 = vrsqrt.pop %v2293
        %v2295 = vmul.f32 %v2287, %v2294
        %v2297 = vlaneseq
        %v2298 = vshrl.u32 %v2297, 7
        %v2299 = vsub.s32 0, %v2298
        %v2300 = vrot.slane %v2280, %v2299
        %v2302 = vmul.f32 %v2295, %v2300
        %v2304 = vlaneseq
        %v2305 = vshrl.u32 %v2304, 7
        %v2306 = vsub.s32 0, %v2305
        %v2307 = vrot.slane %v2282, %v2306
        %v2309 = vadd.f32 %v2302, %v2307
        %v2310 = vld [vmem:[%s16] sm:$0x1]
        %v2311 = vld [vmem:[%s17] sm:$0x1]
        %v2312 = vsel %vm709, %v2309, 0.0
        %2313 = vadd.xlane.f32.xlu0 %v2312
        %v2314 = vpop.xlane.xlu0 %2313
        %v2315 = vmul.f32 %v2314, %v1288
        %v2316 = vsub.f32 %v2309, %v2315
        %v2317 = vmul.f32 %v2316, %v2316
        %v2318 = vsel %vm709, %v2317, 0.0
        %2319 = vadd.xlane.f32.xlu0 %v2318
        %v2320 = vpop.xlane.xlu0 %2319
        %v2321 = vmul.f32 %v2320, %v1288
        %v2322 = vadd.f32 %v2321, 1e-05
        %v2323 = vrsqrt.pop %v2322
        %v2324 = vmul.f32 %v2316, %v2323
        %v2326 = vlaneseq
        %v2327 = vshrl.u32 %v2326, 7
        %v2328 = vsub.s32 0, %v2327
        %v2329 = vrot.slane %v2310, %v2328
        %v2331 = vmul.f32 %v2324, %v2329
        %v2333 = vlaneseq
        %v2334 = vshrl.u32 %v2333, 7
        %v2335 = vsub.s32 0, %v2334
        %v2336 = vrot.slane %v2311, %v2335
        %v2338 = vadd.f32 %v2331, %v2336
        %v2339 = vsel %vm709, %v2338, 0.0
        %v2340 = vrot.slane %v2339, 4
        %v2341 = vadd.f32 %v2339, %v2340
        %v2342 = vrot.slane %v2341, 2
        %v2343 = vadd.f32 %v2341, %v2342
        %v2344 = vrot.slane %v2343, 1
        %v2345 = vadd.f32 %v2343, %v2344
        %v2346 = vrcp.pop 8.0
        %v2347 = vmul.f32 %v2345, %v2346
        %v2348 = vpack.c.bf16 %v2347, %v2347
        %v2349 = vld [vmem:[%s18] sm:$0xf]
        %v2350 = vld [vmem:[%s18 + $0x4] sm:$0xf]
        %v2351 = vld [vmem:[%s18 + $0x8] sm:$0xf]
        %v2352 = vld [vmem:[%s18 + $0xc] sm:$0xf]
        %v2353 = vld [vmem:[%s19] sm:$0x1]
        %v2358 = vunpack.c.l.b16 %v2349
        %v2359 = vunpack.c.l.b16 %v2350
        %v2360 = vunpack.c.l.b16 %v2351
        %v2361 = vunpack.c.l.b16 %v2352
        %v2362 = vpack.c.b16 %v2359, %v2358
        %v2363 = vpack.c.b16 %v2361, %v2360
        %v2367 = vsel %vm709, %v2348, 0
        %2369 = vmatprep.subr.bf16.mxu0 0
        %2370 = vmatpush1.bf16.msra.mxu0 %v2362
        %2371 = vmatprep.subr.bf16.mxu0 0
        %2372 = vmatpush1.bf16.msra.mxu0 %v2363
        %2373 = vmatprep.subr.bf16.mxu0 0
        %2374 = vmatpush1.bf16.msra.mxu0 0
        %2375 = vmatprep.subr.bf16.mxu0 0
        %2376 = vmatpush1.bf16.msra.mxu0 0
        %2377 = vmatprep.subr.bf16.mxu0 0
        %2378 = vmatpush1.bf16.msra.mxu0 0
        %2379 = vmatprep.subr.bf16.mxu0 0
        %2380 = vmatpush1.bf16.msra.mxu0 0
        %2381 = vmatprep.subr.bf16.mxu0 0
        %2382 = vmatpush1.bf16.msra.mxu0 0
        %2383 = vmatprep.subr.bf16.mxu0 0
        %2384 = vmatpush1.bf16.msra.mxu0 0
        %2385 = vmatprep.subr.bf16.mxu0 0
        %2386 = vmatpush1.bf16.msra.mxu0 0
        %2387 = vmatprep.subr.bf16.mxu0 0
        %2388 = vmatpush1.bf16.msra.mxu0 0
        %2389 = vmatprep.subr.bf16.mxu0 0
        %2390 = vmatpush1.bf16.msra.mxu0 0
        %2391 = vmatprep.subr.bf16.mxu0 0
        %2392 = vmatpush1.bf16.msra.mxu0 0
        %2393 = vmatprep.subr.bf16.mxu0 0
        %2394 = vmatpush1.bf16.msra.mxu0 0
        %2395 = vmatprep.subr.bf16.mxu0 0
        %2396 = vmatpush1.bf16.msra.mxu0 0
        %2397 = vmatprep.subr.bf16.mxu0 0
        %2398 = vmatpush1.bf16.msra.mxu0 0
        %2399 = vmatprep.subr.bf16.mxu0 0
        %2400 = vmatpush1.bf16.msra.mxu0 0
        %2401 = vmatprep.mubr.bf16.mxu0 0
        %2402 = vmatmul.mubr.bf16.gmra.mrb[0].mxu0 %v2367
        %v2403 = vpop.f32.mrb[0].mxu0
        %v2404 = vadd.f32 %v2353, %v2403
        %v2405 = vpop.f32.mrb[0].mxu0
        %v2406 = vpop.f32.mrb[0].mxu0
        %v2407 = vpop.f32.mrb[0].mxu0
        %2408 = vdwg.mxu0
        %vm2409 = vcmask 16384
        %2410 = vst.msk [vmem:[%s619] sm:$0x1] %vm2409, %v2404
        %s2411 = sand.u32 %s467, 1
        %s2412 = scalar_lea.sflag [#allocation3], %s2411
        %s2413 = sand.u32 %s467, 1
        %s2414 = scalar_lea.vmem [#allocation2], %s2413
        // Predicated region
        $region101: #{transformer_forward.1} parent=99 // pred_check
          %p2415 = pneg %p477
        $region102: #{transformer_forward.1} parent=99 // pred_check_branch
          %2417 = sbr.rel (%p2415) target = $region104
        $region103: #{transformer_forward.1} parent=99 // pred_region
          %s2419 = ssub.s32 16, 16
          %2420 = vsyncadd %s2412, %s2419
          %s2421 = smul.addr %s34, 16
          %s2422 = scalar_lea.hbm %s20, %s2421
          %s2424 = sshll.u32 %s2414, 4
          %s2425 = int_to_ptr.vmem [resolvable:$true] %s2424
          %2427 = dma.vmem_to_hbm [thread:$0]  %s2425, 16, %s2422, %s2412
        $region104: #{transformer_forward.1} parent=99 // pred_fallthru
          _
      $region100: #{transformer_forward.1} parent=5 // pred_fallthru
        _
      %p2428 = scmp.le.s32.totalorder 2, %s29
      // Predicated region
      $region105: #{transformer_forward.1} parent=5 // pred_check
        %p2429 = pneg %p2428
      $region106: #{transformer_forward.1} parent=5 // pred_check_branch
        %2431 = sbr.rel (%p2429) target = $region108
      $region107: #{transformer_forward.1} parent=5 // pred_region
        %s2432 = ssub.s32 %s29, 2
        // Predicated region
        $region109: #{transformer_forward.1} parent=107 // pred_check
          %p2433 = pneg %p483
        $region110: #{transformer_forward.1} parent=107 // pred_check_branch
          %2435 = sbr.rel (%p2433) target = $region112
        $region111: #{transformer_forward.1} parent=107 // pred_region
          %s2436 = sand.u32 %s468, 1
          %s2437 = scalar_lea.sflag [#allocation3], %s2436
          %s2438 = sand.u32 %s468, 1
          %s2439 = scalar_lea.vmem [#allocation2], %s2438
          %2440 = dma.done %s2437, 16
        $region112: #{transformer_forward.1} parent=107 // pred_fallthru
          _
      $region108: #{transformer_forward.1} parent=5 // pred_fallthru
        _
    $region6: #{transformer_forward.1} parent=1 // loop_footer
      %s33 = sadd.s32 1, %s29
    $region7: #{transformer_forward.1} parent=1 // loop_footer_branch
      %28 = sbr.rel target = $region3
    $region8: #{transformer_forward.1} parent=1 // loop_exit
      _
    %2441 = vsyncpa [#allocation3], 1
    %s2442 = scalar_lea.sflag [#allocation3], 1
    %2443 = vsyncpa %s2442, 1

</llo_original>
